<compile_context>
chip_gen: v5e
topology: v5e:2x2
jax: 0.10.0
libtpu: 0.0.40
codegen_flags: <defaults>
</compile_context>

<pallas_src>
import jax
import jax.numpy as jnp
from jax.experimental import pallas as pl
from jax.experimental.pallas import tpu as pltpu

BETA = 0.9
THRESHOLD = 1.0
TIME_STEPS = 25

IN_DIM = 28 * 28      # 784  (logical)
HID_DIM = 1000        # logical
OUT_DIM = 10          # logical

IN_PAD = 896          # 7 * 128
HID_PAD = 1024        # 8 * 128
OUT_PAD = 128         # 1 * 128 (lane-dense output stores)


def _round_up(n, m):
    return -(-n // m) * m


def _lif_reset(m, spk):
    # THRESHOLD == 1.0 -> subtract the 0/1 spike directly (saves a VPU multiply
    # per element per layer per step).
    if THRESHOLD == 1.0:
        return m - spk
    return m - spk * THRESHOLD


def snn_mnist_kernel(x_ref, w1_ref, b1_ref, w2_ref, b2_ref, out_ref, spk_ref):
    """Full 25-step SNN forward for one batch tile."""
    tb = x_ref.shape[0]

    # fc1 current is time-invariant -> compute once on the MXU.
    cur1 = (jnp.dot(x_ref[...], w1_ref[...], preferred_element_type=jnp.float32)
            + b1_ref[...])                                    # (tb, HID_PAD) f32

    # ---- Phase 1: VPU-only LIF-1 recurrence, stage all T spike maps in VMEM ----
    mem1 = jnp.zeros((tb, HID_PAD), jnp.float32)
    for t in range(TIME_STEPS):           # static trip count -> static offsets
        m1 = BETA * mem1 + cur1
        spk1 = (m1 >= THRESHOLD).astype(jnp.float32)
        spk_ref[pl.ds(t * tb, tb), :] = spk1.astype(spk_ref.dtype)
        mem1 = _lif_reset(m1, spk1)

    # ---- Phase 2: all 25 fc2 matmuls batched into a single MXU call ----
    # (spikes are exactly representable in the scratch dtype; b2 added once.)
    cur2_all = (jnp.dot(spk_ref[...], w2_ref[...],
                        preferred_element_type=jnp.float32)
                + b2_ref[...])                                # (T*tb, OUT_PAD) f32

    # ---- Phase 3: tiny LIF-2 scan + spike-rate accumulation ----
    mem2 = jnp.zeros((tb, OUT_PAD), jnp.float32)
    acc = jnp.zeros((tb, OUT_PAD), jnp.float32)
    for t in range(TIME_STEPS):
        m2 = BETA * mem2 + cur2_all[t * tb:(t + 1) * tb, :]
        spk2 = (m2 >= THRESHOLD).astype(jnp.float32)
        mem2 = _lif_reset(m2, spk2)
        acc = acc + spk2

    out_ref[...] = acc / jnp.float32(TIME_STEPS)


def prepare_snn_params(w1, b1, w2, b2, *, fc2_bf16=False):
    """Pad (and optionally bf16-cast the fc2 weight) ONCE, outside the per-call path.

    Weights are stored as (in_features, out_features), i.e. transposed relative
    to PyTorch's nn.Linear weight, so the kernel computes x @ W + b.
    """
    compute_dtype = jnp.bfloat16 if fc2_bf16 else jnp.float32
    w1_p = jnp.zeros((IN_PAD, HID_PAD), jnp.float32).at[:IN_DIM, :HID_DIM].set(
        w1.astype(jnp.float32))
    b1_p = jnp.zeros((1, HID_PAD), jnp.float32).at[0, :HID_DIM].set(
        b1.reshape(-1).astype(jnp.float32))
    w2_p = jnp.zeros((HID_PAD, OUT_PAD), jnp.float32).at[:HID_DIM, :OUT_DIM].set(
        w2.astype(jnp.float32)).astype(compute_dtype)
    b2_p = jnp.zeros((1, OUT_PAD), jnp.float32).at[0, :OUT_DIM].set(
        b2.reshape(-1).astype(jnp.float32))
    return (w1_p, b1_p, w2_p, b2_p)


def _choose_tiles(batch, batch_tile):
    if batch_tile is None:
        # 256 fills the 256-wide MXU rows on v6e/v7x; 128 otherwise (modest VMEM).
        batch_tile = 256 if batch >= 256 else 128
    tb = min(batch_tile, _round_up(max(batch, 8), 8))
    b_pad = _round_up(batch, tb)
    if b_pad // tb < 2 and batch > 8:
        # Force >= 2 grid steps so ("parallel",) uses both v7x TensorCores and
        # the x DMA / output writeback pipelines under compute.
        tb = _round_up(-(-batch // 2), 8)
        b_pad = _round_up(batch, tb)
    return tb, b_pad


def snn_mnist_forward_prepared(x, params, *, batch_tile=None):
    """x: (B, 1, 28, 28) NCHW float32, params from prepare_snn_params."""
    w1_p, b1_p, w2_p, b2_p = params
    batch = x.shape[0]
    x_flat = x.reshape(batch, -1).astype(jnp.float32)         # (B, 784)

    tb, b_pad = _choose_tiles(batch, batch_tile)
    x_p = jnp.zeros((b_pad, IN_PAD), jnp.float32).at[:batch, :IN_DIM].set(x_flat)

    compute_dtype = w2_p.dtype
    grid = (b_pad // tb,)

    out_p = pl.pallas_call(
        snn_mnist_kernel,
        out_shape=jax.ShapeDtypeStruct((b_pad, OUT_PAD), jnp.float32),
        grid=grid,
        in_specs=[
            pl.BlockSpec((tb, IN_PAD), lambda i: (i, 0)),        # x: batch-tiled
            pl.BlockSpec((IN_PAD, HID_PAD), lambda i: (0, 0)),   # w1: resident
            pl.BlockSpec((1, HID_PAD), lambda i: (0, 0)),        # b1: resident
            pl.BlockSpec((HID_PAD, OUT_PAD), lambda i: (0, 0)),  # w2: resident
            pl.BlockSpec((1, OUT_PAD), lambda i: (0, 0)),        # b2: resident
        ],
        out_specs=pl.BlockSpec((tb, OUT_PAD), lambda i: (i, 0)),
        scratch_shapes=[pltpu.VMEM((TIME_STEPS * tb, HID_PAD), compute_dtype)],
        compiler_params=pltpu.CompilerParams(
            dimension_semantics=("parallel",),    # megacore sharding on v7x
            vmem_limit_bytes=48 << 20,            # fits v7x's 64 MiB with headroom
        ),
    )(x_p, w1_p, b1_p, w2_p, b2_p)

    return out_p[:batch, :OUT_DIM]


def snn_mnist_forward(x, w1, b1, w2, b2, *, batch_tile=None, fc2_bf16=False):
    params = prepare_snn_params(w1, b1, w2, b2, fc2_bf16=fc2_bf16)
    return snn_mnist_forward_prepared(x, params, batch_tile=batch_tile)


def reference_forward(x, w1, b1, w2, b2):
    """Pure-JAX reference mirroring the PyTorch forward exactly (f32)."""
    batch = x.shape[0]
    xf = x.reshape(batch, -1).astype(jnp.float32)
    mem1 = jnp.zeros((batch, HID_DIM), jnp.float32)
    mem2 = jnp.zeros((batch, OUT_DIM), jnp.float32)
    out = jnp.zeros((batch, OUT_DIM), jnp.float32)
    for _ in range(TIME_STEPS):
        cur1 = xf @ w1 + b1
        mem1 = BETA * mem1 + cur1
        spk1 = (mem1 >= THRESHOLD).astype(jnp.float32)
        mem1 = jnp.where(spk1 > 0, mem1 - THRESHOLD, mem1)
        cur2 = spk1 @ w2 + b2
        mem2 = BETA * mem2 + cur2
        spk2 = (mem2 >= THRESHOLD).astype(jnp.float32)
        mem2 = jnp.where(spk2 > 0, mem2 - THRESHOLD, mem2)
        out = out + spk2
    return out / TIME_STEPS


if __name__ == "__main__":
    key = jax.random.PRNGKey(0)
    kx, k1, kb1, k2, kb2 = jax.random.split(key, 5)

    batch = 2
    # Deterministic synthetic "MNIST" input in NCHW layout.
    x = jax.random.uniform(kx, (batch, 1, 28, 28), dtype=jnp.float32)

    # Deterministic PyTorch-Linear-style init, stored as (in_features, out_features).
    lim1 = 1.0 / jnp.sqrt(jnp.float32(IN_DIM))
    lim2 = 1.0 / jnp.sqrt(jnp.float32(HID_DIM))
    w1 = jax.random.uniform(k1, (IN_DIM, HID_DIM), jnp.float32, -lim1, lim1)
    b1 = jax.random.uniform(kb1, (HID_DIM,), jnp.float32, -lim1, lim1)
    w2 = jax.random.uniform(k2, (HID_DIM, OUT_DIM), jnp.float32, -lim2, lim2)
    b2 = jax.random.uniform(kb2, (OUT_DIM,), jnp.float32, -lim2, lim2)

    # Weights padded / laid out once (hoisted out of the per-call path).
    params_f32 = prepare_snn_params(w1, b1, w2, b2, fc2_bf16=False)

    out = snn_mnist_forward_prepared(x, params_f32)
    out = jax.block_until_ready(out)

    ref = reference_forward(x, w1, b1, w2, b2)
    assert out.shape == (batch, OUT_DIM)
    assert jnp.allclose(out, ref, atol=1e-5, rtol=1e-5), "mismatch vs reference"

    # Optional bf16 fc2 path (w2 rounding can flip individual spikes near the
    # threshold, so only a loose check against the f32 reference applies).
    params_bf16 = prepare_snn_params(w1, b1, w2, b2, fc2_bf16=True)
    out_bf16 = jax.block_until_ready(snn_mnist_forward_prepared(x, params_bf16))
    assert out_bf16.shape == (batch, OUT_DIM)
    assert bool(jnp.all(jnp.isfinite(out_bf16)))
    assert float(jnp.max(jnp.abs(out_bf16 - ref))) <= 0.5

    print("KERNEL_OK")
</pallas_src>

<mosaic_0001>
module attributes {stable_mosaic.version = 11 : i64} {
  func.func @snn_mnist_kernel(%arg0: i32, %arg1: memref<8x896xf32, #tpu.memory_space<vmem>>, %arg2: memref<896x1024xf32, #tpu.memory_space<vmem>>, %arg3: memref<1x1024xf32, #tpu.memory_space<vmem>>, %arg4: memref<1024x128xf32, #tpu.memory_space<vmem>>, %arg5: memref<1x128xf32, #tpu.memory_space<vmem>>, %arg6: memref<8x128xf32, #tpu.memory_space<vmem>>, %arg7: memref<200x1024xf32, #tpu.memory_space<vmem>>) attributes {dimension_semantics = [#tpu.dimension_semantics<parallel>], iteration_bounds = array<i64: 1>, scalar_prefetch = 0 : i64, scratch_operands = 1 : i64, tpu.core_type = #tpu.core_type<tc>, window_params = [{transform_indices = @transform_0, window_bounds = array<i64: 8, 896>}, {pipeline_mode = #tpu.pipeline_mode<synchronous>, transform_indices = @transform_1, window_bounds = array<i64: 896, 1024>}, {pipeline_mode = #tpu.pipeline_mode<synchronous>, transform_indices = @transform_2, window_bounds = array<i64: 1, 1024>}, {pipeline_mode = #tpu.pipeline_mode<synchronous>, transform_indices = @transform_3, window_bounds = array<i64: 1024, 128>}, {pipeline_mode = #tpu.pipeline_mode<synchronous>, transform_indices = @transform_4, window_bounds = array<i64: 1, 128>}, {transform_indices = @transform_5, window_bounds = array<i64: 8, 128>}]} {
    %c0 = arith.constant 0 : index
    %c0_0 = arith.constant 0 : index
    %0 = vector.load %arg1[%c0, %c0_0] : memref<8x896xf32, #tpu.memory_space<vmem>>, vector<8x896xf32>
    %c0_1 = arith.constant 0 : index
    %c0_2 = arith.constant 0 : index
    %1 = vector.load %arg2[%c0_1, %c0_2] : memref<896x1024xf32, #tpu.memory_space<vmem>>, vector<896x1024xf32>
    %cst = arith.constant dense<0.000000e+00> : vector<8x1024xf32>
    %2 = tpu.matmul %0, %1, %cst {dimension_numbers = #tpu.dot_dimension_numbers<[1], [0], [0], [1], [0, 0, 1, 1], [], []>} : vector<8x896xf32>, vector<896x1024xf32>, vector<8x1024xf32> -> vector<8x1024xf32>
    %c0_3 = arith.constant 0 : index
    %c0_4 = arith.constant 0 : index
    %3 = vector.load %arg3[%c0_3, %c0_4] : memref<1x1024xf32, #tpu.memory_space<vmem>>, vector<1x1024xf32>
    %4 = vector.broadcast %3 : vector<1x1024xf32> to vector<8x1024xf32>
    %5 = arith.addf %2, %4 : vector<8x1024xf32>
    %cst_5 = arith.constant 0.000000e+00 : f32
    %6 = vector.broadcast %cst_5 : f32 to vector<8x1024xf32>
    %cst_6 = arith.constant 0.899999976 : f32
    %7 = vector.broadcast %cst_6 : f32 to vector<8x1024xf32>
    %8 = arith.mulf %7, %6 : vector<8x1024xf32>
    %9 = arith.addf %8, %5 : vector<8x1024xf32>
    %cst_7 = arith.constant 1.000000e+00 : f32
    %10 = vector.broadcast %cst_7 : f32 to vector<8x1024xf32>
    %11 = arith.cmpf oge, %9, %10 : vector<8x1024xf32>
    %12 = arith.extui %11 : vector<8x1024xi1> to vector<8x1024xi32>
    %13 = arith.sitofp %12 : vector<8x1024xi32> to vector<8x1024xf32>
    %c0_8 = arith.constant 0 : index
    %c0_9 = arith.constant 0 : index
    %14 = vector.load %arg7[%c0_8, %c0_9] : memref<200x1024xf32, #tpu.memory_space<vmem>>, vector<8x1024xf32>
    tpu.vector_store %arg7[%c0_8, %c0_9], %13 {strides = array<i32>} : memref<200x1024xf32, #tpu.memory_space<vmem>>, vector<8x1024xf32>,
    %15 = arith.subf %9, %13 : vector<8x1024xf32>
    %cst_10 = arith.constant 0.899999976 : f32
    %16 = vector.broadcast %cst_10 : f32 to vector<8x1024xf32>
    %17 = arith.mulf %16, %15 : vector<8x1024xf32>
    %18 = arith.addf %17, %5 : vector<8x1024xf32>
    %cst_11 = arith.constant 1.000000e+00 : f32
    %19 = vector.broadcast %cst_11 : f32 to vector<8x1024xf32>
    %20 = arith.cmpf oge, %18, %19 : vector<8x1024xf32>
    %21 = arith.extui %20 : vector<8x1024xi1> to vector<8x1024xi32>
    %22 = arith.sitofp %21 : vector<8x1024xi32> to vector<8x1024xf32>
    %c8 = arith.constant 8 : index
    %c0_12 = arith.constant 0 : index
    %23 = vector.load %arg7[%c8, %c0_12] : memref<200x1024xf32, #tpu.memory_space<vmem>>, vector<8x1024xf32>
    tpu.vector_store %arg7[%c8, %c0_12], %22 {strides = array<i32>} : memref<200x1024xf32, #tpu.memory_space<vmem>>, vector<8x1024xf32>,
    %24 = arith.subf %18, %22 : vector<8x1024xf32>
    %cst_13 = arith.constant 0.899999976 : f32
    %25 = vector.broadcast %cst_13 : f32 to vector<8x1024xf32>
    %26 = arith.mulf %25, %24 : vector<8x1024xf32>
    %27 = arith.addf %26, %5 : vector<8x1024xf32>
    %cst_14 = arith.constant 1.000000e+00 : f32
    %28 = vector.broadcast %cst_14 : f32 to vector<8x1024xf32>
    %29 = arith.cmpf oge, %27, %28 : vector<8x1024xf32>
    %30 = arith.extui %29 : vector<8x1024xi1> to vector<8x1024xi32>
    %31 = arith.sitofp %30 : vector<8x1024xi32> to vector<8x1024xf32>
    %c16 = arith.constant 16 : index
    %c0_15 = arith.constant 0 : index
    %32 = vector.load %arg7[%c16, %c0_15] : memref<200x1024xf32, #tpu.memory_space<vmem>>, vector<8x1024xf32>
    tpu.vector_store %arg7[%c16, %c0_15], %31 {strides = array<i32>} : memref<200x1024xf32, #tpu.memory_space<vmem>>, vector<8x1024xf32>,
    %33 = arith.subf %27, %31 : vector<8x1024xf32>
    %cst_16 = arith.constant 0.899999976 : f32
    %34 = vector.broadcast %cst_16 : f32 to vector<8x1024xf32>
    %35 = arith.mulf %34, %33 : vector<8x1024xf32>
    %36 = arith.addf %35, %5 : vector<8x1024xf32>
    %cst_17 = arith.constant 1.000000e+00 : f32
    %37 = vector.broadcast %cst_17 : f32 to vector<8x1024xf32>
    %38 = arith.cmpf oge, %36, %37 : vector<8x1024xf32>
    %39 = arith.extui %38 : vector<8x1024xi1> to vector<8x1024xi32>
    %40 = arith.sitofp %39 : vector<8x1024xi32> to vector<8x1024xf32>
    %c24 = arith.constant 24 : index
    %c0_18 = arith.constant 0 : index
    %41 = vector.load %arg7[%c24, %c0_18] : memref<200x1024xf32, #tpu.memory_space<vmem>>, vector<8x1024xf32>
    tpu.vector_store %arg7[%c24, %c0_18], %40 {strides = array<i32>} : memref<200x1024xf32, #tpu.memory_space<vmem>>, vector<8x1024xf32>,
    %42 = arith.subf %36, %40 : vector<8x1024xf32>
    %cst_19 = arith.constant 0.899999976 : f32
    %43 = vector.broadcast %cst_19 : f32 to vector<8x1024xf32>
    %44 = arith.mulf %43, %42 : vector<8x1024xf32>
    %45 = arith.addf %44, %5 : vector<8x1024xf32>
    %cst_20 = arith.constant 1.000000e+00 : f32
    %46 = vector.broadcast %cst_20 : f32 to vector<8x1024xf32>
    %47 = arith.cmpf oge, %45, %46 : vector<8x1024xf32>
    %48 = arith.extui %47 : vector<8x1024xi1> to vector<8x1024xi32>
    %49 = arith.sitofp %48 : vector<8x1024xi32> to vector<8x1024xf32>
    %c32 = arith.constant 32 : index
    %c0_21 = arith.constant 0 : index
    %50 = vector.load %arg7[%c32, %c0_21] : memref<200x1024xf32, #tpu.memory_space<vmem>>, vector<8x1024xf32>
    tpu.vector_store %arg7[%c32, %c0_21], %49 {strides = array<i32>} : memref<200x1024xf32, #tpu.memory_space<vmem>>, vector<8x1024xf32>,
    %51 = arith.subf %45, %49 : vector<8x1024xf32>
    %cst_22 = arith.constant 0.899999976 : f32
    %52 = vector.broadcast %cst_22 : f32 to vector<8x1024xf32>
    %53 = arith.mulf %52, %51 : vector<8x1024xf32>
    %54 = arith.addf %53, %5 : vector<8x1024xf32>
    %cst_23 = arith.constant 1.000000e+00 : f32
    %55 = vector.broadcast %cst_23 : f32 to vector<8x1024xf32>
    %56 = arith.cmpf oge, %54, %55 : vector<8x1024xf32>
    %57 = arith.extui %56 : vector<8x1024xi1> to vector<8x1024xi32>
    %58 = arith.sitofp %57 : vector<8x1024xi32> to vector<8x1024xf32>
    %c40 = arith.constant 40 : index
    %c0_24 = arith.constant 0 : index
    %59 = vector.load %arg7[%c40, %c0_24] : memref<200x1024xf32, #tpu.memory_space<vmem>>, vector<8x1024xf32>
    tpu.vector_store %arg7[%c40, %c0_24], %58 {strides = array<i32>} : memref<200x1024xf32, #tpu.memory_space<vmem>>, vector<8x1024xf32>,
    %60 = arith.subf %54, %58 : vector<8x1024xf32>
    %cst_25 = arith.constant 0.899999976 : f32
    %61 = vector.broadcast %cst_25 : f32 to vector<8x1024xf32>
    %62 = arith.mulf %61, %60 : vector<8x1024xf32>
    %63 = arith.addf %62, %5 : vector<8x1024xf32>
    %cst_26 = arith.constant 1.000000e+00 : f32
    %64 = vector.broadcast %cst_26 : f32 to vector<8x1024xf32>
    %65 = arith.cmpf oge, %63, %64 : vector<8x1024xf32>
    %66 = arith.extui %65 : vector<8x1024xi1> to vector<8x1024xi32>
    %67 = arith.sitofp %66 : vector<8x1024xi32> to vector<8x1024xf32>
    %c48 = arith.constant 48 : index
    %c0_27 = arith.constant 0 : index
    %68 = vector.load %arg7[%c48, %c0_27] : memref<200x1024xf32, #tpu.memory_space<vmem>>, vector<8x1024xf32>
    tpu.vector_store %arg7[%c48, %c0_27], %67 {strides = array<i32>} : memref<200x1024xf32, #tpu.memory_space<vmem>>, vector<8x1024xf32>,
    %69 = arith.subf %63, %67 : vector<8x1024xf32>
    %cst_28 = arith.constant 0.899999976 : f32
    %70 = vector.broadcast %cst_28 : f32 to vector<8x1024xf32>
    %71 = arith.mulf %70, %69 : vector<8x1024xf32>
    %72 = arith.addf %71, %5 : vector<8x1024xf32>
    %cst_29 = arith.constant 1.000000e+00 : f32
    %73 = vector.broadcast %cst_29 : f32 to vector<8x1024xf32>
    %74 = arith.cmpf oge, %72, %73 : vector<8x1024xf32>
    %75 = arith.extui %74 : vector<8x1024xi1> to vector<8x1024xi32>
    %76 = arith.sitofp %75 : vector<8x1024xi32> to vector<8x1024xf32>
    %c56 = arith.constant 56 : index
    %c0_30 = arith.constant 0 : index
    %77 = vector.load %arg7[%c56, %c0_30] : memref<200x1024xf32, #tpu.memory_space<vmem>>, vector<8x1024xf32>
    tpu.vector_store %arg7[%c56, %c0_30], %76 {strides = array<i32>} : memref<200x1024xf32, #tpu.memory_space<vmem>>, vector<8x1024xf32>,
    %78 = arith.subf %72, %76 : vector<8x1024xf32>
    %cst_31 = arith.constant 0.899999976 : f32
    %79 = vector.broadcast %cst_31 : f32 to vector<8x1024xf32>
    %80 = arith.mulf %79, %78 : vector<8x1024xf32>
    %81 = arith.addf %80, %5 : vector<8x1024xf32>
    %cst_32 = arith.constant 1.000000e+00 : f32
    %82 = vector.broadcast %cst_32 : f32 to vector<8x1024xf32>
    %83 = arith.cmpf oge, %81, %82 : vector<8x1024xf32>
    %84 = arith.extui %83 : vector<8x1024xi1> to vector<8x1024xi32>
    %85 = arith.sitofp %84 : vector<8x1024xi32> to vector<8x1024xf32>
    %c64 = arith.constant 64 : index
    %c0_33 = arith.constant 0 : index
    %86 = vector.load %arg7[%c64, %c0_33] : memref<200x1024xf32, #tpu.memory_space<vmem>>, vector<8x1024xf32>
    tpu.vector_store %arg7[%c64, %c0_33], %85 {strides = array<i32>} : memref<200x1024xf32, #tpu.memory_space<vmem>>, vector<8x1024xf32>,
    %87 = arith.subf %81, %85 : vector<8x1024xf32>
    %cst_34 = arith.constant 0.899999976 : f32
    %88 = vector.broadcast %cst_34 : f32 to vector<8x1024xf32>
    %89 = arith.mulf %88, %87 : vector<8x1024xf32>
    %90 = arith.addf %89, %5 : vector<8x1024xf32>
    %cst_35 = arith.constant 1.000000e+00 : f32
    %91 = vector.broadcast %cst_35 : f32 to vector<8x1024xf32>
    %92 = arith.cmpf oge, %90, %91 : vector<8x1024xf32>
    %93 = arith.extui %92 : vector<8x1024xi1> to vector<8x1024xi32>
    %94 = arith.sitofp %93 : vector<8x1024xi32> to vector<8x1024xf32>
    %c72 = arith.constant 72 : index
    %c0_36 = arith.constant 0 : index
    %95 = vector.load %arg7[%c72, %c0_36] : memref<200x1024xf32, #tpu.memory_space<vmem>>, vector<8x1024xf32>
    tpu.vector_store %arg7[%c72, %c0_36], %94 {strides = array<i32>} : memref<200x1024xf32, #tpu.memory_space<vmem>>, vector<8x1024xf32>,
    %96 = arith.subf %90, %94 : vector<8x1024xf32>
    %cst_37 = arith.constant 0.899999976 : f32
    %97 = vector.broadcast %cst_37 : f32 to vector<8x1024xf32>
    %98 = arith.mulf %97, %96 : vector<8x1024xf32>
    %99 = arith.addf %98, %5 : vector<8x1024xf32>
    %cst_38 = arith.constant 1.000000e+00 : f32
    %100 = vector.broadcast %cst_38 : f32 to vector<8x1024xf32>
    %101 = arith.cmpf oge, %99, %100 : vector<8x1024xf32>
    %102 = arith.extui %101 : vector<8x1024xi1> to vector<8x1024xi32>
    %103 = arith.sitofp %102 : vector<8x1024xi32> to vector<8x1024xf32>
    %c80 = arith.constant 80 : index
    %c0_39 = arith.constant 0 : index
    %104 = vector.load %arg7[%c80, %c0_39] : memref<200x1024xf32, #tpu.memory_space<vmem>>, vector<8x1024xf32>
    tpu.vector_store %arg7[%c80, %c0_39], %103 {strides = array<i32>} : memref<200x1024xf32, #tpu.memory_space<vmem>>, vector<8x1024xf32>,
    %105 = arith.subf %99, %103 : vector<8x1024xf32>
    %cst_40 = arith.constant 0.899999976 : f32
    %106 = vector.broadcast %cst_40 : f32 to vector<8x1024xf32>
    %107 = arith.mulf %106, %105 : vector<8x1024xf32>
    %108 = arith.addf %107, %5 : vector<8x1024xf32>
    %cst_41 = arith.constant 1.000000e+00 : f32
    %109 = vector.broadcast %cst_41 : f32 to vector<8x1024xf32>
    %110 = arith.cmpf oge, %108, %109 : vector<8x1024xf32>
    %111 = arith.extui %110 : vector<8x1024xi1> to vector<8x1024xi32>
    %112 = arith.sitofp %111 : vector<8x1024xi32> to vector<8x1024xf32>
    %c88 = arith.constant 88 : index
    %c0_42 = arith.constant 0 : index
    %113 = vector.load %arg7[%c88, %c0_42] : memref<200x1024xf32, #tpu.memory_space<vmem>>, vector<8x1024xf32>
    tpu.vector_store %arg7[%c88, %c0_42], %112 {strides = array<i32>} : memref<200x1024xf32, #tpu.memory_space<vmem>>, vector<8x1024xf32>,
    %114 = arith.subf %108, %112 : vector<8x1024xf32>
    %cst_43 = arith.constant 0.899999976 : f32
    %115 = vector.broadcast %cst_43 : f32 to vector<8x1024xf32>
    %116 = arith.mulf %115, %114 : vector<8x1024xf32>
    %117 = arith.addf %116, %5 : vector<8x1024xf32>
    %cst_44 = arith.constant 1.000000e+00 : f32
    %118 = vector.broadcast %cst_44 : f32 to vector<8x1024xf32>
    %119 = arith.cmpf oge, %117, %118 : vector<8x1024xf32>
    %120 = arith.extui %119 : vector<8x1024xi1> to vector<8x1024xi32>
    %121 = arith.sitofp %120 : vector<8x1024xi32> to vector<8x1024xf32>
    %c96 = arith.constant 96 : index
    %c0_45 = arith.constant 0 : index
    %122 = vector.load %arg7[%c96, %c0_45] : memref<200x1024xf32, #tpu.memory_space<vmem>>, vector<8x1024xf32>
    tpu.vector_store %arg7[%c96, %c0_45], %121 {strides = array<i32>} : memref<200x1024xf32, #tpu.memory_space<vmem>>, vector<8x1024xf32>,
    %123 = arith.subf %117, %121 : vector<8x1024xf32>
    %cst_46 = arith.constant 0.899999976 : f32
    %124 = vector.broadcast %cst_46 : f32 to vector<8x1024xf32>
    %125 = arith.mulf %124, %123 : vector<8x1024xf32>
    %126 = arith.addf %125, %5 : vector<8x1024xf32>
    %cst_47 = arith.constant 1.000000e+00 : f32
    %127 = vector.broadcast %cst_47 : f32 to vector<8x1024xf32>
    %128 = arith.cmpf oge, %126, %127 : vector<8x1024xf32>
    %129 = arith.extui %128 : vector<8x1024xi1> to vector<8x1024xi32>
    %130 = arith.sitofp %129 : vector<8x1024xi32> to vector<8x1024xf32>
    %c104 = arith.constant 104 : index
    %c0_48 = arith.constant 0 : index
    %131 = vector.load %arg7[%c104, %c0_48] : memref<200x1024xf32, #tpu.memory_space<vmem>>, vector<8x1024xf32>
    tpu.vector_store %arg7[%c104, %c0_48], %130 {strides = array<i32>} : memref<200x1024xf32, #tpu.memory_space<vmem>>, vector<8x1024xf32>,
    %132 = arith.subf %126, %130 : vector<8x1024xf32>
    %cst_49 = arith.constant 0.899999976 : f32
    %133 = vector.broadcast %cst_49 : f32 to vector<8x1024xf32>
    %134 = arith.mulf %133, %132 : vector<8x1024xf32>
    %135 = arith.addf %134, %5 : vector<8x1024xf32>
    %cst_50 = arith.constant 1.000000e+00 : f32
    %136 = vector.broadcast %cst_50 : f32 to vector<8x1024xf32>
    %137 = arith.cmpf oge, %135, %136 : vector<8x1024xf32>
    %138 = arith.extui %137 : vector<8x1024xi1> to vector<8x1024xi32>
    %139 = arith.sitofp %138 : vector<8x1024xi32> to vector<8x1024xf32>
    %c112 = arith.constant 112 : index
    %c0_51 = arith.constant 0 : index
    %140 = vector.load %arg7[%c112, %c0_51] : memref<200x1024xf32, #tpu.memory_space<vmem>>, vector<8x1024xf32>
    tpu.vector_store %arg7[%c112, %c0_51], %139 {strides = array<i32>} : memref<200x1024xf32, #tpu.memory_space<vmem>>, vector<8x1024xf32>,
    %141 = arith.subf %135, %139 : vector<8x1024xf32>
    %cst_52 = arith.constant 0.899999976 : f32
    %142 = vector.broadcast %cst_52 : f32 to vector<8x1024xf32>
    %143 = arith.mulf %142, %141 : vector<8x1024xf32>
    %144 = arith.addf %143, %5 : vector<8x1024xf32>
    %cst_53 = arith.constant 1.000000e+00 : f32
    %145 = vector.broadcast %cst_53 : f32 to vector<8x1024xf32>
    %146 = arith.cmpf oge, %144, %145 : vector<8x1024xf32>
    %147 = arith.extui %146 : vector<8x1024xi1> to vector<8x1024xi32>
    %148 = arith.sitofp %147 : vector<8x1024xi32> to vector<8x1024xf32>
    %c120 = arith.constant 120 : index
    %c0_54 = arith.constant 0 : index
    %149 = vector.load %arg7[%c120, %c0_54] : memref<200x1024xf32, #tpu.memory_space<vmem>>, vector<8x1024xf32>
    tpu.vector_store %arg7[%c120, %c0_54], %148 {strides = array<i32>} : memref<200x1024xf32, #tpu.memory_space<vmem>>, vector<8x1024xf32>,
    %150 = arith.subf %144, %148 : vector<8x1024xf32>
    %cst_55 = arith.constant 0.899999976 : f32
    %151 = vector.broadcast %cst_55 : f32 to vector<8x1024xf32>
    %152 = arith.mulf %151, %150 : vector<8x1024xf32>
    %153 = arith.addf %152, %5 : vector<8x1024xf32>
    %cst_56 = arith.constant 1.000000e+00 : f32
    %154 = vector.broadcast %cst_56 : f32 to vector<8x1024xf32>
    %155 = arith.cmpf oge, %153, %154 : vector<8x1024xf32>
    %156 = arith.extui %155 : vector<8x1024xi1> to vector<8x1024xi32>
    %157 = arith.sitofp %156 : vector<8x1024xi32> to vector<8x1024xf32>
    %c128 = arith.constant 128 : index
    %c0_57 = arith.constant 0 : index
    %158 = vector.load %arg7[%c128, %c0_57] : memref<200x1024xf32, #tpu.memory_space<vmem>>, vector<8x1024xf32>
    tpu.vector_store %arg7[%c128, %c0_57], %157 {strides = array<i32>} : memref<200x1024xf32, #tpu.memory_space<vmem>>, vector<8x1024xf32>,
    %159 = arith.subf %153, %157 : vector<8x1024xf32>
    %cst_58 = arith.constant 0.899999976 : f32
    %160 = vector.broadcast %cst_58 : f32 to vector<8x1024xf32>
    %161 = arith.mulf %160, %159 : vector<8x1024xf32>
    %162 = arith.addf %161, %5 : vector<8x1024xf32>
    %cst_59 = arith.constant 1.000000e+00 : f32
    %163 = vector.broadcast %cst_59 : f32 to vector<8x1024xf32>
    %164 = arith.cmpf oge, %162, %163 : vector<8x1024xf32>
    %165 = arith.extui %164 : vector<8x1024xi1> to vector<8x1024xi32>
    %166 = arith.sitofp %165 : vector<8x1024xi32> to vector<8x1024xf32>
    %c136 = arith.constant 136 : index
    %c0_60 = arith.constant 0 : index
    %167 = vector.load %arg7[%c136, %c0_60] : memref<200x1024xf32, #tpu.memory_space<vmem>>, vector<8x1024xf32>
    tpu.vector_store %arg7[%c136, %c0_60], %166 {strides = array<i32>} : memref<200x1024xf32, #tpu.memory_space<vmem>>, vector<8x1024xf32>,
    %168 = arith.subf %162, %166 : vector<8x1024xf32>
    %cst_61 = arith.constant 0.899999976 : f32
    %169 = vector.broadcast %cst_61 : f32 to vector<8x1024xf32>
    %170 = arith.mulf %169, %168 : vector<8x1024xf32>
    %171 = arith.addf %170, %5 : vector<8x1024xf32>
    %cst_62 = arith.constant 1.000000e+00 : f32
    %172 = vector.broadcast %cst_62 : f32 to vector<8x1024xf32>
    %173 = arith.cmpf oge, %171, %172 : vector<8x1024xf32>
    %174 = arith.extui %173 : vector<8x1024xi1> to vector<8x1024xi32>
    %175 = arith.sitofp %174 : vector<8x1024xi32> to vector<8x1024xf32>
    %c144 = arith.constant 144 : index
    %c0_63 = arith.constant 0 : index
    %176 = vector.load %arg7[%c144, %c0_63] : memref<200x1024xf32, #tpu.memory_space<vmem>>, vector<8x1024xf32>
    tpu.vector_store %arg7[%c144, %c0_63], %175 {strides = array<i32>} : memref<200x1024xf32, #tpu.memory_space<vmem>>, vector<8x1024xf32>,
    %177 = arith.subf %171, %175 : vector<8x1024xf32>
    %cst_64 = arith.constant 0.899999976 : f32
    %178 = vector.broadcast %cst_64 : f32 to vector<8x1024xf32>
    %179 = arith.mulf %178, %177 : vector<8x1024xf32>
    %180 = arith.addf %179, %5 : vector<8x1024xf32>
    %cst_65 = arith.constant 1.000000e+00 : f32
    %181 = vector.broadcast %cst_65 : f32 to vector<8x1024xf32>
    %182 = arith.cmpf oge, %180, %181 : vector<8x1024xf32>
    %183 = arith.extui %182 : vector<8x1024xi1> to vector<8x1024xi32>
    %184 = arith.sitofp %183 : vector<8x1024xi32> to vector<8x1024xf32>
    %c152 = arith.constant 152 : index
    %c0_66 = arith.constant 0 : index
    %185 = vector.load %arg7[%c152, %c0_66] : memref<200x1024xf32, #tpu.memory_space<vmem>>, vector<8x1024xf32>
    tpu.vector_store %arg7[%c152, %c0_66], %184 {strides = array<i32>} : memref<200x1024xf32, #tpu.memory_space<vmem>>, vector<8x1024xf32>,
    %186 = arith.subf %180, %184 : vector<8x1024xf32>
    %cst_67 = arith.constant 0.899999976 : f32
    %187 = vector.broadcast %cst_67 : f32 to vector<8x1024xf32>
    %188 = arith.mulf %187, %186 : vector<8x1024xf32>
    %189 = arith.addf %188, %5 : vector<8x1024xf32>
    %cst_68 = arith.constant 1.000000e+00 : f32
    %190 = vector.broadcast %cst_68 : f32 to vector<8x1024xf32>
    %191 = arith.cmpf oge, %189, %190 : vector<8x1024xf32>
    %192 = arith.extui %191 : vector<8x1024xi1> to vector<8x1024xi32>
    %193 = arith.sitofp %192 : vector<8x1024xi32> to vector<8x1024xf32>
    %c160 = arith.constant 160 : index
    %c0_69 = arith.constant 0 : index
    %194 = vector.load %arg7[%c160, %c0_69] : memref<200x1024xf32, #tpu.memory_space<vmem>>, vector<8x1024xf32>
    tpu.vector_store %arg7[%c160, %c0_69], %193 {strides = array<i32>} : memref<200x1024xf32, #tpu.memory_space<vmem>>, vector<8x1024xf32>,
    %195 = arith.subf %189, %193 : vector<8x1024xf32>
    %cst_70 = arith.constant 0.899999976 : f32
    %196 = vector.broadcast %cst_70 : f32 to vector<8x1024xf32>
    %197 = arith.mulf %196, %195 : vector<8x1024xf32>
    %198 = arith.addf %197, %5 : vector<8x1024xf32>
    %cst_71 = arith.constant 1.000000e+00 : f32
    %199 = vector.broadcast %cst_71 : f32 to vector<8x1024xf32>
    %200 = arith.cmpf oge, %198, %199 : vector<8x1024xf32>
    %201 = arith.extui %200 : vector<8x1024xi1> to vector<8x1024xi32>
    %202 = arith.sitofp %201 : vector<8x1024xi32> to vector<8x1024xf32>
    %c168 = arith.constant 168 : index
    %c0_72 = arith.constant 0 : index
    %203 = vector.load %arg7[%c168, %c0_72] : memref<200x1024xf32, #tpu.memory_space<vmem>>, vector<8x1024xf32>
    tpu.vector_store %arg7[%c168, %c0_72], %202 {strides = array<i32>} : memref<200x1024xf32, #tpu.memory_space<vmem>>, vector<8x1024xf32>,
    %204 = arith.subf %198, %202 : vector<8x1024xf32>
    %cst_73 = arith.constant 0.899999976 : f32
    %205 = vector.broadcast %cst_73 : f32 to vector<8x1024xf32>
    %206 = arith.mulf %205, %204 : vector<8x1024xf32>
    %207 = arith.addf %206, %5 : vector<8x1024xf32>
    %cst_74 = arith.constant 1.000000e+00 : f32
    %208 = vector.broadcast %cst_74 : f32 to vector<8x1024xf32>
    %209 = arith.cmpf oge, %207, %208 : vector<8x1024xf32>
    %210 = arith.extui %209 : vector<8x1024xi1> to vector<8x1024xi32>
    %211 = arith.sitofp %210 : vector<8x1024xi32> to vector<8x1024xf32>
    %c176 = arith.constant 176 : index
    %c0_75 = arith.constant 0 : index
    %212 = vector.load %arg7[%c176, %c0_75] : memref<200x1024xf32, #tpu.memory_space<vmem>>, vector<8x1024xf32>
    tpu.vector_store %arg7[%c176, %c0_75], %211 {strides = array<i32>} : memref<200x1024xf32, #tpu.memory_space<vmem>>, vector<8x1024xf32>,
    %213 = arith.subf %207, %211 : vector<8x1024xf32>
    %cst_76 = arith.constant 0.899999976 : f32
    %214 = vector.broadcast %cst_76 : f32 to vector<8x1024xf32>
    %215 = arith.mulf %214, %213 : vector<8x1024xf32>
    %216 = arith.addf %215, %5 : vector<8x1024xf32>
    %cst_77 = arith.constant 1.000000e+00 : f32
    %217 = vector.broadcast %cst_77 : f32 to vector<8x1024xf32>
    %218 = arith.cmpf oge, %216, %217 : vector<8x1024xf32>
    %219 = arith.extui %218 : vector<8x1024xi1> to vector<8x1024xi32>
    %220 = arith.sitofp %219 : vector<8x1024xi32> to vector<8x1024xf32>
    %c184 = arith.constant 184 : index
    %c0_78 = arith.constant 0 : index
    %221 = vector.load %arg7[%c184, %c0_78] : memref<200x1024xf32, #tpu.memory_space<vmem>>, vector<8x1024xf32>
    tpu.vector_store %arg7[%c184, %c0_78], %220 {strides = array<i32>} : memref<200x1024xf32, #tpu.memory_space<vmem>>, vector<8x1024xf32>,
    %222 = arith.subf %216, %220 : vector<8x1024xf32>
    %cst_79 = arith.constant 0.899999976 : f32
    %223 = vector.broadcast %cst_79 : f32 to vector<8x1024xf32>
    %224 = arith.mulf %223, %222 : vector<8x1024xf32>
    %225 = arith.addf %224, %5 : vector<8x1024xf32>
    %cst_80 = arith.constant 1.000000e+00 : f32
    %226 = vector.broadcast %cst_80 : f32 to vector<8x1024xf32>
    %227 = arith.cmpf oge, %225, %226 : vector<8x1024xf32>
    %228 = arith.extui %227 : vector<8x1024xi1> to vector<8x1024xi32>
    %229 = arith.sitofp %228 : vector<8x1024xi32> to vector<8x1024xf32>
    %c192 = arith.constant 192 : index
    %c0_81 = arith.constant 0 : index
    %230 = vector.load %arg7[%c192, %c0_81] : memref<200x1024xf32, #tpu.memory_space<vmem>>, vector<8x1024xf32>
    tpu.vector_store %arg7[%c192, %c0_81], %229 {strides = array<i32>} : memref<200x1024xf32, #tpu.memory_space<vmem>>, vector<8x1024xf32>,
    %c0_82 = arith.constant 0 : index
    %c0_83 = arith.constant 0 : index
    %231 = vector.load %arg7[%c0_82, %c0_83] : memref<200x1024xf32, #tpu.memory_space<vmem>>, vector<200x1024xf32>
    %c0_84 = arith.constant 0 : index
    %c0_85 = arith.constant 0 : index
    %232 = vector.load %arg4[%c0_84, %c0_85] : memref<1024x128xf32, #tpu.memory_space<vmem>>, vector<1024x128xf32>
    %cst_86 = arith.constant dense<0.000000e+00> : vector<200x128xf32>
    %233 = tpu.matmul %231, %232, %cst_86 {dimension_numbers = #tpu.dot_dimension_numbers<[1], [0], [0], [1], [0, 0, 1, 1], [], []>} : vector<200x1024xf32>, vector<1024x128xf32>, vector<200x128xf32> -> vector<200x128xf32>
    %c0_87 = arith.constant 0 : index
    %c0_88 = arith.constant 0 : index
    %234 = vector.load %arg5[%c0_87, %c0_88] : memref<1x128xf32, #tpu.memory_space<vmem>>, vector<1x128xf32>
    %235 = vector.broadcast %234 : vector<1x128xf32> to vector<200x128xf32>
    %236 = arith.addf %233, %235 : vector<200x128xf32>
    %cst_89 = arith.constant 0.000000e+00 : f32
    %237 = vector.broadcast %cst_89 : f32 to vector<8x128xf32>
    %cst_90 = arith.constant 0.000000e+00 : f32
    %238 = vector.broadcast %cst_90 : f32 to vector<8x128xf32>
    %cst_91 = arith.constant 0.899999976 : f32
    %239 = vector.broadcast %cst_91 : f32 to vector<8x128xf32>
    %240 = arith.mulf %239, %237 : vector<8x128xf32>
    %241 = vector.extract_strided_slice %236 {offsets = [0, 0], sizes = [8, 128], strides = [1, 1]} : vector<200x128xf32> to vector<8x128xf32>
    %242 = arith.addf %240, %241 : vector<8x128xf32>
    %cst_92 = arith.constant 1.000000e+00 : f32
    %243 = vector.broadcast %cst_92 : f32 to vector<8x128xf32>
    %244 = arith.cmpf oge, %242, %243 : vector<8x128xf32>
    %245 = arith.extui %244 : vector<8x128xi1> to vector<8x128xi32>
    %246 = arith.sitofp %245 : vector<8x128xi32> to vector<8x128xf32>
    %247 = arith.subf %242, %246 : vector<8x128xf32>
    %248 = arith.addf %238, %246 : vector<8x128xf32>
    %cst_93 = arith.constant 0.899999976 : f32
    %249 = vector.broadcast %cst_93 : f32 to vector<8x128xf32>
    %250 = arith.mulf %249, %247 : vector<8x128xf32>
    %251 = vector.extract_strided_slice %236 {offsets = [8, 0], sizes = [8, 128], strides = [1, 1]} : vector<200x128xf32> to vector<8x128xf32>
    %252 = arith.addf %250, %251 : vector<8x128xf32>
    %cst_94 = arith.constant 1.000000e+00 : f32
    %253 = vector.broadcast %cst_94 : f32 to vector<8x128xf32>
    %254 = arith.cmpf oge, %252, %253 : vector<8x128xf32>
    %255 = arith.extui %254 : vector<8x128xi1> to vector<8x128xi32>
    %256 = arith.sitofp %255 : vector<8x128xi32> to vector<8x128xf32>
    %257 = arith.subf %252, %256 : vector<8x128xf32>
    %258 = arith.addf %248, %256 : vector<8x128xf32>
    %cst_95 = arith.constant 0.899999976 : f32
    %259 = vector.broadcast %cst_95 : f32 to vector<8x128xf32>
    %260 = arith.mulf %259, %257 : vector<8x128xf32>
    %261 = vector.extract_strided_slice %236 {offsets = [16, 0], sizes = [8, 128], strides = [1, 1]} : vector<200x128xf32> to vector<8x128xf32>
    %262 = arith.addf %260, %261 : vector<8x128xf32>
    %cst_96 = arith.constant 1.000000e+00 : f32
    %263 = vector.broadcast %cst_96 : f32 to vector<8x128xf32>
    %264 = arith.cmpf oge, %262, %263 : vector<8x128xf32>
    %265 = arith.extui %264 : vector<8x128xi1> to vector<8x128xi32>
    %266 = arith.sitofp %265 : vector<8x128xi32> to vector<8x128xf32>
    %267 = arith.subf %262, %266 : vector<8x128xf32>
    %268 = arith.addf %258, %266 : vector<8x128xf32>
    %cst_97 = arith.constant 0.899999976 : f32
    %269 = vector.broadcast %cst_97 : f32 to vector<8x128xf32>
    %270 = arith.mulf %269, %267 : vector<8x128xf32>
    %271 = vector.extract_strided_slice %236 {offsets = [24, 0], sizes = [8, 128], strides = [1, 1]} : vector<200x128xf32> to vector<8x128xf32>
    %272 = arith.addf %270, %271 : vector<8x128xf32>
    %cst_98 = arith.constant 1.000000e+00 : f32
    %273 = vector.broadcast %cst_98 : f32 to vector<8x128xf32>
    %274 = arith.cmpf oge, %272, %273 : vector<8x128xf32>
    %275 = arith.extui %274 : vector<8x128xi1> to vector<8x128xi32>
    %276 = arith.sitofp %275 : vector<8x128xi32> to vector<8x128xf32>
    %277 = arith.subf %272, %276 : vector<8x128xf32>
    %278 = arith.addf %268, %276 : vector<8x128xf32>
    %cst_99 = arith.constant 0.899999976 : f32
    %279 = vector.broadcast %cst_99 : f32 to vector<8x128xf32>
    %280 = arith.mulf %279, %277 : vector<8x128xf32>
    %281 = vector.extract_strided_slice %236 {offsets = [32, 0], sizes = [8, 128], strides = [1, 1]} : vector<200x128xf32> to vector<8x128xf32>
    %282 = arith.addf %280, %281 : vector<8x128xf32>
    %cst_100 = arith.constant 1.000000e+00 : f32
    %283 = vector.broadcast %cst_100 : f32 to vector<8x128xf32>
    %284 = arith.cmpf oge, %282, %283 : vector<8x128xf32>
    %285 = arith.extui %284 : vector<8x128xi1> to vector<8x128xi32>
    %286 = arith.sitofp %285 : vector<8x128xi32> to vector<8x128xf32>
    %287 = arith.subf %282, %286 : vector<8x128xf32>
    %288 = arith.addf %278, %286 : vector<8x128xf32>
    %cst_101 = arith.constant 0.899999976 : f32
    %289 = vector.broadcast %cst_101 : f32 to vector<8x128xf32>
    %290 = arith.mulf %289, %287 : vector<8x128xf32>
    %291 = vector.extract_strided_slice %236 {offsets = [40, 0], sizes = [8, 128], strides = [1, 1]} : vector<200x128xf32> to vector<8x128xf32>
    %292 = arith.addf %290, %291 : vector<8x128xf32>
    %cst_102 = arith.constant 1.000000e+00 : f32
    %293 = vector.broadcast %cst_102 : f32 to vector<8x128xf32>
    %294 = arith.cmpf oge, %292, %293 : vector<8x128xf32>
    %295 = arith.extui %294 : vector<8x128xi1> to vector<8x128xi32>
    %296 = arith.sitofp %295 : vector<8x128xi32> to vector<8x128xf32>
    %297 = arith.subf %292, %296 : vector<8x128xf32>
    %298 = arith.addf %288, %296 : vector<8x128xf32>
    %cst_103 = arith.constant 0.899999976 : f32
    %299 = vector.broadcast %cst_103 : f32 to vector<8x128xf32>
    %300 = arith.mulf %299, %297 : vector<8x128xf32>
    %301 = vector.extract_strided_slice %236 {offsets = [48, 0], sizes = [8, 128], strides = [1, 1]} : vector<200x128xf32> to vector<8x128xf32>
    %302 = arith.addf %300, %301 : vector<8x128xf32>
    %cst_104 = arith.constant 1.000000e+00 : f32
    %303 = vector.broadcast %cst_104 : f32 to vector<8x128xf32>
    %304 = arith.cmpf oge, %302, %303 : vector<8x128xf32>
    %305 = arith.extui %304 : vector<8x128xi1> to vector<8x128xi32>
    %306 = arith.sitofp %305 : vector<8x128xi32> to vector<8x128xf32>
    %307 = arith.subf %302, %306 : vector<8x128xf32>
    %308 = arith.addf %298, %306 : vector<8x128xf32>
    %cst_105 = arith.constant 0.899999976 : f32
    %309 = vector.broadcast %cst_105 : f32 to vector<8x128xf32>
    %310 = arith.mulf %309, %307 : vector<8x128xf32>
    %311 = vector.extract_strided_slice %236 {offsets = [56, 0], sizes = [8, 128], strides = [1, 1]} : vector<200x128xf32> to vector<8x128xf32>
    %312 = arith.addf %310, %311 : vector<8x128xf32>
    %cst_106 = arith.constant 1.000000e+00 : f32
    %313 = vector.broadcast %cst_106 : f32 to vector<8x128xf32>
    %314 = arith.cmpf oge, %312, %313 : vector<8x128xf32>
    %315 = arith.extui %314 : vector<8x128xi1> to vector<8x128xi32>
    %316 = arith.sitofp %315 : vector<8x128xi32> to vector<8x128xf32>
    %317 = arith.subf %312, %316 : vector<8x128xf32>
    %318 = arith.addf %308, %316 : vector<8x128xf32>
    %cst_107 = arith.constant 0.899999976 : f32
    %319 = vector.broadcast %cst_107 : f32 to vector<8x128xf32>
    %320 = arith.mulf %319, %317 : vector<8x128xf32>
    %321 = vector.extract_strided_slice %236 {offsets = [64, 0], sizes = [8, 128], strides = [1, 1]} : vector<200x128xf32> to vector<8x128xf32>
    %322 = arith.addf %320, %321 : vector<8x128xf32>
    %cst_108 = arith.constant 1.000000e+00 : f32
    %323 = vector.broadcast %cst_108 : f32 to vector<8x128xf32>
    %324 = arith.cmpf oge, %322, %323 : vector<8x128xf32>
    %325 = arith.extui %324 : vector<8x128xi1> to vector<8x128xi32>
    %326 = arith.sitofp %325 : vector<8x128xi32> to vector<8x128xf32>
    %327 = arith.subf %322, %326 : vector<8x128xf32>
    %328 = arith.addf %318, %326 : vector<8x128xf32>
    %cst_109 = arith.constant 0.899999976 : f32
    %329 = vector.broadcast %cst_109 : f32 to vector<8x128xf32>
    %330 = arith.mulf %329, %327 : vector<8x128xf32>
    %331 = vector.extract_strided_slice %236 {offsets = [72, 0], sizes = [8, 128], strides = [1, 1]} : vector<200x128xf32> to vector<8x128xf32>
    %332 = arith.addf %330, %331 : vector<8x128xf32>
    %cst_110 = arith.constant 1.000000e+00 : f32
    %333 = vector.broadcast %cst_110 : f32 to vector<8x128xf32>
    %334 = arith.cmpf oge, %332, %333 : vector<8x128xf32>
    %335 = arith.extui %334 : vector<8x128xi1> to vector<8x128xi32>
    %336 = arith.sitofp %335 : vector<8x128xi32> to vector<8x128xf32>
    %337 = arith.subf %332, %336 : vector<8x128xf32>
    %338 = arith.addf %328, %336 : vector<8x128xf32>
    %cst_111 = arith.constant 0.899999976 : f32
    %339 = vector.broadcast %cst_111 : f32 to vector<8x128xf32>
    %340 = arith.mulf %339, %337 : vector<8x128xf32>
    %341 = vector.extract_strided_slice %236 {offsets = [80, 0], sizes = [8, 128], strides = [1, 1]} : vector<200x128xf32> to vector<8x128xf32>
    %342 = arith.addf %340, %341 : vector<8x128xf32>
    %cst_112 = arith.constant 1.000000e+00 : f32
    %343 = vector.broadcast %cst_112 : f32 to vector<8x128xf32>
    %344 = arith.cmpf oge, %342, %343 : vector<8x128xf32>
    %345 = arith.extui %344 : vector<8x128xi1> to vector<8x128xi32>
    %346 = arith.sitofp %345 : vector<8x128xi32> to vector<8x128xf32>
    %347 = arith.subf %342, %346 : vector<8x128xf32>
    %348 = arith.addf %338, %346 : vector<8x128xf32>
    %cst_113 = arith.constant 0.899999976 : f32
    %349 = vector.broadcast %cst_113 : f32 to vector<8x128xf32>
    %350 = arith.mulf %349, %347 : vector<8x128xf32>
    %351 = vector.extract_strided_slice %236 {offsets = [88, 0], sizes = [8, 128], strides = [1, 1]} : vector<200x128xf32> to vector<8x128xf32>
    %352 = arith.addf %350, %351 : vector<8x128xf32>
    %cst_114 = arith.constant 1.000000e+00 : f32
    %353 = vector.broadcast %cst_114 : f32 to vector<8x128xf32>
    %354 = arith.cmpf oge, %352, %353 : vector<8x128xf32>
    %355 = arith.extui %354 : vector<8x128xi1> to vector<8x128xi32>
    %356 = arith.sitofp %355 : vector<8x128xi32> to vector<8x128xf32>
    %357 = arith.subf %352, %356 : vector<8x128xf32>
    %358 = arith.addf %348, %356 : vector<8x128xf32>
    %cst_115 = arith.constant 0.899999976 : f32
    %359 = vector.broadcast %cst_115 : f32 to vector<8x128xf32>
    %360 = arith.mulf %359, %357 : vector<8x128xf32>
    %361 = vector.extract_strided_slice %236 {offsets = [96, 0], sizes = [8, 128], strides = [1, 1]} : vector<200x128xf32> to vector<8x128xf32>
    %362 = arith.addf %360, %361 : vector<8x128xf32>
    %cst_116 = arith.constant 1.000000e+00 : f32
    %363 = vector.broadcast %cst_116 : f32 to vector<8x128xf32>
    %364 = arith.cmpf oge, %362, %363 : vector<8x128xf32>
    %365 = arith.extui %364 : vector<8x128xi1> to vector<8x128xi32>
    %366 = arith.sitofp %365 : vector<8x128xi32> to vector<8x128xf32>
    %367 = arith.subf %362, %366 : vector<8x128xf32>
    %368 = arith.addf %358, %366 : vector<8x128xf32>
    %cst_117 = arith.constant 0.899999976 : f32
    %369 = vector.broadcast %cst_117 : f32 to vector<8x128xf32>
    %370 = arith.mulf %369, %367 : vector<8x128xf32>
    %371 = vector.extract_strided_slice %236 {offsets = [104, 0], sizes = [8, 128], strides = [1, 1]} : vector<200x128xf32> to vector<8x128xf32>
    %372 = arith.addf %370, %371 : vector<8x128xf32>
    %cst_118 = arith.constant 1.000000e+00 : f32
    %373 = vector.broadcast %cst_118 : f32 to vector<8x128xf32>
    %374 = arith.cmpf oge, %372, %373 : vector<8x128xf32>
    %375 = arith.extui %374 : vector<8x128xi1> to vector<8x128xi32>
    %376 = arith.sitofp %375 : vector<8x128xi32> to vector<8x128xf32>
    %377 = arith.subf %372, %376 : vector<8x128xf32>
    %378 = arith.addf %368, %376 : vector<8x128xf32>
    %cst_119 = arith.constant 0.899999976 : f32
    %379 = vector.broadcast %cst_119 : f32 to vector<8x128xf32>
    %380 = arith.mulf %379, %377 : vector<8x128xf32>
    %381 = vector.extract_strided_slice %236 {offsets = [112, 0], sizes = [8, 128], strides = [1, 1]} : vector<200x128xf32> to vector<8x128xf32>
    %382 = arith.addf %380, %381 : vector<8x128xf32>
    %cst_120 = arith.constant 1.000000e+00 : f32
    %383 = vector.broadcast %cst_120 : f32 to vector<8x128xf32>
    %384 = arith.cmpf oge, %382, %383 : vector<8x128xf32>
    %385 = arith.extui %384 : vector<8x128xi1> to vector<8x128xi32>
    %386 = arith.sitofp %385 : vector<8x128xi32> to vector<8x128xf32>
    %387 = arith.subf %382, %386 : vector<8x128xf32>
    %388 = arith.addf %378, %386 : vector<8x128xf32>
    %cst_121 = arith.constant 0.899999976 : f32
    %389 = vector.broadcast %cst_121 : f32 to vector<8x128xf32>
    %390 = arith.mulf %389, %387 : vector<8x128xf32>
    %391 = vector.extract_strided_slice %236 {offsets = [120, 0], sizes = [8, 128], strides = [1, 1]} : vector<200x128xf32> to vector<8x128xf32>
    %392 = arith.addf %390, %391 : vector<8x128xf32>
    %cst_122 = arith.constant 1.000000e+00 : f32
    %393 = vector.broadcast %cst_122 : f32 to vector<8x128xf32>
    %394 = arith.cmpf oge, %392, %393 : vector<8x128xf32>
    %395 = arith.extui %394 : vector<8x128xi1> to vector<8x128xi32>
    %396 = arith.sitofp %395 : vector<8x128xi32> to vector<8x128xf32>
    %397 = arith.subf %392, %396 : vector<8x128xf32>
    %398 = arith.addf %388, %396 : vector<8x128xf32>
    %cst_123 = arith.constant 0.899999976 : f32
    %399 = vector.broadcast %cst_123 : f32 to vector<8x128xf32>
    %400 = arith.mulf %399, %397 : vector<8x128xf32>
    %401 = vector.extract_strided_slice %236 {offsets = [128, 0], sizes = [8, 128], strides = [1, 1]} : vector<200x128xf32> to vector<8x128xf32>
    %402 = arith.addf %400, %401 : vector<8x128xf32>
    %cst_124 = arith.constant 1.000000e+00 : f32
    %403 = vector.broadcast %cst_124 : f32 to vector<8x128xf32>
    %404 = arith.cmpf oge, %402, %403 : vector<8x128xf32>
    %405 = arith.extui %404 : vector<8x128xi1> to vector<8x128xi32>
    %406 = arith.sitofp %405 : vector<8x128xi32> to vector<8x128xf32>
    %407 = arith.subf %402, %406 : vector<8x128xf32>
    %408 = arith.addf %398, %406 : vector<8x128xf32>
    %cst_125 = arith.constant 0.899999976 : f32
    %409 = vector.broadcast %cst_125 : f32 to vector<8x128xf32>
    %410 = arith.mulf %409, %407 : vector<8x128xf32>
    %411 = vector.extract_strided_slice %236 {offsets = [136, 0], sizes = [8, 128], strides = [1, 1]} : vector<200x128xf32> to vector<8x128xf32>
    %412 = arith.addf %410, %411 : vector<8x128xf32>
    %cst_126 = arith.constant 1.000000e+00 : f32
    %413 = vector.broadcast %cst_126 : f32 to vector<8x128xf32>
    %414 = arith.cmpf oge, %412, %413 : vector<8x128xf32>
    %415 = arith.extui %414 : vector<8x128xi1> to vector<8x128xi32>
    %416 = arith.sitofp %415 : vector<8x128xi32> to vector<8x128xf32>
    %417 = arith.subf %412, %416 : vector<8x128xf32>
    %418 = arith.addf %408, %416 : vector<8x128xf32>
    %cst_127 = arith.constant 0.899999976 : f32
    %419 = vector.broadcast %cst_127 : f32 to vector<8x128xf32>
    %420 = arith.mulf %419, %417 : vector<8x128xf32>
    %421 = vector.extract_strided_slice %236 {offsets = [144, 0], sizes = [8, 128], strides = [1, 1]} : vector<200x128xf32> to vector<8x128xf32>
    %422 = arith.addf %420, %421 : vector<8x128xf32>
    %cst_128 = arith.constant 1.000000e+00 : f32
    %423 = vector.broadcast %cst_128 : f32 to vector<8x128xf32>
    %424 = arith.cmpf oge, %422, %423 : vector<8x128xf32>
    %425 = arith.extui %424 : vector<8x128xi1> to vector<8x128xi32>
    %426 = arith.sitofp %425 : vector<8x128xi32> to vector<8x128xf32>
    %427 = arith.subf %422, %426 : vector<8x128xf32>
    %428 = arith.addf %418, %426 : vector<8x128xf32>
    %cst_129 = arith.constant 0.899999976 : f32
    %429 = vector.broadcast %cst_129 : f32 to vector<8x128xf32>
    %430 = arith.mulf %429, %427 : vector<8x128xf32>
    %431 = vector.extract_strided_slice %236 {offsets = [152, 0], sizes = [8, 128], strides = [1, 1]} : vector<200x128xf32> to vector<8x128xf32>
    %432 = arith.addf %430, %431 : vector<8x128xf32>
    %cst_130 = arith.constant 1.000000e+00 : f32
    %433 = vector.broadcast %cst_130 : f32 to vector<8x128xf32>
    %434 = arith.cmpf oge, %432, %433 : vector<8x128xf32>
    %435 = arith.extui %434 : vector<8x128xi1> to vector<8x128xi32>
    %436 = arith.sitofp %435 : vector<8x128xi32> to vector<8x128xf32>
    %437 = arith.subf %432, %436 : vector<8x128xf32>
    %438 = arith.addf %428, %436 : vector<8x128xf32>
    %cst_131 = arith.constant 0.899999976 : f32
    %439 = vector.broadcast %cst_131 : f32 to vector<8x128xf32>
    %440 = arith.mulf %439, %437 : vector<8x128xf32>
    %441 = vector.extract_strided_slice %236 {offsets = [160, 0], sizes = [8, 128], strides = [1, 1]} : vector<200x128xf32> to vector<8x128xf32>
    %442 = arith.addf %440, %441 : vector<8x128xf32>
    %cst_132 = arith.constant 1.000000e+00 : f32
    %443 = vector.broadcast %cst_132 : f32 to vector<8x128xf32>
    %444 = arith.cmpf oge, %442, %443 : vector<8x128xf32>
    %445 = arith.extui %444 : vector<8x128xi1> to vector<8x128xi32>
    %446 = arith.sitofp %445 : vector<8x128xi32> to vector<8x128xf32>
    %447 = arith.subf %442, %446 : vector<8x128xf32>
    %448 = arith.addf %438, %446 : vector<8x128xf32>
    %cst_133 = arith.constant 0.899999976 : f32
    %449 = vector.broadcast %cst_133 : f32 to vector<8x128xf32>
    %450 = arith.mulf %449, %447 : vector<8x128xf32>
    %451 = vector.extract_strided_slice %236 {offsets = [168, 0], sizes = [8, 128], strides = [1, 1]} : vector<200x128xf32> to vector<8x128xf32>
    %452 = arith.addf %450, %451 : vector<8x128xf32>
    %cst_134 = arith.constant 1.000000e+00 : f32
    %453 = vector.broadcast %cst_134 : f32 to vector<8x128xf32>
    %454 = arith.cmpf oge, %452, %453 : vector<8x128xf32>
    %455 = arith.extui %454 : vector<8x128xi1> to vector<8x128xi32>
    %456 = arith.sitofp %455 : vector<8x128xi32> to vector<8x128xf32>
    %457 = arith.subf %452, %456 : vector<8x128xf32>
    %458 = arith.addf %448, %456 : vector<8x128xf32>
    %cst_135 = arith.constant 0.899999976 : f32
    %459 = vector.broadcast %cst_135 : f32 to vector<8x128xf32>
    %460 = arith.mulf %459, %457 : vector<8x128xf32>
    %461 = vector.extract_strided_slice %236 {offsets = [176, 0], sizes = [8, 128], strides = [1, 1]} : vector<200x128xf32> to vector<8x128xf32>
    %462 = arith.addf %460, %461 : vector<8x128xf32>
    %cst_136 = arith.constant 1.000000e+00 : f32
    %463 = vector.broadcast %cst_136 : f32 to vector<8x128xf32>
    %464 = arith.cmpf oge, %462, %463 : vector<8x128xf32>
    %465 = arith.extui %464 : vector<8x128xi1> to vector<8x128xi32>
    %466 = arith.sitofp %465 : vector<8x128xi32> to vector<8x128xf32>
    %467 = arith.subf %462, %466 : vector<8x128xf32>
    %468 = arith.addf %458, %466 : vector<8x128xf32>
    %cst_137 = arith.constant 0.899999976 : f32
    %469 = vector.broadcast %cst_137 : f32 to vector<8x128xf32>
    %470 = arith.mulf %469, %467 : vector<8x128xf32>
    %471 = vector.extract_strided_slice %236 {offsets = [184, 0], sizes = [8, 128], strides = [1, 1]} : vector<200x128xf32> to vector<8x128xf32>
    %472 = arith.addf %470, %471 : vector<8x128xf32>
    %cst_138 = arith.constant 1.000000e+00 : f32
    %473 = vector.broadcast %cst_138 : f32 to vector<8x128xf32>
    %474 = arith.cmpf oge, %472, %473 : vector<8x128xf32>
    %475 = arith.extui %474 : vector<8x128xi1> to vector<8x128xi32>
    %476 = arith.sitofp %475 : vector<8x128xi32> to vector<8x128xf32>
    %477 = arith.subf %472, %476 : vector<8x128xf32>
    %478 = arith.addf %468, %476 : vector<8x128xf32>
    %cst_139 = arith.constant 0.899999976 : f32
    %479 = vector.broadcast %cst_139 : f32 to vector<8x128xf32>
    %480 = arith.mulf %479, %477 : vector<8x128xf32>
    %481 = vector.extract_strided_slice %236 {offsets = [192, 0], sizes = [8, 128], strides = [1, 1]} : vector<200x128xf32> to vector<8x128xf32>
    %482 = arith.addf %480, %481 : vector<8x128xf32>
    %cst_140 = arith.constant 1.000000e+00 : f32
    %483 = vector.broadcast %cst_140 : f32 to vector<8x128xf32>
    %484 = arith.cmpf oge, %482, %483 : vector<8x128xf32>
    %485 = arith.extui %484 : vector<8x128xi1> to vector<8x128xi32>
    %486 = arith.sitofp %485 : vector<8x128xi32> to vector<8x128xf32>
    %487 = arith.addf %478, %486 : vector<8x128xf32>
    %cst_141 = arith.constant 2.500000e+01 : f32
    %488 = vector.broadcast %cst_141 : f32 to vector<8x128xf32>
    %489 = arith.divf %487, %488 : vector<8x128xf32>
    %c0_142 = arith.constant 0 : index
    %c0_143 = arith.constant 0 : index
    %490 = vector.load %arg6[%c0_142, %c0_143] : memref<8x128xf32, #tpu.memory_space<vmem>>, vector<8x128xf32>
    tpu.vector_store %arg6[%c0_142, %c0_143], %489 {strides = array<i32>} : memref<8x128xf32, #tpu.memory_space<vmem>>, vector<8x128xf32>,
    return
  }
  func.func @transform_0(%arg0: i32) -> (i32, i32) {
    %c0_i32 = arith.constant 0 : i32
    %c0_i32_0 = arith.constant 0 : i32
    return %arg0, %c0_i32 : i32, i32
  }
  func.func @transform_1(%arg0: i32) -> (i32, i32) {
    %c0_i32 = arith.constant 0 : i32
    %c0_i32_0 = arith.constant 0 : i32
    %c0_i32_1 = arith.constant 0 : i32
    return %c0_i32, %c0_i32_0 : i32, i32
  }
  func.func @transform_2(%arg0: i32) -> (i32, i32) {
    %c0_i32 = arith.constant 0 : i32
    %c0_i32_0 = arith.constant 0 : i32
    %c0_i32_1 = arith.constant 0 : i32
    return %c0_i32, %c0_i32_0 : i32, i32
  }
  func.func @transform_3(%arg0: i32) -> (i32, i32) {
    %c0_i32 = arith.constant 0 : i32
    %c0_i32_0 = arith.constant 0 : i32
    %c0_i32_1 = arith.constant 0 : i32
    return %c0_i32, %c0_i32_0 : i32, i32
  }
  func.func @transform_4(%arg0: i32) -> (i32, i32) {
    %c0_i32 = arith.constant 0 : i32
    %c0_i32_0 = arith.constant 0 : i32
    %c0_i32_1 = arith.constant 0 : i32
    return %c0_i32, %c0_i32_0 : i32, i32
  }
  func.func @transform_5(%arg0: i32) -> (i32, i32) {
    %c0_i32 = arith.constant 0 : i32
    %c0_i32_0 = arith.constant 0 : i32
    return %arg0, %c0_i32 : i32, i32
  }
}

</mosaic_0001>

<llo_original>
// kernel: tpu_custom_call.1
$region0: #{tpu_custom_call.1}
  #allocation0 [shape = 'u32[]', space=smem, size = 0x4, offset = 0x4, fixed_abs, tag = 'smem constant byte address 0x4 - core index']
  #allocation1 [shape = 'u32[72,128]{1,0:T(1,128)}', space=vmem, size = 0x9000, scoped, tag = 'internal scratch']
  #allocation2 [shape = 'f32[200,1024]{1,0:T(8,128)}', space=vmem, size = 0xc8000, scoped, tag = 'scratch operand']
  %s0 = inlined_call_operand.hbm [shape: f32[8,896], index: 0, kind: input, shape index: {}]
  %s1 = inlined_call_operand.hbm [shape: f32[896,1024], index: 1, kind: input, shape index: {}]
  %s2 = inlined_call_operand.hbm [shape: f32[1,1024], index: 2, kind: input, shape index: {}]
  %s3 = inlined_call_operand.hbm [shape: f32[1024,128], index: 3, kind: input, shape index: {}]
  %s4 = inlined_call_operand.hbm [shape: f32[1,128], index: 4, kind: input, shape index: {}]
  %s5 = inlined_call_operand.hbm [shape: f32[8,128], index: 5, kind: output, shape index: {}]
  %s6 = sld [smem:[#allocation0]]
  $region50: #{tpu_custom_call.1} parent=0
    _
  %s8 = ssub.s32 1, %s6
  %s9 = scalar_select 0, %s8, %s6
  $region1: #{tpu_custom_call.1} parent=0
    #allocation3 [shape = 'u8[28672]{0}', space=vmem, size = 0x7000, scoped, tag = 'input window, operand 0, single buffered']
    #allocation4 [shape = 's32[1]{0}', space=sflag, size = 0x4, scoped, tag = 'scoped memory for tpu_custom_call.1']
    #allocation5 [shape = 's32[1]{0}', space=sflag, size = 0x4, scoped, tag = 'scoped memory for tpu_custom_call.1']
    #allocation6 [shape = 'u8[3670016]{0}', space=vmem, size = 0x380000, scoped, tag = 'input window, operand 1, single buffered']
    #allocation7 [shape = 's32[1]{0}', space=sflag, size = 0x4, scoped, tag = 'scoped memory for tpu_custom_call.1']
    #allocation8 [shape = 'u8[4096]{0}', space=vmem, size = 0x1000, scoped, tag = 'input window, operand 2, single buffered']
    #allocation9 [shape = 'u8[524288]{0}', space=vmem, size = 0x80000, scoped, tag = 'input window, operand 3, single buffered']
    #allocation10 [shape = 's32[1]{0}', space=sflag, size = 0x4, scoped, tag = 'scoped memory for tpu_custom_call.1']
    #allocation11 [shape = 'u8[512]{0}', space=vmem, size = 0x400, scoped, tag = 'input window, operand 4, single buffered']
    #allocation12 [shape = 'u8[4096]{0}', space=vmem, size = 0x1000, scoped, tag = 'output window, operand 0, single buffered']
    %10 = vsyncpa [#allocation4], 0
    %11 = vsyncpa [#allocation7], 0
    %12 = vsyncpa [#allocation10], 0
    %13 = vsyncpa [#allocation5], 0
    // Predicated region
    $region2: #{tpu_custom_call.1} parent=1 // pred_check
      _
    $region3: #{tpu_custom_call.1} parent=1 // pred_check_branch
      %15 = sbr.rel (0) target = $region5
    $region4: #{tpu_custom_call.1} parent=1 // pred_region
      %17 = vsyncadd [#allocation4], 0
      %s19 = sshll.u32 %s0, 4
      %s20 = int_to_ptr.hbm [resolvable:$true] %s19
      %s21 = sshll.u32 [#allocation3], 4
      %s22 = int_to_ptr.vmem [resolvable:$true] %s21
      %24 = dma.hbm_to_vmem [thread:$0]  %s20, 896, %s22, [#allocation4]
    $region5: #{tpu_custom_call.1} parent=1 // pred_fallthru
      _
    // Predicated region
    $region6: #{tpu_custom_call.1} parent=1 // pred_check
      _
    $region7: #{tpu_custom_call.1} parent=1 // pred_check_branch
      %26 = sbr.rel (0) target = $region9
    $region8: #{tpu_custom_call.1} parent=1 // pred_region
      %28 = vsyncadd [#allocation7], 0
      %s29 = sshll.u32 %s1, 4
      %s30 = int_to_ptr.hbm [resolvable:$true] %s29
      %s31 = sshll.u32 [#allocation6], 4
      %s32 = int_to_ptr.vmem [resolvable:$true] %s31
      %37 = dma.hbm_to_vmem [thread:$0]  %s30, 114688, %s32, [#allocation7], 1024, 1024, 64
    $region9: #{tpu_custom_call.1} parent=1 // pred_fallthru
      _
    // Predicated region
    $region10: #{tpu_custom_call.1} parent=1 // pred_check
      _
    $region11: #{tpu_custom_call.1} parent=1 // pred_check_branch
      %39 = sbr.rel (0) target = $region13
    $region12: #{tpu_custom_call.1} parent=1 // pred_region
      %41 = vsyncadd [#allocation7], 0
      %s43 = sshll.u32 %s2, 4
      %s44 = int_to_ptr.hbm [resolvable:$true] %s43
      %s45 = sshll.u32 [#allocation8], 4
      %s46 = int_to_ptr.vmem [resolvable:$true] %s45
      %48 = dma.hbm_to_vmem [thread:$0]  %s44, 128, %s46, [#allocation7]
    $region13: #{tpu_custom_call.1} parent=1 // pred_fallthru
      _
    // Predicated region
    $region14: #{tpu_custom_call.1} parent=1 // pred_check
      _
    $region15: #{tpu_custom_call.1} parent=1 // pred_check_branch
      %50 = sbr.rel (0) target = $region17
    $region16: #{tpu_custom_call.1} parent=1 // pred_region
      %52 = vsyncadd [#allocation10], 0
      %s53 = sshll.u32 %s3, 4
      %s54 = int_to_ptr.hbm [resolvable:$true] %s53
      %s55 = sshll.u32 [#allocation9], 4
      %s56 = int_to_ptr.vmem [resolvable:$true] %s55
      %61 = dma.hbm_to_vmem [thread:$0]  %s54, 16384, %s56, [#allocation10], 128, 128, 8
    $region17: #{tpu_custom_call.1} parent=1 // pred_fallthru
      _
    // Predicated region
    $region18: #{tpu_custom_call.1} parent=1 // pred_check
      _
    $region19: #{tpu_custom_call.1} parent=1 // pred_check_branch
      %63 = sbr.rel (0) target = $region21
    $region20: #{tpu_custom_call.1} parent=1 // pred_region
      %65 = vsyncadd [#allocation10], 0
      %s67 = sshll.u32 %s4, 4
      %s68 = int_to_ptr.hbm [resolvable:$true] %s67
      %s69 = sshll.u32 [#allocation11], 4
      %s70 = int_to_ptr.vmem [resolvable:$true] %s69
      %72 = dma.hbm_to_vmem [thread:$0]  %s68, 16, %s70, [#allocation10]
    $region21: #{tpu_custom_call.1} parent=1 // pred_fallthru
      _
    // Predicated region
    $region22: #{tpu_custom_call.1} parent=1 // pred_check
      _
    $region23: #{tpu_custom_call.1} parent=1 // pred_check_branch
      %74 = sbr.rel (0) target = $region25
    $region24: #{tpu_custom_call.1} parent=1 // pred_region
      %76 = dma.done [#allocation4], 896
    $region25: #{tpu_custom_call.1} parent=1 // pred_fallthru
      _
    // Predicated region
    $region26: #{tpu_custom_call.1} parent=1 // pred_check
      _
    $region27: #{tpu_custom_call.1} parent=1 // pred_check_branch
      %78 = sbr.rel (0) target = $region29
    $region28: #{tpu_custom_call.1} parent=1 // pred_region
      %80 = dma.done [#allocation7], 114688
    $region29: #{tpu_custom_call.1} parent=1 // pred_fallthru
      _
    // Predicated region
    $region30: #{tpu_custom_call.1} parent=1 // pred_check
      _
    $region31: #{tpu_custom_call.1} parent=1 // pred_check_branch
      %82 = sbr.rel (0) target = $region33
    $region32: #{tpu_custom_call.1} parent=1 // pred_region
      %84 = dma.done [#allocation7], 128
    $region33: #{tpu_custom_call.1} parent=1 // pred_fallthru
      _
    // Predicated region
    $region34: #{tpu_custom_call.1} parent=1 // pred_check
      _
    $region35: #{tpu_custom_call.1} parent=1 // pred_check_branch
      %86 = sbr.rel (0) target = $region37
    $region36: #{tpu_custom_call.1} parent=1 // pred_region
      %88 = dma.done [#allocation10], 16384
    $region37: #{tpu_custom_call.1} parent=1 // pred_fallthru
      _
    // Predicated region
    $region38: #{tpu_custom_call.1} parent=1 // pred_check
      _
    $region39: #{tpu_custom_call.1} parent=1 // pred_check_branch
      %90 = sbr.rel (0) target = $region41
    $region40: #{tpu_custom_call.1} parent=1 // pred_region
      %92 = dma.done [#allocation10], 16
    $region41: #{tpu_custom_call.1} parent=1 // pred_fallthru
      _
    %v93 = vld [vmem:[#allocation3] sm:$0xff]
    %v94 = vld [vmem:[#allocation3 + $0x8] sm:$0xff]
    %v95 = vld [vmem:[#allocation3 + $0x10] sm:$0xff]
    %v96 = vld [vmem:[#allocation3 + $0x18] sm:$0xff]
    %v97 = vld [vmem:[#allocation3 + $0x20] sm:$0xff]
    %v98 = vld [vmem:[#allocation3 + $0x28] sm:$0xff]
    %v99 = vld [vmem:[#allocation3 + $0x30] sm:$0xff]
    %v100 = vld [vmem:[#allocation6] sm:$0xff]
    %v101 = vld [vmem:[#allocation6 + $0x8] sm:$0xff]
    %v102 = vld [vmem:[#allocation6 + $0x10] sm:$0xff]
    %v103 = vld [vmem:[#allocation6 + $0x18] sm:$0xff]
    %v104 = vld [vmem:[#allocation6 + $0x20] sm:$0xff]
    %v105 = vld [vmem:[#allocation6 + $0x28] sm:$0xff]
    %v106 = vld [vmem:[#allocation6 + $0x30] sm:$0xff]
    %v107 = vld [vmem:[#allocation6 + $0x38] sm:$0xff]
    %v108 = vld [vmem:[#allocation6 + $0x40] sm:$0xff]
    %v109 = vld [vmem:[#allocation6 + $0x48] sm:$0xff]
    %v110 = vld [vmem:[#allocation6 + $0x50] sm:$0xff]
    %v111 = vld [vmem:[#allocation6 + $0x58] sm:$0xff]
    %v112 = vld [vmem:[#allocation6 + $0x60] sm:$0xff]
    %v113 = vld [vmem:[#allocation6 + $0x68] sm:$0xff]
    %v114 = vld [vmem:[#allocation6 + $0x70] sm:$0xff]
    %v115 = vld [vmem:[#allocation6 + $0x78] sm:$0xff]
    %v116 = vld [vmem:[#allocation6 + $0x80] sm:$0xff]
    %v117 = vld [vmem:[#allocation6 + $0x88] sm:$0xff]
    %v118 = vld [vmem:[#allocation6 + $0x90] sm:$0xff]
    %v119 = vld [vmem:[#allocation6 + $0x98] sm:$0xff]
    %v120 = vld [vmem:[#allocation6 + $0xa0] sm:$0xff]
    %v121 = vld [vmem:[#allocation6 + $0xa8] sm:$0xff]
    %v122 = vld [vmem:[#allocation6 + $0xb0] sm:$0xff]
    %v123 = vld [vmem:[#allocation6 + $0xb8] sm:$0xff]
    %v124 = vld [vmem:[#allocation6 + $0xc0] sm:$0xff]
    %v125 = vld [vmem:[#allocation6 + $0xc8] sm:$0xff]
    %v126 = vld [vmem:[#allocation6 + $0xd0] sm:$0xff]
    %v127 = vld [vmem:[#allocation6 + $0xd8] sm:$0xff]
    %v128 = vld [vmem:[#allocation6 + $0xe0] sm:$0xff]
    %v129 = vld [vmem:[#allocation6 + $0xe8] sm:$0xff]
    %v130 = vld [vmem:[#allocation6 + $0xf0] sm:$0xff]
    %v131 = vld [vmem:[#allocation6 + $0xf8] sm:$0xff]
    %v132 = vld [vmem:[#allocation6 + $0x100] sm:$0xff]
    %v133 = vld [vmem:[#allocation6 + $0x108] sm:$0xff]
    %v134 = vld [vmem:[#allocation6 + $0x110] sm:$0xff]
    %v135 = vld [vmem:[#allocation6 + $0x118] sm:$0xff]
    %v136 = vld [vmem:[#allocation6 + $0x120] sm:$0xff]
    %v137 = vld [vmem:[#allocation6 + $0x128] sm:$0xff]
    %v138 = vld [vmem:[#allocation6 + $0x130] sm:$0xff]
    %v139 = vld [vmem:[#allocation6 + $0x138] sm:$0xff]
    %v140 = vld [vmem:[#allocation6 + $0x140] sm:$0xff]
    %v141 = vld [vmem:[#allocation6 + $0x148] sm:$0xff]
    %v142 = vld [vmem:[#allocation6 + $0x150] sm:$0xff]
    %v143 = vld [vmem:[#allocation6 + $0x158] sm:$0xff]
    %v144 = vld [vmem:[#allocation6 + $0x160] sm:$0xff]
    %v145 = vld [vmem:[#allocation6 + $0x168] sm:$0xff]
    %v146 = vld [vmem:[#allocation6 + $0x170] sm:$0xff]
    %v147 = vld [vmem:[#allocation6 + $0x178] sm:$0xff]
    %v148 = vld [vmem:[#allocation6 + $0x180] sm:$0xff]
    %v149 = vld [vmem:[#allocation6 + $0x188] sm:$0xff]
    %v150 = vld [vmem:[#allocation6 + $0x190] sm:$0xff]
    %v151 = vld [vmem:[#allocation6 + $0x198] sm:$0xff]
    %v152 = vld [vmem:[#allocation6 + $0x1a0] sm:$0xff]
    %v153 = vld [vmem:[#allocation6 + $0x1a8] sm:$0xff]
    %v154 = vld [vmem:[#allocation6 + $0x1b0] sm:$0xff]
    %v155 = vld [vmem:[#allocation6 + $0x1b8] sm:$0xff]
    %v156 = vld [vmem:[#allocation6 + $0x1c0] sm:$0xff]
    %v157 = vld [vmem:[#allocation6 + $0x1c8] sm:$0xff]
    %v158 = vld [vmem:[#allocation6 + $0x1d0] sm:$0xff]
    %v159 = vld [vmem:[#allocation6 + $0x1d8] sm:$0xff]
    %v160 = vld [vmem:[#allocation6 + $0x1e0] sm:$0xff]
    %v161 = vld [vmem:[#allocation6 + $0x1e8] sm:$0xff]
    %v162 = vld [vmem:[#allocation6 + $0x1f0] sm:$0xff]
    %v163 = vld [vmem:[#allocation6 + $0x1f8] sm:$0xff]
    %v164 = vld [vmem:[#allocation6 + $0x200] sm:$0xff]
    %v165 = vld [vmem:[#allocation6 + $0x208] sm:$0xff]
    %v166 = vld [vmem:[#allocation6 + $0x210] sm:$0xff]
    %v167 = vld [vmem:[#allocation6 + $0x218] sm:$0xff]
    %v168 = vld [vmem:[#allocation6 + $0x220] sm:$0xff]
    %v169 = vld [vmem:[#allocation6 + $0x228] sm:$0xff]
    %v170 = vld [vmem:[#allocation6 + $0x230] sm:$0xff]
    %v171 = vld [vmem:[#allocation6 + $0x238] sm:$0xff]
    %v172 = vld [vmem:[#allocation6 + $0x240] sm:$0xff]
    %v173 = vld [vmem:[#allocation6 + $0x248] sm:$0xff]
    %v174 = vld [vmem:[#allocation6 + $0x250] sm:$0xff]
    %v175 = vld [vmem:[#allocation6 + $0x258] sm:$0xff]
    %v176 = vld [vmem:[#allocation6 + $0x260] sm:$0xff]
    %v177 = vld [vmem:[#allocation6 + $0x268] sm:$0xff]
    %v178 = vld [vmem:[#allocation6 + $0x270] sm:$0xff]
    %v179 = vld [vmem:[#allocation6 + $0x278] sm:$0xff]
    %v180 = vld [vmem:[#allocation6 + $0x280] sm:$0xff]
    %v181 = vld [vmem:[#allocation6 + $0x288] sm:$0xff]
    %v182 = vld [vmem:[#allocation6 + $0x290] sm:$0xff]
    %v183 = vld [vmem:[#allocation6 + $0x298] sm:$0xff]
    %v184 = vld [vmem:[#allocation6 + $0x2a0] sm:$0xff]
    %v185 = vld [vmem:[#allocation6 + $0x2a8] sm:$0xff]
    %v186 = vld [vmem:[#allocation6 + $0x2b0] sm:$0xff]
    %v187 = vld [vmem:[#allocation6 + $0x2b8] sm:$0xff]
    %v188 = vld [vmem:[#allocation6 + $0x2c0] sm:$0xff]
    %v189 = vld [vmem:[#allocation6 + $0x2c8] sm:$0xff]
    %v190 = vld [vmem:[#allocation6 + $0x2d0] sm:$0xff]
    %v191 = vld [vmem:[#allocation6 + $0x2d8] sm:$0xff]
    %v192 = vld [vmem:[#allocation6 + $0x2e0] sm:$0xff]
    %v193 = vld [vmem:[#allocation6 + $0x2e8] sm:$0xff]
    %v194 = vld [vmem:[#allocation6 + $0x2f0] sm:$0xff]
    %v195 = vld [vmem:[#allocation6 + $0x2f8] sm:$0xff]
    %v196 = vld [vmem:[#allocation6 + $0x300] sm:$0xff]
    %v197 = vld [vmem:[#allocation6 + $0x308] sm:$0xff]
    %v198 = vld [vmem:[#allocation6 + $0x310] sm:$0xff]
    %v199 = vld [vmem:[#allocation6 + $0x318] sm:$0xff]
    %v200 = vld [vmem:[#allocation6 + $0x320] sm:$0xff]
    %v201 = vld [vmem:[#allocation6 + $0x328] sm:$0xff]
    %v202 = vld [vmem:[#allocation6 + $0x330] sm:$0xff]
    %v203 = vld [vmem:[#allocation6 + $0x338] sm:$0xff]
    %v204 = vld [vmem:[#allocation6 + $0x340] sm:$0xff]
    %v205 = vld [vmem:[#allocation6 + $0x348] sm:$0xff]
    %v206 = vld [vmem:[#allocation6 + $0x350] sm:$0xff]
    %v207 = vld [vmem:[#allocation6 + $0x358] sm:$0xff]
    %v208 = vld [vmem:[#allocation6 + $0x360] sm:$0xff]
    %v209 = vld [vmem:[#allocation6 + $0x368] sm:$0xff]
    %v210 = vld [vmem:[#allocation6 + $0x370] sm:$0xff]
    %v211 = vld [vmem:[#allocation6 + $0x378] sm:$0xff]
    %v212 = vld [vmem:[#allocation6 + $0x380] sm:$0xff]
    %v213 = vld [vmem:[#allocation6 + $0x388] sm:$0xff]
    %v214 = vld [vmem:[#allocation6 + $0x390] sm:$0xff]
    %v215 = vld [vmem:[#allocation6 + $0x398] sm:$0xff]
    %v216 = vld [vmem:[#allocation6 + $0x3a0] sm:$0xff]
    %v217 = vld [vmem:[#allocation6 + $0x3a8] sm:$0xff]
    %v218 = vld [vmem:[#allocation6 + $0x3b0] sm:$0xff]
    %v219 = vld [vmem:[#allocation6 + $0x3b8] sm:$0xff]
    %v220 = vld [vmem:[#allocation6 + $0x3c0] sm:$0xff]
    %v221 = vld [vmem:[#allocation6 + $0x3c8] sm:$0xff]
    %v222 = vld [vmem:[#allocation6 + $0x3d0] sm:$0xff]
    %v223 = vld [vmem:[#allocation6 + $0x3d8] sm:$0xff]
    %v224 = vld [vmem:[#allocation6 + $0x3e0] sm:$0xff]
    %v225 = vld [vmem:[#allocation6 + $0x3e8] sm:$0xff]
    %v226 = vld [vmem:[#allocation6 + $0x3f0] sm:$0xff]
    %v227 = vld [vmem:[#allocation6 + $0x3f8] sm:$0xff]
    %v228 = vld [vmem:[#allocation6 + $0x400] sm:$0xff]
    %v229 = vld [vmem:[#allocation6 + $0x408] sm:$0xff]
    %v230 = vld [vmem:[#allocation6 + $0x410] sm:$0xff]
    %v231 = vld [vmem:[#allocation6 + $0x418] sm:$0xff]
    %v232 = vld [vmem:[#allocation6 + $0x420] sm:$0xff]
    %v233 = vld [vmem:[#allocation6 + $0x428] sm:$0xff]
    %v234 = vld [vmem:[#allocation6 + $0x430] sm:$0xff]
    %v235 = vld [vmem:[#allocation6 + $0x438] sm:$0xff]
    %v236 = vld [vmem:[#allocation6 + $0x440] sm:$0xff]
    %v237 = vld [vmem:[#allocation6 + $0x448] sm:$0xff]
    %v238 = vld [vmem:[#allocation6 + $0x450] sm:$0xff]
    %v239 = vld [vmem:[#allocation6 + $0x458] sm:$0xff]
    %v240 = vld [vmem:[#allocation6 + $0x460] sm:$0xff]
    %v241 = vld [vmem:[#allocation6 + $0x468] sm:$0xff]
    %v242 = vld [vmem:[#allocation6 + $0x470] sm:$0xff]
    %v243 = vld [vmem:[#allocation6 + $0x478] sm:$0xff]
    %v244 = vld [vmem:[#allocation6 + $0x480] sm:$0xff]
    %v245 = vld [vmem:[#allocation6 + $0x488] sm:$0xff]
    %v246 = vld [vmem:[#allocation6 + $0x490] sm:$0xff]
    %v247 = vld [vmem:[#allocation6 + $0x498] sm:$0xff]
    %v248 = vld [vmem:[#allocation6 + $0x4a0] sm:$0xff]
    %v249 = vld [vmem:[#allocation6 + $0x4a8] sm:$0xff]
    %v250 = vld [vmem:[#allocation6 + $0x4b0] sm:$0xff]
    %v251 = vld [vmem:[#allocation6 + $0x4b8] sm:$0xff]
    %v252 = vld [vmem:[#allocation6 + $0x4c0] sm:$0xff]
    %v253 = vld [vmem:[#allocation6 + $0x4c8] sm:$0xff]
    %v254 = vld [vmem:[#allocation6 + $0x4d0] sm:$0xff]
    %v255 = vld [vmem:[#allocation6 + $0x4d8] sm:$0xff]
    %v256 = vld [vmem:[#allocation6 + $0x4e0] sm:$0xff]
    %v257 = vld [vmem:[#allocation6 + $0x4e8] sm:$0xff]
    %v258 = vld [vmem:[#allocation6 + $0x4f0] sm:$0xff]
    %v259 = vld [vmem:[#allocation6 + $0x4f8] sm:$0xff]
    %v260 = vld [vmem:[#allocation6 + $0x500] sm:$0xff]
    %v261 = vld [vmem:[#allocation6 + $0x508] sm:$0xff]
    %v262 = vld [vmem:[#allocation6 + $0x510] sm:$0xff]
    %v263 = vld [vmem:[#allocation6 + $0x518] sm:$0xff]
    %v264 = vld [vmem:[#allocation6 + $0x520] sm:$0xff]
    %v265 = vld [vmem:[#allocation6 + $0x528] sm:$0xff]
    %v266 = vld [vmem:[#allocation6 + $0x530] sm:$0xff]
    %v267 = vld [vmem:[#allocation6 + $0x538] sm:$0xff]
    %v268 = vld [vmem:[#allocation6 + $0x540] sm:$0xff]
    %v269 = vld [vmem:[#allocation6 + $0x548] sm:$0xff]
    %v270 = vld [vmem:[#allocation6 + $0x550] sm:$0xff]
    %v271 = vld [vmem:[#allocation6 + $0x558] sm:$0xff]
    %v272 = vld [vmem:[#allocation6 + $0x560] sm:$0xff]
    %v273 = vld [vmem:[#allocation6 + $0x568] sm:$0xff]
    %v274 = vld [vmem:[#allocation6 + $0x570] sm:$0xff]
    %v275 = vld [vmem:[#allocation6 + $0x578] sm:$0xff]
    %v276 = vld [vmem:[#allocation6 + $0x580] sm:$0xff]
    %v277 = vld [vmem:[#allocation6 + $0x588] sm:$0xff]
    %v278 = vld [vmem:[#allocation6 + $0x590] sm:$0xff]
    %v279 = vld [vmem:[#allocation6 + $0x598] sm:$0xff]
    %v280 = vld [vmem:[#allocation6 + $0x5a0] sm:$0xff]
    %v281 = vld [vmem:[#allocation6 + $0x5a8] sm:$0xff]
    %v282 = vld [vmem:[#allocation6 + $0x5b0] sm:$0xff]
    %v283 = vld [vmem:[#allocation6 + $0x5b8] sm:$0xff]
    %v284 = vld [vmem:[#allocation6 + $0x5c0] sm:$0xff]
    %v285 = vld [vmem:[#allocation6 + $0x5c8] sm:$0xff]
    %v286 = vld [vmem:[#allocation6 + $0x5d0] sm:$0xff]
    %v287 = vld [vmem:[#allocation6 + $0x5d8] sm:$0xff]
    %v288 = vld [vmem:[#allocation6 + $0x5e0] sm:$0xff]
    %v289 = vld [vmem:[#allocation6 + $0x5e8] sm:$0xff]
    %v290 = vld [vmem:[#allocation6 + $0x5f0] sm:$0xff]
    %v291 = vld [vmem:[#allocation6 + $0x5f8] sm:$0xff]
    %v292 = vld [vmem:[#allocation6 + $0x600] sm:$0xff]
    %v293 = vld [vmem:[#allocation6 + $0x608] sm:$0xff]
    %v294 = vld [vmem:[#allocation6 + $0x610] sm:$0xff]
    %v295 = vld [vmem:[#allocation6 + $0x618] sm:$0xff]
    %v296 = vld [vmem:[#allocation6 + $0x620] sm:$0xff]
    %v297 = vld [vmem:[#allocation6 + $0x628] sm:$0xff]
    %v298 = vld [vmem:[#allocation6 + $0x630] sm:$0xff]
    %v299 = vld [vmem:[#allocation6 + $0x638] sm:$0xff]
    %v300 = vld [vmem:[#allocation6 + $0x640] sm:$0xff]
    %v301 = vld [vmem:[#allocation6 + $0x648] sm:$0xff]
    %v302 = vld [vmem:[#allocation6 + $0x650] sm:$0xff]
    %v303 = vld [vmem:[#allocation6 + $0x658] sm:$0xff]
    %v304 = vld [vmem:[#allocation6 + $0x660] sm:$0xff]
    %v305 = vld [vmem:[#allocation6 + $0x668] sm:$0xff]
    %v306 = vld [vmem:[#allocation6 + $0x670] sm:$0xff]
    %v307 = vld [vmem:[#allocation6 + $0x678] sm:$0xff]
    %v308 = vld [vmem:[#allocation6 + $0x680] sm:$0xff]
    %v309 = vld [vmem:[#allocation6 + $0x688] sm:$0xff]
    %v310 = vld [vmem:[#allocation6 + $0x690] sm:$0xff]
    %v311 = vld [vmem:[#allocation6 + $0x698] sm:$0xff]
    %v312 = vld [vmem:[#allocation6 + $0x6a0] sm:$0xff]
    %v313 = vld [vmem:[#allocation6 + $0x6a8] sm:$0xff]
    %v314 = vld [vmem:[#allocation6 + $0x6b0] sm:$0xff]
    %v315 = vld [vmem:[#allocation6 + $0x6b8] sm:$0xff]
    %v316 = vld [vmem:[#allocation6 + $0x6c0] sm:$0xff]
    %v317 = vld [vmem:[#allocation6 + $0x6c8] sm:$0xff]
    %v318 = vld [vmem:[#allocation6 + $0x6d0] sm:$0xff]
    %v319 = vld [vmem:[#allocation6 + $0x6d8] sm:$0xff]
    %v320 = vld [vmem:[#allocation6 + $0x6e0] sm:$0xff]
    %v321 = vld [vmem:[#allocation6 + $0x6e8] sm:$0xff]
    %v322 = vld [vmem:[#allocation6 + $0x6f0] sm:$0xff]
    %v323 = vld [vmem:[#allocation6 + $0x6f8] sm:$0xff]
    %v324 = vld [vmem:[#allocation6 + $0x700] sm:$0xff]
    %v325 = vld [vmem:[#allocation6 + $0x708] sm:$0xff]
    %v326 = vld [vmem:[#allocation6 + $0x710] sm:$0xff]
    %v327 = vld [vmem:[#allocation6 + $0x718] sm:$0xff]
    %v328 = vld [vmem:[#allocation6 + $0x720] sm:$0xff]
    %v329 = vld [vmem:[#allocation6 + $0x728] sm:$0xff]
    %v330 = vld [vmem:[#allocation6 + $0x730] sm:$0xff]
    %v331 = vld [vmem:[#allocation6 + $0x738] sm:$0xff]
    %v332 = vld [vmem:[#allocation6 + $0x740] sm:$0xff]
    %v333 = vld [vmem:[#allocation6 + $0x748] sm:$0xff]
    %v334 = vld [vmem:[#allocation6 + $0x750] sm:$0xff]
    %v335 = vld [vmem:[#allocation6 + $0x758] sm:$0xff]
    %v336 = vld [vmem:[#allocation6 + $0x760] sm:$0xff]
    %v337 = vld [vmem:[#allocation6 + $0x768] sm:$0xff]
    %v338 = vld [vmem:[#allocation6 + $0x770] sm:$0xff]
    %v339 = vld [vmem:[#allocation6 + $0x778] sm:$0xff]
    %v340 = vld [vmem:[#allocation6 + $0x780] sm:$0xff]
    %v341 = vld [vmem:[#allocation6 + $0x788] sm:$0xff]
    %v342 = vld [vmem:[#allocation6 + $0x790] sm:$0xff]
    %v343 = vld [vmem:[#allocation6 + $0x798] sm:$0xff]
    %v344 = vld [vmem:[#allocation6 + $0x7a0] sm:$0xff]
    %v345 = vld [vmem:[#allocation6 + $0x7a8] sm:$0xff]
    %v346 = vld [vmem:[#allocation6 + $0x7b0] sm:$0xff]
    %v347 = vld [vmem:[#allocation6 + $0x7b8] sm:$0xff]
    %v348 = vld [vmem:[#allocation6 + $0x7c0] sm:$0xff]
    %v349 = vld [vmem:[#allocation6 + $0x7c8] sm:$0xff]
    %v350 = vld [vmem:[#allocation6 + $0x7d0] sm:$0xff]
    %v351 = vld [vmem:[#allocation6 + $0x7d8] sm:$0xff]
    %v352 = vld [vmem:[#allocation6 + $0x7e0] sm:$0xff]
    %v353 = vld [vmem:[#allocation6 + $0x7e8] sm:$0xff]
    %v354 = vld [vmem:[#allocation6 + $0x7f0] sm:$0xff]
    %v355 = vld [vmem:[#allocation6 + $0x7f8] sm:$0xff]
    %v356 = vld [vmem:[#allocation6 + $0x800] sm:$0xff]
    %v357 = vld [vmem:[#allocation6 + $0x808] sm:$0xff]
    %v358 = vld [vmem:[#allocation6 + $0x810] sm:$0xff]
    %v359 = vld [vmem:[#allocation6 + $0x818] sm:$0xff]
    %v360 = vld [vmem:[#allocation6 + $0x820] sm:$0xff]
    %v361 = vld [vmem:[#allocation6 + $0x828] sm:$0xff]
    %v362 = vld [vmem:[#allocation6 + $0x830] sm:$0xff]
    %v363 = vld [vmem:[#allocation6 + $0x838] sm:$0xff]
    %v364 = vld [vmem:[#allocation6 + $0x840] sm:$0xff]
    %v365 = vld [vmem:[#allocation6 + $0x848] sm:$0xff]
    %v366 = vld [vmem:[#allocation6 + $0x850] sm:$0xff]
    %v367 = vld [vmem:[#allocation6 + $0x858] sm:$0xff]
    %v368 = vld [vmem:[#allocation6 + $0x860] sm:$0xff]
    %v369 = vld [vmem:[#allocation6 + $0x868] sm:$0xff]
    %v370 = vld [vmem:[#allocation6 + $0x870] sm:$0xff]
    %v371 = vld [vmem:[#allocation6 + $0x878] sm:$0xff]
    %v372 = vld [vmem:[#allocation6 + $0x880] sm:$0xff]
    %v373 = vld [vmem:[#allocation6 + $0x888] sm:$0xff]
    %v374 = vld [vmem:[#allocation6 + $0x890] sm:$0xff]
    %v375 = vld [vmem:[#allocation6 + $0x898] sm:$0xff]
    %v376 = vld [vmem:[#allocation6 + $0x8a0] sm:$0xff]
    %v377 = vld [vmem:[#allocation6 + $0x8a8] sm:$0xff]
    %v378 = vld [vmem:[#allocation6 + $0x8b0] sm:$0xff]
    %v379 = vld [vmem:[#allocation6 + $0x8b8] sm:$0xff]
    %v380 = vld [vmem:[#allocation6 + $0x8c0] sm:$0xff]
    %v381 = vld [vmem:[#allocation6 + $0x8c8] sm:$0xff]
    %v382 = vld [vmem:[#allocation6 + $0x8d0] sm:$0xff]
    %v383 = vld [vmem:[#allocation6 + $0x8d8] sm:$0xff]
    %v384 = vld [vmem:[#allocation6 + $0x8e0] sm:$0xff]
    %v385 = vld [vmem:[#allocation6 + $0x8e8] sm:$0xff]
    %v386 = vld [vmem:[#allocation6 + $0x8f0] sm:$0xff]
    %v387 = vld [vmem:[#allocation6 + $0x8f8] sm:$0xff]
    %v388 = vld [vmem:[#allocation6 + $0x900] sm:$0xff]
    %v389 = vld [vmem:[#allocation6 + $0x908] sm:$0xff]
    %v390 = vld [vmem:[#allocation6 + $0x910] sm:$0xff]
    %v391 = vld [vmem:[#allocation6 + $0x918] sm:$0xff]
    %v392 = vld [vmem:[#allocation6 + $0x920] sm:$0xff]
    %v393 = vld [vmem:[#allocation6 + $0x928] sm:$0xff]
    %v394 = vld [vmem:[#allocation6 + $0x930] sm:$0xff]
    %v395 = vld [vmem:[#allocation6 + $0x938] sm:$0xff]
    %v396 = vld [vmem:[#allocation6 + $0x940] sm:$0xff]
    %v397 = vld [vmem:[#allocation6 + $0x948] sm:$0xff]
    %v398 = vld [vmem:[#allocation6 + $0x950] sm:$0xff]
    %v399 = vld [vmem:[#allocation6 + $0x958] sm:$0xff]
    %v400 = vld [vmem:[#allocation6 + $0x960] sm:$0xff]
    %v401 = vld [vmem:[#allocation6 + $0x968] sm:$0xff]
    %v402 = vld [vmem:[#allocation6 + $0x970] sm:$0xff]
    %v403 = vld [vmem:[#allocation6 + $0x978] sm:$0xff]
    %v404 = vld [vmem:[#allocation6 + $0x980] sm:$0xff]
    %v405 = vld [vmem:[#allocation6 + $0x988] sm:$0xff]
    %v406 = vld [vmem:[#allocation6 + $0x990] sm:$0xff]
    %v407 = vld [vmem:[#allocation6 + $0x998] sm:$0xff]
    %v408 = vld [vmem:[#allocation6 + $0x9a0] sm:$0xff]
    %v409 = vld [vmem:[#allocation6 + $0x9a8] sm:$0xff]
    %v410 = vld [vmem:[#allocation6 + $0x9b0] sm:$0xff]
    %v411 = vld [vmem:[#allocation6 + $0x9b8] sm:$0xff]
    %v412 = vld [vmem:[#allocation6 + $0x9c0] sm:$0xff]
    %v413 = vld [vmem:[#allocation6 + $0x9c8] sm:$0xff]
    %v414 = vld [vmem:[#allocation6 + $0x9d0] sm:$0xff]
    %v415 = vld [vmem:[#allocation6 + $0x9d8] sm:$0xff]
    %v416 = vld [vmem:[#allocation6 + $0x9e0] sm:$0xff]
    %v417 = vld [vmem:[#allocation6 + $0x9e8] sm:$0xff]
    %v418 = vld [vmem:[#allocation6 + $0x9f0] sm:$0xff]
    %v419 = vld [vmem:[#allocation6 + $0x9f8] sm:$0xff]
    %v420 = vld [vmem:[#allocation6 + $0xa00] sm:$0xff]
    %v421 = vld [vmem:[#allocation6 + $0xa08] sm:$0xff]
    %v422 = vld [vmem:[#allocation6 + $0xa10] sm:$0xff]
    %v423 = vld [vmem:[#allocation6 + $0xa18] sm:$0xff]
    %v424 = vld [vmem:[#allocation6 + $0xa20] sm:$0xff]
    %v425 = vld [vmem:[#allocation6 + $0xa28] sm:$0xff]
    %v426 = vld [vmem:[#allocation6 + $0xa30] sm:$0xff]
    %v427 = vld [vmem:[#allocation6 + $0xa38] sm:$0xff]
    %v428 = vld [vmem:[#allocation6 + $0xa40] sm:$0xff]
    %v429 = vld [vmem:[#allocation6 + $0xa48] sm:$0xff]
    %v430 = vld [vmem:[#allocation6 + $0xa50] sm:$0xff]
    %v431 = vld [vmem:[#allocation6 + $0xa58] sm:$0xff]
    %v432 = vld [vmem:[#allocation6 + $0xa60] sm:$0xff]
    %v433 = vld [vmem:[#allocation6 + $0xa68] sm:$0xff]
    %v434 = vld [vmem:[#allocation6 + $0xa70] sm:$0xff]
    %v435 = vld [vmem:[#allocation6 + $0xa78] sm:$0xff]
    %v436 = vld [vmem:[#allocation6 + $0xa80] sm:$0xff]
    %v437 = vld [vmem:[#allocation6 + $0xa88] sm:$0xff]
    %v438 = vld [vmem:[#allocation6 + $0xa90] sm:$0xff]
    %v439 = vld [vmem:[#allocation6 + $0xa98] sm:$0xff]
    %v440 = vld [vmem:[#allocation6 + $0xaa0] sm:$0xff]
    %v441 = vld [vmem:[#allocation6 + $0xaa8] sm:$0xff]
    %v442 = vld [vmem:[#allocation6 + $0xab0] sm:$0xff]
    %v443 = vld [vmem:[#allocation6 + $0xab8] sm:$0xff]
    %v444 = vld [vmem:[#allocation6 + $0xac0] sm:$0xff]
    %v445 = vld [vmem:[#allocation6 + $0xac8] sm:$0xff]
    %v446 = vld [vmem:[#allocation6 + $0xad0] sm:$0xff]
    %v447 = vld [vmem:[#allocation6 + $0xad8] sm:$0xff]
    %v448 = vld [vmem:[#allocation6 + $0xae0] sm:$0xff]
    %v449 = vld [vmem:[#allocation6 + $0xae8] sm:$0xff]
    %v450 = vld [vmem:[#allocation6 + $0xaf0] sm:$0xff]
    %v451 = vld [vmem:[#allocation6 + $0xaf8] sm:$0xff]
    %v452 = vld [vmem:[#allocation6 + $0xb00] sm:$0xff]
    %v453 = vld [vmem:[#allocation6 + $0xb08] sm:$0xff]
    %v454 = vld [vmem:[#allocation6 + $0xb10] sm:$0xff]
    %v455 = vld [vmem:[#allocation6 + $0xb18] sm:$0xff]
    %v456 = vld [vmem:[#allocation6 + $0xb20] sm:$0xff]
    %v457 = vld [vmem:[#allocation6 + $0xb28] sm:$0xff]
    %v458 = vld [vmem:[#allocation6 + $0xb30] sm:$0xff]
    %v459 = vld [vmem:[#allocation6 + $0xb38] sm:$0xff]
    %v460 = vld [vmem:[#allocation6 + $0xb40] sm:$0xff]
    %v461 = vld [vmem:[#allocation6 + $0xb48] sm:$0xff]
    %v462 = vld [vmem:[#allocation6 + $0xb50] sm:$0xff]
    %v463 = vld [vmem:[#allocation6 + $0xb58] sm:$0xff]
    %v464 = vld [vmem:[#allocation6 + $0xb60] sm:$0xff]
    %v465 = vld [vmem:[#allocation6 + $0xb68] sm:$0xff]
    %v466 = vld [vmem:[#allocation6 + $0xb70] sm:$0xff]
    %v467 = vld [vmem:[#allocation6 + $0xb78] sm:$0xff]
    %v468 = vld [vmem:[#allocation6 + $0xb80] sm:$0xff]
    %v469 = vld [vmem:[#allocation6 + $0xb88] sm:$0xff]
    %v470 = vld [vmem:[#allocation6 + $0xb90] sm:$0xff]
    %v471 = vld [vmem:[#allocation6 + $0xb98] sm:$0xff]
    %v472 = vld [vmem:[#allocation6 + $0xba0] sm:$0xff]
    %v473 = vld [vmem:[#allocation6 + $0xba8] sm:$0xff]
    %v474 = vld [vmem:[#allocation6 + $0xbb0] sm:$0xff]
    %v475 = vld [vmem:[#allocation6 + $0xbb8] sm:$0xff]
    %v476 = vld [vmem:[#allocation6 + $0xbc0] sm:$0xff]
    %v477 = vld [vmem:[#allocation6 + $0xbc8] sm:$0xff]
    %v478 = vld [vmem:[#allocation6 + $0xbd0] sm:$0xff]
    %v479 = vld [vmem:[#allocation6 + $0xbd8] sm:$0xff]
    %v480 = vld [vmem:[#allocation6 + $0xbe0] sm:$0xff]
    %v481 = vld [vmem:[#allocation6 + $0xbe8] sm:$0xff]
    %v482 = vld [vmem:[#allocation6 + $0xbf0] sm:$0xff]
    %v483 = vld [vmem:[#allocation6 + $0xbf8] sm:$0xff]
    %v484 = vld [vmem:[#allocation6 + $0xc00] sm:$0xff]
    %v485 = vld [vmem:[#allocation6 + $0xc08] sm:$0xff]
    %v486 = vld [vmem:[#allocation6 + $0xc10] sm:$0xff]
    %v487 = vld [vmem:[#allocation6 + $0xc18] sm:$0xff]
    %v488 = vld [vmem:[#allocation6 + $0xc20] sm:$0xff]
    %v489 = vld [vmem:[#allocation6 + $0xc28] sm:$0xff]
    %v490 = vld [vmem:[#allocation6 + $0xc30] sm:$0xff]
    %v491 = vld [vmem:[#allocation6 + $0xc38] sm:$0xff]
    %v492 = vld [vmem:[#allocation6 + $0xc40] sm:$0xff]
    %v493 = vld [vmem:[#allocation6 + $0xc48] sm:$0xff]
    %v494 = vld [vmem:[#allocation6 + $0xc50] sm:$0xff]
    %v495 = vld [vmem:[#allocation6 + $0xc58] sm:$0xff]
    %v496 = vld [vmem:[#allocation6 + $0xc60] sm:$0xff]
    %v497 = vld [vmem:[#allocation6 + $0xc68] sm:$0xff]
    %v498 = vld [vmem:[#allocation6 + $0xc70] sm:$0xff]
    %v499 = vld [vmem:[#allocation6 + $0xc78] sm:$0xff]
    %v500 = vld [vmem:[#allocation6 + $0xc80] sm:$0xff]
    %v501 = vld [vmem:[#allocation6 + $0xc88] sm:$0xff]
    %v502 = vld [vmem:[#allocation6 + $0xc90] sm:$0xff]
    %v503 = vld [vmem:[#allocation6 + $0xc98] sm:$0xff]
    %v504 = vld [vmem:[#allocation6 + $0xca0] sm:$0xff]
    %v505 = vld [vmem:[#allocation6 + $0xca8] sm:$0xff]
    %v506 = vld [vmem:[#allocation6 + $0xcb0] sm:$0xff]
    %v507 = vld [vmem:[#allocation6 + $0xcb8] sm:$0xff]
    %v508 = vld [vmem:[#allocation6 + $0xcc0] sm:$0xff]
    %v509 = vld [vmem:[#allocation6 + $0xcc8] sm:$0xff]
    %v510 = vld [vmem:[#allocation6 + $0xcd0] sm:$0xff]
    %v511 = vld [vmem:[#allocation6 + $0xcd8] sm:$0xff]
    %v512 = vld [vmem:[#allocation6 + $0xce0] sm:$0xff]
    %v513 = vld [vmem:[#allocation6 + $0xce8] sm:$0xff]
    %v514 = vld [vmem:[#allocation6 + $0xcf0] sm:$0xff]
    %v515 = vld [vmem:[#allocation6 + $0xcf8] sm:$0xff]
    %v516 = vld [vmem:[#allocation6 + $0xd00] sm:$0xff]
    %v517 = vld [vmem:[#allocation6 + $0xd08] sm:$0xff]
    %v518 = vld [vmem:[#allocation6 + $0xd10] sm:$0xff]
    %v519 = vld [vmem:[#allocation6 + $0xd18] sm:$0xff]
    %v520 = vld [vmem:[#allocation6 + $0xd20] sm:$0xff]
    %v521 = vld [vmem:[#allocation6 + $0xd28] sm:$0xff]
    %v522 = vld [vmem:[#allocation6 + $0xd30] sm:$0xff]
    %v523 = vld [vmem:[#allocation6 + $0xd38] sm:$0xff]
    %v524 = vld [vmem:[#allocation6 + $0xd40] sm:$0xff]
    %v525 = vld [vmem:[#allocation6 + $0xd48] sm:$0xff]
    %v526 = vld [vmem:[#allocation6 + $0xd50] sm:$0xff]
    %v527 = vld [vmem:[#allocation6 + $0xd58] sm:$0xff]
    %v528 = vld [vmem:[#allocation6 + $0xd60] sm:$0xff]
    %v529 = vld [vmem:[#allocation6 + $0xd68] sm:$0xff]
    %v530 = vld [vmem:[#allocation6 + $0xd70] sm:$0xff]
    %v531 = vld [vmem:[#allocation6 + $0xd78] sm:$0xff]
    %v532 = vld [vmem:[#allocation6 + $0xd80] sm:$0xff]
    %v533 = vld [vmem:[#allocation6 + $0xd88] sm:$0xff]
    %v534 = vld [vmem:[#allocation6 + $0xd90] sm:$0xff]
    %v535 = vld [vmem:[#allocation6 + $0xd98] sm:$0xff]
    %v536 = vld [vmem:[#allocation6 + $0xda0] sm:$0xff]
    %v537 = vld [vmem:[#allocation6 + $0xda8] sm:$0xff]
    %v538 = vld [vmem:[#allocation6 + $0xdb0] sm:$0xff]
    %v539 = vld [vmem:[#allocation6 + $0xdb8] sm:$0xff]
    %v540 = vld [vmem:[#allocation6 + $0xdc0] sm:$0xff]
    %v541 = vld [vmem:[#allocation6 + $0xdc8] sm:$0xff]
    %v542 = vld [vmem:[#allocation6 + $0xdd0] sm:$0xff]
    %v543 = vld [vmem:[#allocation6 + $0xdd8] sm:$0xff]
    %v544 = vld [vmem:[#allocation6 + $0xde0] sm:$0xff]
    %v545 = vld [vmem:[#allocation6 + $0xde8] sm:$0xff]
    %v546 = vld [vmem:[#allocation6 + $0xdf0] sm:$0xff]
    %v547 = vld [vmem:[#allocation6 + $0xdf8] sm:$0xff]
    %v548 = vld [vmem:[#allocation6 + $0xe00] sm:$0xff]
    %v549 = vld [vmem:[#allocation6 + $0xe08] sm:$0xff]
    %v550 = vld [vmem:[#allocation6 + $0xe10] sm:$0xff]
    %v551 = vld [vmem:[#allocation6 + $0xe18] sm:$0xff]
    %v552 = vld [vmem:[#allocation6 + $0xe20] sm:$0xff]
    %v553 = vld [vmem:[#allocation6 + $0xe28] sm:$0xff]
    %v554 = vld [vmem:[#allocation6 + $0xe30] sm:$0xff]
    %v555 = vld [vmem:[#allocation6 + $0xe38] sm:$0xff]
    %v556 = vld [vmem:[#allocation6 + $0xe40] sm:$0xff]
    %v557 = vld [vmem:[#allocation6 + $0xe48] sm:$0xff]
    %v558 = vld [vmem:[#allocation6 + $0xe50] sm:$0xff]
    %v559 = vld [vmem:[#allocation6 + $0xe58] sm:$0xff]
    %v560 = vld [vmem:[#allocation6 + $0xe60] sm:$0xff]
    %v561 = vld [vmem:[#allocation6 + $0xe68] sm:$0xff]
    %v562 = vld [vmem:[#allocation6 + $0xe70] sm:$0xff]
    %v563 = vld [vmem:[#allocation6 + $0xe78] sm:$0xff]
    %v564 = vld [vmem:[#allocation6 + $0xe80] sm:$0xff]
    %v565 = vld [vmem:[#allocation6 + $0xe88] sm:$0xff]
    %v566 = vld [vmem:[#allocation6 + $0xe90] sm:$0xff]
    %v567 = vld [vmem:[#allocation6 + $0xe98] sm:$0xff]
    %v568 = vld [vmem:[#allocation6 + $0xea0] sm:$0xff]
    %v569 = vld [vmem:[#allocation6 + $0xea8] sm:$0xff]
    %v570 = vld [vmem:[#allocation6 + $0xeb0] sm:$0xff]
    %v571 = vld [vmem:[#allocation6 + $0xeb8] sm:$0xff]
    %v572 = vld [vmem:[#allocation6 + $0xec0] sm:$0xff]
    %v573 = vld [vmem:[#allocation6 + $0xec8] sm:$0xff]
    %v574 = vld [vmem:[#allocation6 + $0xed0] sm:$0xff]
    %v575 = vld [vmem:[#allocation6 + $0xed8] sm:$0xff]
    %v576 = vld [vmem:[#allocation6 + $0xee0] sm:$0xff]
    %v577 = vld [vmem:[#allocation6 + $0xee8] sm:$0xff]
    %v578 = vld [vmem:[#allocation6 + $0xef0] sm:$0xff]
    %v579 = vld [vmem:[#allocation6 + $0xef8] sm:$0xff]
    %v580 = vld [vmem:[#allocation6 + $0xf00] sm:$0xff]
    %v581 = vld [vmem:[#allocation6 + $0xf08] sm:$0xff]
    %v582 = vld [vmem:[#allocation6 + $0xf10] sm:$0xff]
    %v583 = vld [vmem:[#allocation6 + $0xf18] sm:$0xff]
    %v584 = vld [vmem:[#allocation6 + $0xf20] sm:$0xff]
    %v585 = vld [vmem:[#allocation6 + $0xf28] sm:$0xff]
    %v586 = vld [vmem:[#allocation6 + $0xf30] sm:$0xff]
    %v587 = vld [vmem:[#allocation6 + $0xf38] sm:$0xff]
    %v588 = vld [vmem:[#allocation6 + $0xf40] sm:$0xff]
    %v589 = vld [vmem:[#allocation6 + $0xf48] sm:$0xff]
    %v590 = vld [vmem:[#allocation6 + $0xf50] sm:$0xff]
    %v591 = vld [vmem:[#allocation6 + $0xf58] sm:$0xff]
    %v592 = vld [vmem:[#allocation6 + $0xf60] sm:$0xff]
    %v593 = vld [vmem:[#allocation6 + $0xf68] sm:$0xff]
    %v594 = vld [vmem:[#allocation6 + $0xf70] sm:$0xff]
    %v595 = vld [vmem:[#allocation6 + $0xf78] sm:$0xff]
    %v596 = vld [vmem:[#allocation6 + $0xf80] sm:$0xff]
    %v597 = vld [vmem:[#allocation6 + $0xf88] sm:$0xff]
    %v598 = vld [vmem:[#allocation6 + $0xf90] sm:$0xff]
    %v599 = vld [vmem:[#allocation6 + $0xf98] sm:$0xff]
    %v600 = vld [vmem:[#allocation6 + $0xfa0] sm:$0xff]
    %v601 = vld [vmem:[#allocation6 + $0xfa8] sm:$0xff]
    %v602 = vld [vmem:[#allocation6 + $0xfb0] sm:$0xff]
    %v603 = vld [vmem:[#allocation6 + $0xfb8] sm:$0xff]
    %v604 = vld [vmem:[#allocation6 + $0xfc0] sm:$0xff]
    %v605 = vld [vmem:[#allocation6 + $0xfc8] sm:$0xff]
    %v606 = vld [vmem:[#allocation6 + $0xfd0] sm:$0xff]
    %v607 = vld [vmem:[#allocation6 + $0xfd8] sm:$0xff]
    %v608 = vld [vmem:[#allocation6 + $0xfe0] sm:$0xff]
    %v609 = vld [vmem:[#allocation6 + $0xfe8] sm:$0xff]
    %v610 = vld [vmem:[#allocation6 + $0xff0] sm:$0xff]
    %v611 = vld [vmem:[#allocation6 + $0xff8] sm:$0xff]
    %v612 = vld [vmem:[#allocation6 + $0x1000] sm:$0xff]
    %v613 = vld [vmem:[#allocation6 + $0x1008] sm:$0xff]
    %v614 = vld [vmem:[#allocation6 + $0x1010] sm:$0xff]
    %v615 = vld [vmem:[#allocation6 + $0x1018] sm:$0xff]
    %v616 = vld [vmem:[#allocation6 + $0x1020] sm:$0xff]
    %v617 = vld [vmem:[#allocation6 + $0x1028] sm:$0xff]
    %v618 = vld [vmem:[#allocation6 + $0x1030] sm:$0xff]
    %v619 = vld [vmem:[#allocation6 + $0x1038] sm:$0xff]
    %v620 = vld [vmem:[#allocation6 + $0x1040] sm:$0xff]
    %v621 = vld [vmem:[#allocation6 + $0x1048] sm:$0xff]
    %v622 = vld [vmem:[#allocation6 + $0x1050] sm:$0xff]
    %v623 = vld [vmem:[#allocation6 + $0x1058] sm:$0xff]
    %v624 = vld [vmem:[#allocation6 + $0x1060] sm:$0xff]
    %v625 = vld [vmem:[#allocation6 + $0x1068] sm:$0xff]
    %v626 = vld [vmem:[#allocation6 + $0x1070] sm:$0xff]
    %v627 = vld [vmem:[#allocation6 + $0x1078] sm:$0xff]
    %v628 = vld [vmem:[#allocation6 + $0x1080] sm:$0xff]
    %v629 = vld [vmem:[#allocation6 + $0x1088] sm:$0xff]
    %v630 = vld [vmem:[#allocation6 + $0x1090] sm:$0xff]
    %v631 = vld [vmem:[#allocation6 + $0x1098] sm:$0xff]
    %v632 = vld [vmem:[#allocation6 + $0x10a0] sm:$0xff]
    %v633 = vld [vmem:[#allocation6 + $0x10a8] sm:$0xff]
    %v634 = vld [vmem:[#allocation6 + $0x10b0] sm:$0xff]
    %v635 = vld [vmem:[#allocation6 + $0x10b8] sm:$0xff]
    %v636 = vld [vmem:[#allocation6 + $0x10c0] sm:$0xff]
    %v637 = vld [vmem:[#allocation6 + $0x10c8] sm:$0xff]
    %v638 = vld [vmem:[#allocation6 + $0x10d0] sm:$0xff]
    %v639 = vld [vmem:[#allocation6 + $0x10d8] sm:$0xff]
    %v640 = vld [vmem:[#allocation6 + $0x10e0] sm:$0xff]
    %v641 = vld [vmem:[#allocation6 + $0x10e8] sm:$0xff]
    %v642 = vld [vmem:[#allocation6 + $0x10f0] sm:$0xff]
    %v643 = vld [vmem:[#allocation6 + $0x10f8] sm:$0xff]
    %v644 = vld [vmem:[#allocation6 + $0x1100] sm:$0xff]
    %v645 = vld [vmem:[#allocation6 + $0x1108] sm:$0xff]
    %v646 = vld [vmem:[#allocation6 + $0x1110] sm:$0xff]
    %v647 = vld [vmem:[#allocation6 + $0x1118] sm:$0xff]
    %v648 = vld [vmem:[#allocation6 + $0x1120] sm:$0xff]
    %v649 = vld [vmem:[#allocation6 + $0x1128] sm:$0xff]
    %v650 = vld [vmem:[#allocation6 + $0x1130] sm:$0xff]
    %v651 = vld [vmem:[#allocation6 + $0x1138] sm:$0xff]
    %v652 = vld [vmem:[#allocation6 + $0x1140] sm:$0xff]
    %v653 = vld [vmem:[#allocation6 + $0x1148] sm:$0xff]
    %v654 = vld [vmem:[#allocation6 + $0x1150] sm:$0xff]
    %v655 = vld [vmem:[#allocation6 + $0x1158] sm:$0xff]
    %v656 = vld [vmem:[#allocation6 + $0x1160] sm:$0xff]
    %v657 = vld [vmem:[#allocation6 + $0x1168] sm:$0xff]
    %v658 = vld [vmem:[#allocation6 + $0x1170] sm:$0xff]
    %v659 = vld [vmem:[#allocation6 + $0x1178] sm:$0xff]
    %v660 = vld [vmem:[#allocation6 + $0x1180] sm:$0xff]
    %v661 = vld [vmem:[#allocation6 + $0x1188] sm:$0xff]
    %v662 = vld [vmem:[#allocation6 + $0x1190] sm:$0xff]
    %v663 = vld [vmem:[#allocation6 + $0x1198] sm:$0xff]
    %v664 = vld [vmem:[#allocation6 + $0x11a0] sm:$0xff]
    %v665 = vld [vmem:[#allocation6 + $0x11a8] sm:$0xff]
    %v666 = vld [vmem:[#allocation6 + $0x11b0] sm:$0xff]
    %v667 = vld [vmem:[#allocation6 + $0x11b8] sm:$0xff]
    %v668 = vld [vmem:[#allocation6 + $0x11c0] sm:$0xff]
    %v669 = vld [vmem:[#allocation6 + $0x11c8] sm:$0xff]
    %v670 = vld [vmem:[#allocation6 + $0x11d0] sm:$0xff]
    %v671 = vld [vmem:[#allocation6 + $0x11d8] sm:$0xff]
    %v672 = vld [vmem:[#allocation6 + $0x11e0] sm:$0xff]
    %v673 = vld [vmem:[#allocation6 + $0x11e8] sm:$0xff]
    %v674 = vld [vmem:[#allocation6 + $0x11f0] sm:$0xff]
    %v675 = vld [vmem:[#allocation6 + $0x11f8] sm:$0xff]
    %v676 = vld [vmem:[#allocation6 + $0x1200] sm:$0xff]
    %v677 = vld [vmem:[#allocation6 + $0x1208] sm:$0xff]
    %v678 = vld [vmem:[#allocation6 + $0x1210] sm:$0xff]
    %v679 = vld [vmem:[#allocation6 + $0x1218] sm:$0xff]
    %v680 = vld [vmem:[#allocation6 + $0x1220] sm:$0xff]
    %v681 = vld [vmem:[#allocation6 + $0x1228] sm:$0xff]
    %v682 = vld [vmem:[#allocation6 + $0x1230] sm:$0xff]
    %v683 = vld [vmem:[#allocation6 + $0x1238] sm:$0xff]
    %v684 = vld [vmem:[#allocation6 + $0x1240] sm:$0xff]
    %v685 = vld [vmem:[#allocation6 + $0x1248] sm:$0xff]
    %v686 = vld [vmem:[#allocation6 + $0x1250] sm:$0xff]
    %v687 = vld [vmem:[#allocation6 + $0x1258] sm:$0xff]
    %v688 = vld [vmem:[#allocation6 + $0x1260] sm:$0xff]
    %v689 = vld [vmem:[#allocation6 + $0x1268] sm:$0xff]
    %v690 = vld [vmem:[#allocation6 + $0x1270] sm:$0xff]
    %v691 = vld [vmem:[#allocation6 + $0x1278] sm:$0xff]
    %v692 = vld [vmem:[#allocation6 + $0x1280] sm:$0xff]
    %v693 = vld [vmem:[#allocation6 + $0x1288] sm:$0xff]
    %v694 = vld [vmem:[#allocation6 + $0x1290] sm:$0xff]
    %v695 = vld [vmem:[#allocation6 + $0x1298] sm:$0xff]
    %v696 = vld [vmem:[#allocation6 + $0x12a0] sm:$0xff]
    %v697 = vld [vmem:[#allocation6 + $0x12a8] sm:$0xff]
    %v698 = vld [vmem:[#allocation6 + $0x12b0] sm:$0xff]
    %v699 = vld [vmem:[#allocation6 + $0x12b8] sm:$0xff]
    %v700 = vld [vmem:[#allocation6 + $0x12c0] sm:$0xff]
    %v701 = vld [vmem:[#allocation6 + $0x12c8] sm:$0xff]
    %v702 = vld [vmem:[#allocation6 + $0x12d0] sm:$0xff]
    %v703 = vld [vmem:[#allocation6 + $0x12d8] sm:$0xff]
    %v704 = vld [vmem:[#allocation6 + $0x12e0] sm:$0xff]
    %v705 = vld [vmem:[#allocation6 + $0x12e8] sm:$0xff]
    %v706 = vld [vmem:[#allocation6 + $0x12f0] sm:$0xff]
    %v707 = vld [vmem:[#allocation6 + $0x12f8] sm:$0xff]
    %v708 = vld [vmem:[#allocation6 + $0x1300] sm:$0xff]
    %v709 = vld [vmem:[#allocation6 + $0x1308] sm:$0xff]
    %v710 = vld [vmem:[#allocation6 + $0x1310] sm:$0xff]
    %v711 = vld [vmem:[#allocation6 + $0x1318] sm:$0xff]
    %v712 = vld [vmem:[#allocation6 + $0x1320] sm:$0xff]
    %v713 = vld [vmem:[#allocation6 + $0x1328] sm:$0xff]
    %v714 = vld [vmem:[#allocation6 + $0x1330] sm:$0xff]
    %v715 = vld [vmem:[#allocation6 + $0x1338] sm:$0xff]
    %v716 = vld [vmem:[#allocation6 + $0x1340] sm:$0xff]
    %v717 = vld [vmem:[#allocation6 + $0x1348] sm:$0xff]
    %v718 = vld [vmem:[#allocation6 + $0x1350] sm:$0xff]
    %v719 = vld [vmem:[#allocation6 + $0x1358] sm:$0xff]
    %v720 = vld [vmem:[#allocation6 + $0x1360] sm:$0xff]
    %v721 = vld [vmem:[#allocation6 + $0x1368] sm:$0xff]
    %v722 = vld [vmem:[#allocation6 + $0x1370] sm:$0xff]
    %v723 = vld [vmem:[#allocation6 + $0x1378] sm:$0xff]
    %v724 = vld [vmem:[#allocation6 + $0x1380] sm:$0xff]
    %v725 = vld [vmem:[#allocation6 + $0x1388] sm:$0xff]
    %v726 = vld [vmem:[#allocation6 + $0x1390] sm:$0xff]
    %v727 = vld [vmem:[#allocation6 + $0x1398] sm:$0xff]
    %v728 = vld [vmem:[#allocation6 + $0x13a0] sm:$0xff]
    %v729 = vld [vmem:[#allocation6 + $0x13a8] sm:$0xff]
    %v730 = vld [vmem:[#allocation6 + $0x13b0] sm:$0xff]
    %v731 = vld [vmem:[#allocation6 + $0x13b8] sm:$0xff]
    %v732 = vld [vmem:[#allocation6 + $0x13c0] sm:$0xff]
    %v733 = vld [vmem:[#allocation6 + $0x13c8] sm:$0xff]
    %v734 = vld [vmem:[#allocation6 + $0x13d0] sm:$0xff]
    %v735 = vld [vmem:[#allocation6 + $0x13d8] sm:$0xff]
    %v736 = vld [vmem:[#allocation6 + $0x13e0] sm:$0xff]
    %v737 = vld [vmem:[#allocation6 + $0x13e8] sm:$0xff]
    %v738 = vld [vmem:[#allocation6 + $0x13f0] sm:$0xff]
    %v739 = vld [vmem:[#allocation6 + $0x13f8] sm:$0xff]
    %v740 = vld [vmem:[#allocation6 + $0x1400] sm:$0xff]
    %v741 = vld [vmem:[#allocation6 + $0x1408] sm:$0xff]
    %v742 = vld [vmem:[#allocation6 + $0x1410] sm:$0xff]
    %v743 = vld [vmem:[#allocation6 + $0x1418] sm:$0xff]
    %v744 = vld [vmem:[#allocation6 + $0x1420] sm:$0xff]
    %v745 = vld [vmem:[#allocation6 + $0x1428] sm:$0xff]
    %v746 = vld [vmem:[#allocation6 + $0x1430] sm:$0xff]
    %v747 = vld [vmem:[#allocation6 + $0x1438] sm:$0xff]
    %v748 = vld [vmem:[#allocation6 + $0x1440] sm:$0xff]
    %v749 = vld [vmem:[#allocation6 + $0x1448] sm:$0xff]
    %v750 = vld [vmem:[#allocation6 + $0x1450] sm:$0xff]
    %v751 = vld [vmem:[#allocation6 + $0x1458] sm:$0xff]
    %v752 = vld [vmem:[#allocation6 + $0x1460] sm:$0xff]
    %v753 = vld [vmem:[#allocation6 + $0x1468] sm:$0xff]
    %v754 = vld [vmem:[#allocation6 + $0x1470] sm:$0xff]
    %v755 = vld [vmem:[#allocation6 + $0x1478] sm:$0xff]
    %v756 = vld [vmem:[#allocation6 + $0x1480] sm:$0xff]
    %v757 = vld [vmem:[#allocation6 + $0x1488] sm:$0xff]
    %v758 = vld [vmem:[#allocation6 + $0x1490] sm:$0xff]
    %v759 = vld [vmem:[#allocation6 + $0x1498] sm:$0xff]
    %v760 = vld [vmem:[#allocation6 + $0x14a0] sm:$0xff]
    %v761 = vld [vmem:[#allocation6 + $0x14a8] sm:$0xff]
    %v762 = vld [vmem:[#allocation6 + $0x14b0] sm:$0xff]
    %v763 = vld [vmem:[#allocation6 + $0x14b8] sm:$0xff]
    %v764 = vld [vmem:[#allocation6 + $0x14c0] sm:$0xff]
    %v765 = vld [vmem:[#allocation6 + $0x14c8] sm:$0xff]
    %v766 = vld [vmem:[#allocation6 + $0x14d0] sm:$0xff]
    %v767 = vld [vmem:[#allocation6 + $0x14d8] sm:$0xff]
    %v768 = vld [vmem:[#allocation6 + $0x14e0] sm:$0xff]
    %v769 = vld [vmem:[#allocation6 + $0x14e8] sm:$0xff]
    %v770 = vld [vmem:[#allocation6 + $0x14f0] sm:$0xff]
    %v771 = vld [vmem:[#allocation6 + $0x14f8] sm:$0xff]
    %v772 = vld [vmem:[#allocation6 + $0x1500] sm:$0xff]
    %v773 = vld [vmem:[#allocation6 + $0x1508] sm:$0xff]
    %v774 = vld [vmem:[#allocation6 + $0x1510] sm:$0xff]
    %v775 = vld [vmem:[#allocation6 + $0x1518] sm:$0xff]
    %v776 = vld [vmem:[#allocation6 + $0x1520] sm:$0xff]
    %v777 = vld [vmem:[#allocation6 + $0x1528] sm:$0xff]
    %v778 = vld [vmem:[#allocation6 + $0x1530] sm:$0xff]
    %v779 = vld [vmem:[#allocation6 + $0x1538] sm:$0xff]
    %v780 = vld [vmem:[#allocation6 + $0x1540] sm:$0xff]
    %v781 = vld [vmem:[#allocation6 + $0x1548] sm:$0xff]
    %v782 = vld [vmem:[#allocation6 + $0x1550] sm:$0xff]
    %v783 = vld [vmem:[#allocation6 + $0x1558] sm:$0xff]
    %v784 = vld [vmem:[#allocation6 + $0x1560] sm:$0xff]
    %v785 = vld [vmem:[#allocation6 + $0x1568] sm:$0xff]
    %v786 = vld [vmem:[#allocation6 + $0x1570] sm:$0xff]
    %v787 = vld [vmem:[#allocation6 + $0x1578] sm:$0xff]
    %v788 = vld [vmem:[#allocation6 + $0x1580] sm:$0xff]
    %v789 = vld [vmem:[#allocation6 + $0x1588] sm:$0xff]
    %v790 = vld [vmem:[#allocation6 + $0x1590] sm:$0xff]
    %v791 = vld [vmem:[#allocation6 + $0x1598] sm:$0xff]
    %v792 = vld [vmem:[#allocation6 + $0x15a0] sm:$0xff]
    %v793 = vld [vmem:[#allocation6 + $0x15a8] sm:$0xff]
    %v794 = vld [vmem:[#allocation6 + $0x15b0] sm:$0xff]
    %v795 = vld [vmem:[#allocation6 + $0x15b8] sm:$0xff]
    %v796 = vld [vmem:[#allocation6 + $0x15c0] sm:$0xff]
    %v797 = vld [vmem:[#allocation6 + $0x15c8] sm:$0xff]
    %v798 = vld [vmem:[#allocation6 + $0x15d0] sm:$0xff]
    %v799 = vld [vmem:[#allocation6 + $0x15d8] sm:$0xff]
    %v800 = vld [vmem:[#allocation6 + $0x15e0] sm:$0xff]
    %v801 = vld [vmem:[#allocation6 + $0x15e8] sm:$0xff]
    %v802 = vld [vmem:[#allocation6 + $0x15f0] sm:$0xff]
    %v803 = vld [vmem:[#allocation6 + $0x15f8] sm:$0xff]
    %v804 = vld [vmem:[#allocation6 + $0x1600] sm:$0xff]
    %v805 = vld [vmem:[#allocation6 + $0x1608] sm:$0xff]
    %v806 = vld [vmem:[#allocation6 + $0x1610] sm:$0xff]
    %v807 = vld [vmem:[#allocation6 + $0x1618] sm:$0xff]
    %v808 = vld [vmem:[#allocation6 + $0x1620] sm:$0xff]
    %v809 = vld [vmem:[#allocation6 + $0x1628] sm:$0xff]
    %v810 = vld [vmem:[#allocation6 + $0x1630] sm:$0xff]
    %v811 = vld [vmem:[#allocation6 + $0x1638] sm:$0xff]
    %v812 = vld [vmem:[#allocation6 + $0x1640] sm:$0xff]
    %v813 = vld [vmem:[#allocation6 + $0x1648] sm:$0xff]
    %v814 = vld [vmem:[#allocation6 + $0x1650] sm:$0xff]
    %v815 = vld [vmem:[#allocation6 + $0x1658] sm:$0xff]
    %v816 = vld [vmem:[#allocation6 + $0x1660] sm:$0xff]
    %v817 = vld [vmem:[#allocation6 + $0x1668] sm:$0xff]
    %v818 = vld [vmem:[#allocation6 + $0x1670] sm:$0xff]
    %v819 = vld [vmem:[#allocation6 + $0x1678] sm:$0xff]
    %v820 = vld [vmem:[#allocation6 + $0x1680] sm:$0xff]
    %v821 = vld [vmem:[#allocation6 + $0x1688] sm:$0xff]
    %v822 = vld [vmem:[#allocation6 + $0x1690] sm:$0xff]
    %v823 = vld [vmem:[#allocation6 + $0x1698] sm:$0xff]
    %v824 = vld [vmem:[#allocation6 + $0x16a0] sm:$0xff]
    %v825 = vld [vmem:[#allocation6 + $0x16a8] sm:$0xff]
    %v826 = vld [vmem:[#allocation6 + $0x16b0] sm:$0xff]
    %v827 = vld [vmem:[#allocation6 + $0x16b8] sm:$0xff]
    %v828 = vld [vmem:[#allocation6 + $0x16c0] sm:$0xff]
    %v829 = vld [vmem:[#allocation6 + $0x16c8] sm:$0xff]
    %v830 = vld [vmem:[#allocation6 + $0x16d0] sm:$0xff]
    %v831 = vld [vmem:[#allocation6 + $0x16d8] sm:$0xff]
    %v832 = vld [vmem:[#allocation6 + $0x16e0] sm:$0xff]
    %v833 = vld [vmem:[#allocation6 + $0x16e8] sm:$0xff]
    %v834 = vld [vmem:[#allocation6 + $0x16f0] sm:$0xff]
    %v835 = vld [vmem:[#allocation6 + $0x16f8] sm:$0xff]
    %v836 = vld [vmem:[#allocation6 + $0x1700] sm:$0xff]
    %v837 = vld [vmem:[#allocation6 + $0x1708] sm:$0xff]
    %v838 = vld [vmem:[#allocation6 + $0x1710] sm:$0xff]
    %v839 = vld [vmem:[#allocation6 + $0x1718] sm:$0xff]
    %v840 = vld [vmem:[#allocation6 + $0x1720] sm:$0xff]
    %v841 = vld [vmem:[#allocation6 + $0x1728] sm:$0xff]
    %v842 = vld [vmem:[#allocation6 + $0x1730] sm:$0xff]
    %v843 = vld [vmem:[#allocation6 + $0x1738] sm:$0xff]
    %v844 = vld [vmem:[#allocation6 + $0x1740] sm:$0xff]
    %v845 = vld [vmem:[#allocation6 + $0x1748] sm:$0xff]
    %v846 = vld [vmem:[#allocation6 + $0x1750] sm:$0xff]
    %v847 = vld [vmem:[#allocation6 + $0x1758] sm:$0xff]
    %v848 = vld [vmem:[#allocation6 + $0x1760] sm:$0xff]
    %v849 = vld [vmem:[#allocation6 + $0x1768] sm:$0xff]
    %v850 = vld [vmem:[#allocation6 + $0x1770] sm:$0xff]
    %v851 = vld [vmem:[#allocation6 + $0x1778] sm:$0xff]
    %v852 = vld [vmem:[#allocation6 + $0x1780] sm:$0xff]
    %v853 = vld [vmem:[#allocation6 + $0x1788] sm:$0xff]
    %v854 = vld [vmem:[#allocation6 + $0x1790] sm:$0xff]
    %v855 = vld [vmem:[#allocation6 + $0x1798] sm:$0xff]
    %v856 = vld [vmem:[#allocation6 + $0x17a0] sm:$0xff]
    %v857 = vld [vmem:[#allocation6 + $0x17a8] sm:$0xff]
    %v858 = vld [vmem:[#allocation6 + $0x17b0] sm:$0xff]
    %v859 = vld [vmem:[#allocation6 + $0x17b8] sm:$0xff]
    %v860 = vld [vmem:[#allocation6 + $0x17c0] sm:$0xff]
    %v861 = vld [vmem:[#allocation6 + $0x17c8] sm:$0xff]
    %v862 = vld [vmem:[#allocation6 + $0x17d0] sm:$0xff]
    %v863 = vld [vmem:[#allocation6 + $0x17d8] sm:$0xff]
    %v864 = vld [vmem:[#allocation6 + $0x17e0] sm:$0xff]
    %v865 = vld [vmem:[#allocation6 + $0x17e8] sm:$0xff]
    %v866 = vld [vmem:[#allocation6 + $0x17f0] sm:$0xff]
    %v867 = vld [vmem:[#allocation6 + $0x17f8] sm:$0xff]
    %v868 = vld [vmem:[#allocation6 + $0x1800] sm:$0xff]
    %v869 = vld [vmem:[#allocation6 + $0x1808] sm:$0xff]
    %v870 = vld [vmem:[#allocation6 + $0x1810] sm:$0xff]
    %v871 = vld [vmem:[#allocation6 + $0x1818] sm:$0xff]
    %v872 = vld [vmem:[#allocation6 + $0x1820] sm:$0xff]
    %v873 = vld [vmem:[#allocation6 + $0x1828] sm:$0xff]
    %v874 = vld [vmem:[#allocation6 + $0x1830] sm:$0xff]
    %v875 = vld [vmem:[#allocation6 + $0x1838] sm:$0xff]
    %v876 = vld [vmem:[#allocation6 + $0x1840] sm:$0xff]
    %v877 = vld [vmem:[#allocation6 + $0x1848] sm:$0xff]
    %v878 = vld [vmem:[#allocation6 + $0x1850] sm:$0xff]
    %v879 = vld [vmem:[#allocation6 + $0x1858] sm:$0xff]
    %v880 = vld [vmem:[#allocation6 + $0x1860] sm:$0xff]
    %v881 = vld [vmem:[#allocation6 + $0x1868] sm:$0xff]
    %v882 = vld [vmem:[#allocation6 + $0x1870] sm:$0xff]
    %v883 = vld [vmem:[#allocation6 + $0x1878] sm:$0xff]
    %v884 = vld [vmem:[#allocation6 + $0x1880] sm:$0xff]
    %v885 = vld [vmem:[#allocation6 + $0x1888] sm:$0xff]
    %v886 = vld [vmem:[#allocation6 + $0x1890] sm:$0xff]
    %v887 = vld [vmem:[#allocation6 + $0x1898] sm:$0xff]
    %v888 = vld [vmem:[#allocation6 + $0x18a0] sm:$0xff]
    %v889 = vld [vmem:[#allocation6 + $0x18a8] sm:$0xff]
    %v890 = vld [vmem:[#allocation6 + $0x18b0] sm:$0xff]
    %v891 = vld [vmem:[#allocation6 + $0x18b8] sm:$0xff]
    %v892 = vld [vmem:[#allocation6 + $0x18c0] sm:$0xff]
    %v893 = vld [vmem:[#allocation6 + $0x18c8] sm:$0xff]
    %v894 = vld [vmem:[#allocation6 + $0x18d0] sm:$0xff]
    %v895 = vld [vmem:[#allocation6 + $0x18d8] sm:$0xff]
    %v896 = vld [vmem:[#allocation6 + $0x18e0] sm:$0xff]
    %v897 = vld [vmem:[#allocation6 + $0x18e8] sm:$0xff]
    %v898 = vld [vmem:[#allocation6 + $0x18f0] sm:$0xff]
    %v899 = vld [vmem:[#allocation6 + $0x18f8] sm:$0xff]
    %v900 = vld [vmem:[#allocation6 + $0x1900] sm:$0xff]
    %v901 = vld [vmem:[#allocation6 + $0x1908] sm:$0xff]
    %v902 = vld [vmem:[#allocation6 + $0x1910] sm:$0xff]
    %v903 = vld [vmem:[#allocation6 + $0x1918] sm:$0xff]
    %v904 = vld [vmem:[#allocation6 + $0x1920] sm:$0xff]
    %v905 = vld [vmem:[#allocation6 + $0x1928] sm:$0xff]
    %v906 = vld [vmem:[#allocation6 + $0x1930] sm:$0xff]
    %v907 = vld [vmem:[#allocation6 + $0x1938] sm:$0xff]
    %v908 = vld [vmem:[#allocation6 + $0x1940] sm:$0xff]
    %v909 = vld [vmem:[#allocation6 + $0x1948] sm:$0xff]
    %v910 = vld [vmem:[#allocation6 + $0x1950] sm:$0xff]
    %v911 = vld [vmem:[#allocation6 + $0x1958] sm:$0xff]
    %v912 = vld [vmem:[#allocation6 + $0x1960] sm:$0xff]
    %v913 = vld [vmem:[#allocation6 + $0x1968] sm:$0xff]
    %v914 = vld [vmem:[#allocation6 + $0x1970] sm:$0xff]
    %v915 = vld [vmem:[#allocation6 + $0x1978] sm:$0xff]
    %v916 = vld [vmem:[#allocation6 + $0x1980] sm:$0xff]
    %v917 = vld [vmem:[#allocation6 + $0x1988] sm:$0xff]
    %v918 = vld [vmem:[#allocation6 + $0x1990] sm:$0xff]
    %v919 = vld [vmem:[#allocation6 + $0x1998] sm:$0xff]
    %v920 = vld [vmem:[#allocation6 + $0x19a0] sm:$0xff]
    %v921 = vld [vmem:[#allocation6 + $0x19a8] sm:$0xff]
    %v922 = vld [vmem:[#allocation6 + $0x19b0] sm:$0xff]
    %v923 = vld [vmem:[#allocation6 + $0x19b8] sm:$0xff]
    %v924 = vld [vmem:[#allocation6 + $0x19c0] sm:$0xff]
    %v925 = vld [vmem:[#allocation6 + $0x19c8] sm:$0xff]
    %v926 = vld [vmem:[#allocation6 + $0x19d0] sm:$0xff]
    %v927 = vld [vmem:[#allocation6 + $0x19d8] sm:$0xff]
    %v928 = vld [vmem:[#allocation6 + $0x19e0] sm:$0xff]
    %v929 = vld [vmem:[#allocation6 + $0x19e8] sm:$0xff]
    %v930 = vld [vmem:[#allocation6 + $0x19f0] sm:$0xff]
    %v931 = vld [vmem:[#allocation6 + $0x19f8] sm:$0xff]
    %v932 = vld [vmem:[#allocation6 + $0x1a00] sm:$0xff]
    %v933 = vld [vmem:[#allocation6 + $0x1a08] sm:$0xff]
    %v934 = vld [vmem:[#allocation6 + $0x1a10] sm:$0xff]
    %v935 = vld [vmem:[#allocation6 + $0x1a18] sm:$0xff]
    %v936 = vld [vmem:[#allocation6 + $0x1a20] sm:$0xff]
    %v937 = vld [vmem:[#allocation6 + $0x1a28] sm:$0xff]
    %v938 = vld [vmem:[#allocation6 + $0x1a30] sm:$0xff]
    %v939 = vld [vmem:[#allocation6 + $0x1a38] sm:$0xff]
    %v940 = vld [vmem:[#allocation6 + $0x1a40] sm:$0xff]
    %v941 = vld [vmem:[#allocation6 + $0x1a48] sm:$0xff]
    %v942 = vld [vmem:[#allocation6 + $0x1a50] sm:$0xff]
    %v943 = vld [vmem:[#allocation6 + $0x1a58] sm:$0xff]
    %v944 = vld [vmem:[#allocation6 + $0x1a60] sm:$0xff]
    %v945 = vld [vmem:[#allocation6 + $0x1a68] sm:$0xff]
    %v946 = vld [vmem:[#allocation6 + $0x1a70] sm:$0xff]
    %v947 = vld [vmem:[#allocation6 + $0x1a78] sm:$0xff]
    %v948 = vld [vmem:[#allocation6 + $0x1a80] sm:$0xff]
    %v949 = vld [vmem:[#allocation6 + $0x1a88] sm:$0xff]
    %v950 = vld [vmem:[#allocation6 + $0x1a90] sm:$0xff]
    %v951 = vld [vmem:[#allocation6 + $0x1a98] sm:$0xff]
    %v952 = vld [vmem:[#allocation6 + $0x1aa0] sm:$0xff]
    %v953 = vld [vmem:[#allocation6 + $0x1aa8] sm:$0xff]
    %v954 = vld [vmem:[#allocation6 + $0x1ab0] sm:$0xff]
    %v955 = vld [vmem:[#allocation6 + $0x1ab8] sm:$0xff]
    %v956 = vld [vmem:[#allocation6 + $0x1ac0] sm:$0xff]
    %v957 = vld [vmem:[#allocation6 + $0x1ac8] sm:$0xff]
    %v958 = vld [vmem:[#allocation6 + $0x1ad0] sm:$0xff]
    %v959 = vld [vmem:[#allocation6 + $0x1ad8] sm:$0xff]
    %v960 = vld [vmem:[#allocation6 + $0x1ae0] sm:$0xff]
    %v961 = vld [vmem:[#allocation6 + $0x1ae8] sm:$0xff]
    %v962 = vld [vmem:[#allocation6 + $0x1af0] sm:$0xff]
    %v963 = vld [vmem:[#allocation6 + $0x1af8] sm:$0xff]
    %v964 = vld [vmem:[#allocation6 + $0x1b00] sm:$0xff]
    %v965 = vld [vmem:[#allocation6 + $0x1b08] sm:$0xff]
    %v966 = vld [vmem:[#allocation6 + $0x1b10] sm:$0xff]
    %v967 = vld [vmem:[#allocation6 + $0x1b18] sm:$0xff]
    %v968 = vld [vmem:[#allocation6 + $0x1b20] sm:$0xff]
    %v969 = vld [vmem:[#allocation6 + $0x1b28] sm:$0xff]
    %v970 = vld [vmem:[#allocation6 + $0x1b30] sm:$0xff]
    %v971 = vld [vmem:[#allocation6 + $0x1b38] sm:$0xff]
    %v972 = vld [vmem:[#allocation6 + $0x1b40] sm:$0xff]
    %v973 = vld [vmem:[#allocation6 + $0x1b48] sm:$0xff]
    %v974 = vld [vmem:[#allocation6 + $0x1b50] sm:$0xff]
    %v975 = vld [vmem:[#allocation6 + $0x1b58] sm:$0xff]
    %v976 = vld [vmem:[#allocation6 + $0x1b60] sm:$0xff]
    %v977 = vld [vmem:[#allocation6 + $0x1b68] sm:$0xff]
    %v978 = vld [vmem:[#allocation6 + $0x1b70] sm:$0xff]
    %v979 = vld [vmem:[#allocation6 + $0x1b78] sm:$0xff]
    %v980 = vld [vmem:[#allocation6 + $0x1b80] sm:$0xff]
    %v981 = vld [vmem:[#allocation6 + $0x1b88] sm:$0xff]
    %v982 = vld [vmem:[#allocation6 + $0x1b90] sm:$0xff]
    %v983 = vld [vmem:[#allocation6 + $0x1b98] sm:$0xff]
    %v984 = vld [vmem:[#allocation6 + $0x1ba0] sm:$0xff]
    %v985 = vld [vmem:[#allocation6 + $0x1ba8] sm:$0xff]
    %v986 = vld [vmem:[#allocation6 + $0x1bb0] sm:$0xff]
    %v987 = vld [vmem:[#allocation6 + $0x1bb8] sm:$0xff]
    %v988 = vld [vmem:[#allocation6 + $0x1bc0] sm:$0xff]
    %v989 = vld [vmem:[#allocation6 + $0x1bc8] sm:$0xff]
    %v990 = vld [vmem:[#allocation6 + $0x1bd0] sm:$0xff]
    %v991 = vld [vmem:[#allocation6 + $0x1bd8] sm:$0xff]
    %v992 = vld [vmem:[#allocation6 + $0x1be0] sm:$0xff]
    %v993 = vld [vmem:[#allocation6 + $0x1be8] sm:$0xff]
    %v994 = vld [vmem:[#allocation6 + $0x1bf0] sm:$0xff]
    %v995 = vld [vmem:[#allocation6 + $0x1bf8] sm:$0xff]
    %v996 = vld [vmem:[#allocation8] sm:$0xff]
    %v998 = vperm.slane %v996, 0
    %v999 = vperm.slane %v996, 1
    %v1000 = vperm.slane %v996, 2
    %v1001 = vperm.slane %v996, 3
    %v1002 = vperm.slane %v996, 4
    %v1003 = vperm.slane %v996, 5
    %v1004 = vperm.slane %v996, 6
    %v1005 = vperm.slane %v996, 7
    %1014 = vmatpush.msra.mxu0 %v220
    %1015 = vmatpush.msra.mxu0 %v212
    %1016 = vmatpush.msra.mxu0 %v204
    %1017 = vmatpush.msra.mxu0 %v196
    %1018 = vmatpush.msra.mxu0 %v188
    %1019 = vmatpush.msra.mxu0 %v180
    %1020 = vmatpush.msra.mxu0 %v172
    %1021 = vmatpush.msra.mxu0 %v164
    %1022 = vmatpush.msra.mxu0 %v156
    %1023 = vmatpush.msra.mxu0 %v148
    %1024 = vmatpush.msra.mxu0 %v140
    %1025 = vmatpush.msra.mxu0 %v132
    %1026 = vmatpush.msra.mxu0 %v124
    %1027 = vmatpush.msra.mxu0 %v116
    %1028 = vmatpush.msra.mxu0 %v108
    %1029 = vmatpush.msra.mxu0 %v100
    %1030 = vmatmul.f32.gmra.mxu0 %v93
    %v1031 = vpop.f32.mrf.mxu0
    %v1032 = vadd.f32 %v998, %v1031
    %1033 = vdwg.mxu0
    %1034 = vmatpush.msra.mxu0 %v348
    %1035 = vmatpush.msra.mxu0 %v340
    %1036 = vmatpush.msra.mxu0 %v332
    %1037 = vmatpush.msra.mxu0 %v324
    %1038 = vmatpush.msra.mxu0 %v316
    %1039 = vmatpush.msra.mxu0 %v308
    %1040 = vmatpush.msra.mxu0 %v300
    %1041 = vmatpush.msra.mxu0 %v292
    %1042 = vmatpush.msra.mxu0 %v284
    %1043 = vmatpush.msra.mxu0 %v276
    %1044 = vmatpush.msra.mxu0 %v268
    %1045 = vmatpush.msra.mxu0 %v260
    %1046 = vmatpush.msra.mxu0 %v252
    %1047 = vmatpush.msra.mxu0 %v244
    %1048 = vmatpush.msra.mxu0 %v236
    %1049 = vmatpush.msra.mxu0 %v228
    %1050 = vmatmul.f32.gmra.mxu0 %v94
    %v1051 = vpop.f32.mrf.mxu0
    %v1052 = vadd.f32 %v1032, %v1051
    %1053 = vdwg.mxu0
    %1054 = vmatpush.msra.mxu0 %v476
    %1055 = vmatpush.msra.mxu0 %v468
    %1056 = vmatpush.msra.mxu0 %v460
    %1057 = vmatpush.msra.mxu0 %v452
    %1058 = vmatpush.msra.mxu0 %v444
    %1059 = vmatpush.msra.mxu0 %v436
    %1060 = vmatpush.msra.mxu0 %v428
    %1061 = vmatpush.msra.mxu0 %v420
    %1062 = vmatpush.msra.mxu0 %v412
    %1063 = vmatpush.msra.mxu0 %v404
    %1064 = vmatpush.msra.mxu0 %v396
    %1065 = vmatpush.msra.mxu0 %v388
    %1066 = vmatpush.msra.mxu0 %v380
    %1067 = vmatpush.msra.mxu0 %v372
    %1068 = vmatpush.msra.mxu0 %v364
    %1069 = vmatpush.msra.mxu0 %v356
    %1070 = vmatmul.f32.gmra.mxu0 %v95
    %v1071 = vpop.f32.mrf.mxu0
    %v1072 = vadd.f32 %v1052, %v1071
    %1073 = vdwg.mxu0
    %1074 = vmatpush.msra.mxu0 %v604
    %1075 = vmatpush.msra.mxu0 %v596
    %1076 = vmatpush.msra.mxu0 %v588
    %1077 = vmatpush.msra.mxu0 %v580
    %1078 = vmatpush.msra.mxu0 %v572
    %1079 = vmatpush.msra.mxu0 %v564
    %1080 = vmatpush.msra.mxu0 %v556
    %1081 = vmatpush.msra.mxu0 %v548
    %1082 = vmatpush.msra.mxu0 %v540
    %1083 = vmatpush.msra.mxu0 %v532
    %1084 = vmatpush.msra.mxu0 %v524
    %1085 = vmatpush.msra.mxu0 %v516
    %1086 = vmatpush.msra.mxu0 %v508
    %1087 = vmatpush.msra.mxu0 %v500
    %1088 = vmatpush.msra.mxu0 %v492
    %1089 = vmatpush.msra.mxu0 %v484
    %1090 = vmatmul.f32.gmra.mxu0 %v96
    %v1091 = vpop.f32.mrf.mxu0
    %v1092 = vadd.f32 %v1072, %v1091
    %1093 = vdwg.mxu0
    %1094 = vmatpush.msra.mxu0 %v732
    %1095 = vmatpush.msra.mxu0 %v724
    %1096 = vmatpush.msra.mxu0 %v716
    %1097 = vmatpush.msra.mxu0 %v708
    %1098 = vmatpush.msra.mxu0 %v700
    %1099 = vmatpush.msra.mxu0 %v692
    %1100 = vmatpush.msra.mxu0 %v684
    %1101 = vmatpush.msra.mxu0 %v676
    %1102 = vmatpush.msra.mxu0 %v668
    %1103 = vmatpush.msra.mxu0 %v660
    %1104 = vmatpush.msra.mxu0 %v652
    %1105 = vmatpush.msra.mxu0 %v644
    %1106 = vmatpush.msra.mxu0 %v636
    %1107 = vmatpush.msra.mxu0 %v628
    %1108 = vmatpush.msra.mxu0 %v620
    %1109 = vmatpush.msra.mxu0 %v612
    %1110 = vmatmul.f32.gmra.mxu0 %v97
    %v1111 = vpop.f32.mrf.mxu0
    %v1112 = vadd.f32 %v1092, %v1111
    %1113 = vdwg.mxu0
    %1114 = vmatpush.msra.mxu0 %v860
    %1115 = vmatpush.msra.mxu0 %v852
    %1116 = vmatpush.msra.mxu0 %v844
    %1117 = vmatpush.msra.mxu0 %v836
    %1118 = vmatpush.msra.mxu0 %v828
    %1119 = vmatpush.msra.mxu0 %v820
    %1120 = vmatpush.msra.mxu0 %v812
    %1121 = vmatpush.msra.mxu0 %v804
    %1122 = vmatpush.msra.mxu0 %v796
    %1123 = vmatpush.msra.mxu0 %v788
    %1124 = vmatpush.msra.mxu0 %v780
    %1125 = vmatpush.msra.mxu0 %v772
    %1126 = vmatpush.msra.mxu0 %v764
    %1127 = vmatpush.msra.mxu0 %v756
    %1128 = vmatpush.msra.mxu0 %v748
    %1129 = vmatpush.msra.mxu0 %v740
    %1130 = vmatmul.f32.gmra.mxu0 %v98
    %v1131 = vpop.f32.mrf.mxu0
    %v1132 = vadd.f32 %v1112, %v1131
    %1133 = vdwg.mxu0
    %1134 = vmatpush.msra.mxu0 %v988
    %1135 = vmatpush.msra.mxu0 %v980
    %1136 = vmatpush.msra.mxu0 %v972
    %1137 = vmatpush.msra.mxu0 %v964
    %1138 = vmatpush.msra.mxu0 %v956
    %1139 = vmatpush.msra.mxu0 %v948
    %1140 = vmatpush.msra.mxu0 %v940
    %1141 = vmatpush.msra.mxu0 %v932
    %1142 = vmatpush.msra.mxu0 %v924
    %1143 = vmatpush.msra.mxu0 %v916
    %1144 = vmatpush.msra.mxu0 %v908
    %1145 = vmatpush.msra.mxu0 %v900
    %1146 = vmatpush.msra.mxu0 %v892
    %1147 = vmatpush.msra.mxu0 %v884
    %1148 = vmatpush.msra.mxu0 %v876
    %1149 = vmatpush.msra.mxu0 %v868
    %1150 = vmatmul.f32.gmra.mxu0 %v99
    %v1151 = vpop.f32.mrf.mxu0
    %v1152 = vadd.f32 %v1132, %v1151
    %1153 = vdwg.mxu0
    %1154 = vmatpush.msra.mxu0 %v221
    %1155 = vmatpush.msra.mxu0 %v213
    %1156 = vmatpush.msra.mxu0 %v205
    %1157 = vmatpush.msra.mxu0 %v197
    %1158 = vmatpush.msra.mxu0 %v189
    %1159 = vmatpush.msra.mxu0 %v181
    %1160 = vmatpush.msra.mxu0 %v173
    %1161 = vmatpush.msra.mxu0 %v165
    %1162 = vmatpush.msra.mxu0 %v157
    %1163 = vmatpush.msra.mxu0 %v149
    %1164 = vmatpush.msra.mxu0 %v141
    %1165 = vmatpush.msra.mxu0 %v133
    %1166 = vmatpush.msra.mxu0 %v125
    %1167 = vmatpush.msra.mxu0 %v117
    %1168 = vmatpush.msra.mxu0 %v109
    %1169 = vmatpush.msra.mxu0 %v101
    %1170 = vmatmul.f32.gmra.mxu0 %v93
    %v1171 = vpop.f32.mrf.mxu0
    %v1172 = vadd.f32 %v999, %v1171
    %1173 = vdwg.mxu0
    %1174 = vmatpush.msra.mxu0 %v349
    %1175 = vmatpush.msra.mxu0 %v341
    %1176 = vmatpush.msra.mxu0 %v333
    %1177 = vmatpush.msra.mxu0 %v325
    %1178 = vmatpush.msra.mxu0 %v317
    %1179 = vmatpush.msra.mxu0 %v309
    %1180 = vmatpush.msra.mxu0 %v301
    %1181 = vmatpush.msra.mxu0 %v293
    %1182 = vmatpush.msra.mxu0 %v285
    %1183 = vmatpush.msra.mxu0 %v277
    %1184 = vmatpush.msra.mxu0 %v269
    %1185 = vmatpush.msra.mxu0 %v261
    %1186 = vmatpush.msra.mxu0 %v253
    %1187 = vmatpush.msra.mxu0 %v245
    %1188 = vmatpush.msra.mxu0 %v237
    %1189 = vmatpush.msra.mxu0 %v229
    %1190 = vmatmul.f32.gmra.mxu0 %v94
    %v1191 = vpop.f32.mrf.mxu0
    %v1192 = vadd.f32 %v1172, %v1191
    %1193 = vdwg.mxu0
    %1194 = vmatpush.msra.mxu0 %v477
    %1195 = vmatpush.msra.mxu0 %v469
    %1196 = vmatpush.msra.mxu0 %v461
    %1197 = vmatpush.msra.mxu0 %v453
    %1198 = vmatpush.msra.mxu0 %v445
    %1199 = vmatpush.msra.mxu0 %v437
    %1200 = vmatpush.msra.mxu0 %v429
    %1201 = vmatpush.msra.mxu0 %v421
    %1202 = vmatpush.msra.mxu0 %v413
    %1203 = vmatpush.msra.mxu0 %v405
    %1204 = vmatpush.msra.mxu0 %v397
    %1205 = vmatpush.msra.mxu0 %v389
    %1206 = vmatpush.msra.mxu0 %v381
    %1207 = vmatpush.msra.mxu0 %v373
    %1208 = vmatpush.msra.mxu0 %v365
    %1209 = vmatpush.msra.mxu0 %v357
    %1210 = vmatmul.f32.gmra.mxu0 %v95
    %v1211 = vpop.f32.mrf.mxu0
    %v1212 = vadd.f32 %v1192, %v1211
    %1213 = vdwg.mxu0
    %1214 = vmatpush.msra.mxu0 %v605
    %1215 = vmatpush.msra.mxu0 %v597
    %1216 = vmatpush.msra.mxu0 %v589
    %1217 = vmatpush.msra.mxu0 %v581
    %1218 = vmatpush.msra.mxu0 %v573
    %1219 = vmatpush.msra.mxu0 %v565
    %1220 = vmatpush.msra.mxu0 %v557
    %1221 = vmatpush.msra.mxu0 %v549
    %1222 = vmatpush.msra.mxu0 %v541
    %1223 = vmatpush.msra.mxu0 %v533
    %1224 = vmatpush.msra.mxu0 %v525
    %1225 = vmatpush.msra.mxu0 %v517
    %1226 = vmatpush.msra.mxu0 %v509
    %1227 = vmatpush.msra.mxu0 %v501
    %1228 = vmatpush.msra.mxu0 %v493
    %1229 = vmatpush.msra.mxu0 %v485
    %1230 = vmatmul.f32.gmra.mxu0 %v96
    %v1231 = vpop.f32.mrf.mxu0
    %v1232 = vadd.f32 %v1212, %v1231
    %1233 = vdwg.mxu0
    %1234 = vmatpush.msra.mxu0 %v733
    %1235 = vmatpush.msra.mxu0 %v725
    %1236 = vmatpush.msra.mxu0 %v717
    %1237 = vmatpush.msra.mxu0 %v709
    %1238 = vmatpush.msra.mxu0 %v701
    %1239 = vmatpush.msra.mxu0 %v693
    %1240 = vmatpush.msra.mxu0 %v685
    %1241 = vmatpush.msra.mxu0 %v677
    %1242 = vmatpush.msra.mxu0 %v669
    %1243 = vmatpush.msra.mxu0 %v661
    %1244 = vmatpush.msra.mxu0 %v653
    %1245 = vmatpush.msra.mxu0 %v645
    %1246 = vmatpush.msra.mxu0 %v637
    %1247 = vmatpush.msra.mxu0 %v629
    %1248 = vmatpush.msra.mxu0 %v621
    %1249 = vmatpush.msra.mxu0 %v613
    %1250 = vmatmul.f32.gmra.mxu0 %v97
    %v1251 = vpop.f32.mrf.mxu0
    %v1252 = vadd.f32 %v1232, %v1251
    %1253 = vdwg.mxu0
    %1254 = vmatpush.msra.mxu0 %v861
    %1255 = vmatpush.msra.mxu0 %v853
    %1256 = vmatpush.msra.mxu0 %v845
    %1257 = vmatpush.msra.mxu0 %v837
    %1258 = vmatpush.msra.mxu0 %v829
    %1259 = vmatpush.msra.mxu0 %v821
    %1260 = vmatpush.msra.mxu0 %v813
    %1261 = vmatpush.msra.mxu0 %v805
    %1262 = vmatpush.msra.mxu0 %v797
    %1263 = vmatpush.msra.mxu0 %v789
    %1264 = vmatpush.msra.mxu0 %v781
    %1265 = vmatpush.msra.mxu0 %v773
    %1266 = vmatpush.msra.mxu0 %v765
    %1267 = vmatpush.msra.mxu0 %v757
    %1268 = vmatpush.msra.mxu0 %v749
    %1269 = vmatpush.msra.mxu0 %v741
    %1270 = vmatmul.f32.gmra.mxu0 %v98
    %v1271 = vpop.f32.mrf.mxu0
    %v1272 = vadd.f32 %v1252, %v1271
    %1273 = vdwg.mxu0
    %1274 = vmatpush.msra.mxu0 %v989
    %1275 = vmatpush.msra.mxu0 %v981
    %1276 = vmatpush.msra.mxu0 %v973
    %1277 = vmatpush.msra.mxu0 %v965
    %1278 = vmatpush.msra.mxu0 %v957
    %1279 = vmatpush.msra.mxu0 %v949
    %1280 = vmatpush.msra.mxu0 %v941
    %1281 = vmatpush.msra.mxu0 %v933
    %1282 = vmatpush.msra.mxu0 %v925
    %1283 = vmatpush.msra.mxu0 %v917
    %1284 = vmatpush.msra.mxu0 %v909
    %1285 = vmatpush.msra.mxu0 %v901
    %1286 = vmatpush.msra.mxu0 %v893
    %1287 = vmatpush.msra.mxu0 %v885
    %1288 = vmatpush.msra.mxu0 %v877
    %1289 = vmatpush.msra.mxu0 %v869
    %1290 = vmatmul.f32.gmra.mxu0 %v99
    %v1291 = vpop.f32.mrf.mxu0
    %v1292 = vadd.f32 %v1272, %v1291
    %1293 = vdwg.mxu0
    %1294 = vmatpush.msra.mxu0 %v222
    %1295 = vmatpush.msra.mxu0 %v214
    %1296 = vmatpush.msra.mxu0 %v206
    %1297 = vmatpush.msra.mxu0 %v198
    %1298 = vmatpush.msra.mxu0 %v190
    %1299 = vmatpush.msra.mxu0 %v182
    %1300 = vmatpush.msra.mxu0 %v174
    %1301 = vmatpush.msra.mxu0 %v166
    %1302 = vmatpush.msra.mxu0 %v158
    %1303 = vmatpush.msra.mxu0 %v150
    %1304 = vmatpush.msra.mxu0 %v142
    %1305 = vmatpush.msra.mxu0 %v134
    %1306 = vmatpush.msra.mxu0 %v126
    %1307 = vmatpush.msra.mxu0 %v118
    %1308 = vmatpush.msra.mxu0 %v110
    %1309 = vmatpush.msra.mxu0 %v102
    %1310 = vmatmul.f32.gmra.mxu0 %v93
    %v1311 = vpop.f32.mrf.mxu0
    %v1312 = vadd.f32 %v1000, %v1311
    %1313 = vdwg.mxu0
    %1314 = vmatpush.msra.mxu0 %v350
    %1315 = vmatpush.msra.mxu0 %v342
    %1316 = vmatpush.msra.mxu0 %v334
    %1317 = vmatpush.msra.mxu0 %v326
    %1318 = vmatpush.msra.mxu0 %v318
    %1319 = vmatpush.msra.mxu0 %v310
    %1320 = vmatpush.msra.mxu0 %v302
    %1321 = vmatpush.msra.mxu0 %v294
    %1322 = vmatpush.msra.mxu0 %v286
    %1323 = vmatpush.msra.mxu0 %v278
    %1324 = vmatpush.msra.mxu0 %v270
    %1325 = vmatpush.msra.mxu0 %v262
    %1326 = vmatpush.msra.mxu0 %v254
    %1327 = vmatpush.msra.mxu0 %v246
    %1328 = vmatpush.msra.mxu0 %v238
    %1329 = vmatpush.msra.mxu0 %v230
    %1330 = vmatmul.f32.gmra.mxu0 %v94
    %v1331 = vpop.f32.mrf.mxu0
    %v1332 = vadd.f32 %v1312, %v1331
    %1333 = vdwg.mxu0
    %1334 = vmatpush.msra.mxu0 %v478
    %1335 = vmatpush.msra.mxu0 %v470
    %1336 = vmatpush.msra.mxu0 %v462
    %1337 = vmatpush.msra.mxu0 %v454
    %1338 = vmatpush.msra.mxu0 %v446
    %1339 = vmatpush.msra.mxu0 %v438
    %1340 = vmatpush.msra.mxu0 %v430
    %1341 = vmatpush.msra.mxu0 %v422
    %1342 = vmatpush.msra.mxu0 %v414
    %1343 = vmatpush.msra.mxu0 %v406
    %1344 = vmatpush.msra.mxu0 %v398
    %1345 = vmatpush.msra.mxu0 %v390
    %1346 = vmatpush.msra.mxu0 %v382
    %1347 = vmatpush.msra.mxu0 %v374
    %1348 = vmatpush.msra.mxu0 %v366
    %1349 = vmatpush.msra.mxu0 %v358
    %1350 = vmatmul.f32.gmra.mxu0 %v95
    %v1351 = vpop.f32.mrf.mxu0
    %v1352 = vadd.f32 %v1332, %v1351
    %1353 = vdwg.mxu0
    %1354 = vmatpush.msra.mxu0 %v606
    %1355 = vmatpush.msra.mxu0 %v598
    %1356 = vmatpush.msra.mxu0 %v590
    %1357 = vmatpush.msra.mxu0 %v582
    %1358 = vmatpush.msra.mxu0 %v574
    %1359 = vmatpush.msra.mxu0 %v566
    %1360 = vmatpush.msra.mxu0 %v558
    %1361 = vmatpush.msra.mxu0 %v550
    %1362 = vmatpush.msra.mxu0 %v542
    %1363 = vmatpush.msra.mxu0 %v534
    %1364 = vmatpush.msra.mxu0 %v526
    %1365 = vmatpush.msra.mxu0 %v518
    %1366 = vmatpush.msra.mxu0 %v510
    %1367 = vmatpush.msra.mxu0 %v502
    %1368 = vmatpush.msra.mxu0 %v494
    %1369 = vmatpush.msra.mxu0 %v486
    %1370 = vmatmul.f32.gmra.mxu0 %v96
    %v1371 = vpop.f32.mrf.mxu0
    %v1372 = vadd.f32 %v1352, %v1371
    %1373 = vdwg.mxu0
    %1374 = vmatpush.msra.mxu0 %v734
    %1375 = vmatpush.msra.mxu0 %v726
    %1376 = vmatpush.msra.mxu0 %v718
    %1377 = vmatpush.msra.mxu0 %v710
    %1378 = vmatpush.msra.mxu0 %v702
    %1379 = vmatpush.msra.mxu0 %v694
    %1380 = vmatpush.msra.mxu0 %v686
    %1381 = vmatpush.msra.mxu0 %v678
    %1382 = vmatpush.msra.mxu0 %v670
    %1383 = vmatpush.msra.mxu0 %v662
    %1384 = vmatpush.msra.mxu0 %v654
    %1385 = vmatpush.msra.mxu0 %v646
    %1386 = vmatpush.msra.mxu0 %v638
    %1387 = vmatpush.msra.mxu0 %v630
    %1388 = vmatpush.msra.mxu0 %v622
    %1389 = vmatpush.msra.mxu0 %v614
    %1390 = vmatmul.f32.gmra.mxu0 %v97
    %v1391 = vpop.f32.mrf.mxu0
    %v1392 = vadd.f32 %v1372, %v1391
    %1393 = vdwg.mxu0
    %1394 = vmatpush.msra.mxu0 %v862
    %1395 = vmatpush.msra.mxu0 %v854
    %1396 = vmatpush.msra.mxu0 %v846
    %1397 = vmatpush.msra.mxu0 %v838
    %1398 = vmatpush.msra.mxu0 %v830
    %1399 = vmatpush.msra.mxu0 %v822
    %1400 = vmatpush.msra.mxu0 %v814
    %1401 = vmatpush.msra.mxu0 %v806
    %1402 = vmatpush.msra.mxu0 %v798
    %1403 = vmatpush.msra.mxu0 %v790
    %1404 = vmatpush.msra.mxu0 %v782
    %1405 = vmatpush.msra.mxu0 %v774
    %1406 = vmatpush.msra.mxu0 %v766
    %1407 = vmatpush.msra.mxu0 %v758
    %1408 = vmatpush.msra.mxu0 %v750
    %1409 = vmatpush.msra.mxu0 %v742
    %1410 = vmatmul.f32.gmra.mxu0 %v98
    %v1411 = vpop.f32.mrf.mxu0
    %v1412 = vadd.f32 %v1392, %v1411
    %1413 = vdwg.mxu0
    %1414 = vmatpush.msra.mxu0 %v990
    %1415 = vmatpush.msra.mxu0 %v982
    %1416 = vmatpush.msra.mxu0 %v974
    %1417 = vmatpush.msra.mxu0 %v966
    %1418 = vmatpush.msra.mxu0 %v958
    %1419 = vmatpush.msra.mxu0 %v950
    %1420 = vmatpush.msra.mxu0 %v942
    %1421 = vmatpush.msra.mxu0 %v934
    %1422 = vmatpush.msra.mxu0 %v926
    %1423 = vmatpush.msra.mxu0 %v918
    %1424 = vmatpush.msra.mxu0 %v910
    %1425 = vmatpush.msra.mxu0 %v902
    %1426 = vmatpush.msra.mxu0 %v894
    %1427 = vmatpush.msra.mxu0 %v886
    %1428 = vmatpush.msra.mxu0 %v878
    %1429 = vmatpush.msra.mxu0 %v870
    %1430 = vmatmul.f32.gmra.mxu0 %v99
    %v1431 = vpop.f32.mrf.mxu0
    %v1432 = vadd.f32 %v1412, %v1431
    %1433 = vdwg.mxu0
    %1434 = vmatpush.msra.mxu0 %v223
    %1435 = vmatpush.msra.mxu0 %v215
    %1436 = vmatpush.msra.mxu0 %v207
    %1437 = vmatpush.msra.mxu0 %v199
    %1438 = vmatpush.msra.mxu0 %v191
    %1439 = vmatpush.msra.mxu0 %v183
    %1440 = vmatpush.msra.mxu0 %v175
    %1441 = vmatpush.msra.mxu0 %v167
    %1442 = vmatpush.msra.mxu0 %v159
    %1443 = vmatpush.msra.mxu0 %v151
    %1444 = vmatpush.msra.mxu0 %v143
    %1445 = vmatpush.msra.mxu0 %v135
    %1446 = vmatpush.msra.mxu0 %v127
    %1447 = vmatpush.msra.mxu0 %v119
    %1448 = vmatpush.msra.mxu0 %v111
    %1449 = vmatpush.msra.mxu0 %v103
    %1450 = vmatmul.f32.gmra.mxu0 %v93
    %v1451 = vpop.f32.mrf.mxu0
    %v1452 = vadd.f32 %v1001, %v1451
    %1453 = vdwg.mxu0
    %1454 = vmatpush.msra.mxu0 %v351
    %1455 = vmatpush.msra.mxu0 %v343
    %1456 = vmatpush.msra.mxu0 %v335
    %1457 = vmatpush.msra.mxu0 %v327
    %1458 = vmatpush.msra.mxu0 %v319
    %1459 = vmatpush.msra.mxu0 %v311
    %1460 = vmatpush.msra.mxu0 %v303
    %1461 = vmatpush.msra.mxu0 %v295
    %1462 = vmatpush.msra.mxu0 %v287
    %1463 = vmatpush.msra.mxu0 %v279
    %1464 = vmatpush.msra.mxu0 %v271
    %1465 = vmatpush.msra.mxu0 %v263
    %1466 = vmatpush.msra.mxu0 %v255
    %1467 = vmatpush.msra.mxu0 %v247
    %1468 = vmatpush.msra.mxu0 %v239
    %1469 = vmatpush.msra.mxu0 %v231
    %1470 = vmatmul.f32.gmra.mxu0 %v94
    %v1471 = vpop.f32.mrf.mxu0
    %v1472 = vadd.f32 %v1452, %v1471
    %1473 = vdwg.mxu0
    %1474 = vmatpush.msra.mxu0 %v479
    %1475 = vmatpush.msra.mxu0 %v471
    %1476 = vmatpush.msra.mxu0 %v463
    %1477 = vmatpush.msra.mxu0 %v455
    %1478 = vmatpush.msra.mxu0 %v447
    %1479 = vmatpush.msra.mxu0 %v439
    %1480 = vmatpush.msra.mxu0 %v431
    %1481 = vmatpush.msra.mxu0 %v423
    %1482 = vmatpush.msra.mxu0 %v415
    %1483 = vmatpush.msra.mxu0 %v407
    %1484 = vmatpush.msra.mxu0 %v399
    %1485 = vmatpush.msra.mxu0 %v391
    %1486 = vmatpush.msra.mxu0 %v383
    %1487 = vmatpush.msra.mxu0 %v375
    %1488 = vmatpush.msra.mxu0 %v367
    %1489 = vmatpush.msra.mxu0 %v359
    %1490 = vmatmul.f32.gmra.mxu0 %v95
    %v1491 = vpop.f32.mrf.mxu0
    %v1492 = vadd.f32 %v1472, %v1491
    %1493 = vdwg.mxu0
    %1494 = vmatpush.msra.mxu0 %v607
    %1495 = vmatpush.msra.mxu0 %v599
    %1496 = vmatpush.msra.mxu0 %v591
    %1497 = vmatpush.msra.mxu0 %v583
    %1498 = vmatpush.msra.mxu0 %v575
    %1499 = vmatpush.msra.mxu0 %v567
    %1500 = vmatpush.msra.mxu0 %v559
    %1501 = vmatpush.msra.mxu0 %v551
    %1502 = vmatpush.msra.mxu0 %v543
    %1503 = vmatpush.msra.mxu0 %v535
    %1504 = vmatpush.msra.mxu0 %v527
    %1505 = vmatpush.msra.mxu0 %v519
    %1506 = vmatpush.msra.mxu0 %v511
    %1507 = vmatpush.msra.mxu0 %v503
    %1508 = vmatpush.msra.mxu0 %v495
    %1509 = vmatpush.msra.mxu0 %v487
    %1510 = vmatmul.f32.gmra.mxu0 %v96
    %v1511 = vpop.f32.mrf.mxu0
    %v1512 = vadd.f32 %v1492, %v1511
    %1513 = vdwg.mxu0
    %1514 = vmatpush.msra.mxu0 %v735
    %1515 = vmatpush.msra.mxu0 %v727
    %1516 = vmatpush.msra.mxu0 %v719
    %1517 = vmatpush.msra.mxu0 %v711
    %1518 = vmatpush.msra.mxu0 %v703
    %1519 = vmatpush.msra.mxu0 %v695
    %1520 = vmatpush.msra.mxu0 %v687
    %1521 = vmatpush.msra.mxu0 %v679
    %1522 = vmatpush.msra.mxu0 %v671
    %1523 = vmatpush.msra.mxu0 %v663
    %1524 = vmatpush.msra.mxu0 %v655
    %1525 = vmatpush.msra.mxu0 %v647
    %1526 = vmatpush.msra.mxu0 %v639
    %1527 = vmatpush.msra.mxu0 %v631
    %1528 = vmatpush.msra.mxu0 %v623
    %1529 = vmatpush.msra.mxu0 %v615
    %1530 = vmatmul.f32.gmra.mxu0 %v97
    %v1531 = vpop.f32.mrf.mxu0
    %v1532 = vadd.f32 %v1512, %v1531
    %1533 = vdwg.mxu0
    %1534 = vmatpush.msra.mxu0 %v863
    %1535 = vmatpush.msra.mxu0 %v855
    %1536 = vmatpush.msra.mxu0 %v847
    %1537 = vmatpush.msra.mxu0 %v839
    %1538 = vmatpush.msra.mxu0 %v831
    %1539 = vmatpush.msra.mxu0 %v823
    %1540 = vmatpush.msra.mxu0 %v815
    %1541 = vmatpush.msra.mxu0 %v807
    %1542 = vmatpush.msra.mxu0 %v799
    %1543 = vmatpush.msra.mxu0 %v791
    %1544 = vmatpush.msra.mxu0 %v783
    %1545 = vmatpush.msra.mxu0 %v775
    %1546 = vmatpush.msra.mxu0 %v767
    %1547 = vmatpush.msra.mxu0 %v759
    %1548 = vmatpush.msra.mxu0 %v751
    %1549 = vmatpush.msra.mxu0 %v743
    %1550 = vmatmul.f32.gmra.mxu0 %v98
    %v1551 = vpop.f32.mrf.mxu0
    %v1552 = vadd.f32 %v1532, %v1551
    %1553 = vdwg.mxu0
    %1554 = vmatpush.msra.mxu0 %v991
    %1555 = vmatpush.msra.mxu0 %v983
    %1556 = vmatpush.msra.mxu0 %v975
    %1557 = vmatpush.msra.mxu0 %v967
    %1558 = vmatpush.msra.mxu0 %v959
    %1559 = vmatpush.msra.mxu0 %v951
    %1560 = vmatpush.msra.mxu0 %v943
    %1561 = vmatpush.msra.mxu0 %v935
    %1562 = vmatpush.msra.mxu0 %v927
    %1563 = vmatpush.msra.mxu0 %v919
    %1564 = vmatpush.msra.mxu0 %v911
    %1565 = vmatpush.msra.mxu0 %v903
    %1566 = vmatpush.msra.mxu0 %v895
    %1567 = vmatpush.msra.mxu0 %v887
    %1568 = vmatpush.msra.mxu0 %v879
    %1569 = vmatpush.msra.mxu0 %v871
    %1570 = vmatmul.f32.gmra.mxu0 %v99
    %v1571 = vpop.f32.mrf.mxu0
    %v1572 = vadd.f32 %v1552, %v1571
    %1573 = vdwg.mxu0
    %1574 = vmatpush.msra.mxu0 %v224
    %1575 = vmatpush.msra.mxu0 %v216
    %1576 = vmatpush.msra.mxu0 %v208
    %1577 = vmatpush.msra.mxu0 %v200
    %1578 = vmatpush.msra.mxu0 %v192
    %1579 = vmatpush.msra.mxu0 %v184
    %1580 = vmatpush.msra.mxu0 %v176
    %1581 = vmatpush.msra.mxu0 %v168
    %1582 = vmatpush.msra.mxu0 %v160
    %1583 = vmatpush.msra.mxu0 %v152
    %1584 = vmatpush.msra.mxu0 %v144
    %1585 = vmatpush.msra.mxu0 %v136
    %1586 = vmatpush.msra.mxu0 %v128
    %1587 = vmatpush.msra.mxu0 %v120
    %1588 = vmatpush.msra.mxu0 %v112
    %1589 = vmatpush.msra.mxu0 %v104
    %1590 = vmatmul.f32.gmra.mxu0 %v93
    %v1591 = vpop.f32.mrf.mxu0
    %v1592 = vadd.f32 %v1002, %v1591
    %1593 = vdwg.mxu0
    %1594 = vmatpush.msra.mxu0 %v352
    %1595 = vmatpush.msra.mxu0 %v344
    %1596 = vmatpush.msra.mxu0 %v336
    %1597 = vmatpush.msra.mxu0 %v328
    %1598 = vmatpush.msra.mxu0 %v320
    %1599 = vmatpush.msra.mxu0 %v312
    %1600 = vmatpush.msra.mxu0 %v304
    %1601 = vmatpush.msra.mxu0 %v296
    %1602 = vmatpush.msra.mxu0 %v288
    %1603 = vmatpush.msra.mxu0 %v280
    %1604 = vmatpush.msra.mxu0 %v272
    %1605 = vmatpush.msra.mxu0 %v264
    %1606 = vmatpush.msra.mxu0 %v256
    %1607 = vmatpush.msra.mxu0 %v248
    %1608 = vmatpush.msra.mxu0 %v240
    %1609 = vmatpush.msra.mxu0 %v232
    %1610 = vmatmul.f32.gmra.mxu0 %v94
    %v1611 = vpop.f32.mrf.mxu0
    %v1612 = vadd.f32 %v1592, %v1611
    %1613 = vdwg.mxu0
    %1614 = vmatpush.msra.mxu0 %v480
    %1615 = vmatpush.msra.mxu0 %v472
    %1616 = vmatpush.msra.mxu0 %v464
    %1617 = vmatpush.msra.mxu0 %v456
    %1618 = vmatpush.msra.mxu0 %v448
    %1619 = vmatpush.msra.mxu0 %v440
    %1620 = vmatpush.msra.mxu0 %v432
    %1621 = vmatpush.msra.mxu0 %v424
    %1622 = vmatpush.msra.mxu0 %v416
    %1623 = vmatpush.msra.mxu0 %v408
    %1624 = vmatpush.msra.mxu0 %v400
    %1625 = vmatpush.msra.mxu0 %v392
    %1626 = vmatpush.msra.mxu0 %v384
    %1627 = vmatpush.msra.mxu0 %v376
    %1628 = vmatpush.msra.mxu0 %v368
    %1629 = vmatpush.msra.mxu0 %v360
    %1630 = vmatmul.f32.gmra.mxu0 %v95
    %v1631 = vpop.f32.mrf.mxu0
    %v1632 = vadd.f32 %v1612, %v1631
    %1633 = vdwg.mxu0
    %1634 = vmatpush.msra.mxu0 %v608
    %1635 = vmatpush.msra.mxu0 %v600
    %1636 = vmatpush.msra.mxu0 %v592
    %1637 = vmatpush.msra.mxu0 %v584
    %1638 = vmatpush.msra.mxu0 %v576
    %1639 = vmatpush.msra.mxu0 %v568
    %1640 = vmatpush.msra.mxu0 %v560
    %1641 = vmatpush.msra.mxu0 %v552
    %1642 = vmatpush.msra.mxu0 %v544
    %1643 = vmatpush.msra.mxu0 %v536
    %1644 = vmatpush.msra.mxu0 %v528
    %1645 = vmatpush.msra.mxu0 %v520
    %1646 = vmatpush.msra.mxu0 %v512
    %1647 = vmatpush.msra.mxu0 %v504
    %1648 = vmatpush.msra.mxu0 %v496
    %1649 = vmatpush.msra.mxu0 %v488
    %1650 = vmatmul.f32.gmra.mxu0 %v96
    %v1651 = vpop.f32.mrf.mxu0
    %v1652 = vadd.f32 %v1632, %v1651
    %1653 = vdwg.mxu0
    %1654 = vmatpush.msra.mxu0 %v736
    %1655 = vmatpush.msra.mxu0 %v728
    %1656 = vmatpush.msra.mxu0 %v720
    %1657 = vmatpush.msra.mxu0 %v712
    %1658 = vmatpush.msra.mxu0 %v704
    %1659 = vmatpush.msra.mxu0 %v696
    %1660 = vmatpush.msra.mxu0 %v688
    %1661 = vmatpush.msra.mxu0 %v680
    %1662 = vmatpush.msra.mxu0 %v672
    %1663 = vmatpush.msra.mxu0 %v664
    %1664 = vmatpush.msra.mxu0 %v656
    %1665 = vmatpush.msra.mxu0 %v648
    %1666 = vmatpush.msra.mxu0 %v640
    %1667 = vmatpush.msra.mxu0 %v632
    %1668 = vmatpush.msra.mxu0 %v624
    %1669 = vmatpush.msra.mxu0 %v616
    %1670 = vmatmul.f32.gmra.mxu0 %v97
    %v1671 = vpop.f32.mrf.mxu0
    %v1672 = vadd.f32 %v1652, %v1671
    %1673 = vdwg.mxu0
    %1674 = vmatpush.msra.mxu0 %v864
    %1675 = vmatpush.msra.mxu0 %v856
    %1676 = vmatpush.msra.mxu0 %v848
    %1677 = vmatpush.msra.mxu0 %v840
    %1678 = vmatpush.msra.mxu0 %v832
    %1679 = vmatpush.msra.mxu0 %v824
    %1680 = vmatpush.msra.mxu0 %v816
    %1681 = vmatpush.msra.mxu0 %v808
    %1682 = vmatpush.msra.mxu0 %v800
    %1683 = vmatpush.msra.mxu0 %v792
    %1684 = vmatpush.msra.mxu0 %v784
    %1685 = vmatpush.msra.mxu0 %v776
    %1686 = vmatpush.msra.mxu0 %v768
    %1687 = vmatpush.msra.mxu0 %v760
    %1688 = vmatpush.msra.mxu0 %v752
    %1689 = vmatpush.msra.mxu0 %v744
    %1690 = vmatmul.f32.gmra.mxu0 %v98
    %v1691 = vpop.f32.mrf.mxu0
    %v1692 = vadd.f32 %v1672, %v1691
    %1693 = vdwg.mxu0
    %1694 = vmatpush.msra.mxu0 %v992
    %1695 = vmatpush.msra.mxu0 %v984
    %1696 = vmatpush.msra.mxu0 %v976
    %1697 = vmatpush.msra.mxu0 %v968
    %1698 = vmatpush.msra.mxu0 %v960
    %1699 = vmatpush.msra.mxu0 %v952
    %1700 = vmatpush.msra.mxu0 %v944
    %1701 = vmatpush.msra.mxu0 %v936
    %1702 = vmatpush.msra.mxu0 %v928
    %1703 = vmatpush.msra.mxu0 %v920
    %1704 = vmatpush.msra.mxu0 %v912
    %1705 = vmatpush.msra.mxu0 %v904
    %1706 = vmatpush.msra.mxu0 %v896
    %1707 = vmatpush.msra.mxu0 %v888
    %1708 = vmatpush.msra.mxu0 %v880
    %1709 = vmatpush.msra.mxu0 %v872
    %1710 = vmatmul.f32.gmra.mxu0 %v99
    %v1711 = vpop.f32.mrf.mxu0
    %v1712 = vadd.f32 %v1692, %v1711
    %1713 = vdwg.mxu0
    %1714 = vmatpush.msra.mxu0 %v225
    %1715 = vmatpush.msra.mxu0 %v217
    %1716 = vmatpush.msra.mxu0 %v209
    %1717 = vmatpush.msra.mxu0 %v201
    %1718 = vmatpush.msra.mxu0 %v193
    %1719 = vmatpush.msra.mxu0 %v185
    %1720 = vmatpush.msra.mxu0 %v177
    %1721 = vmatpush.msra.mxu0 %v169
    %1722 = vmatpush.msra.mxu0 %v161
    %1723 = vmatpush.msra.mxu0 %v153
    %1724 = vmatpush.msra.mxu0 %v145
    %1725 = vmatpush.msra.mxu0 %v137
    %1726 = vmatpush.msra.mxu0 %v129
    %1727 = vmatpush.msra.mxu0 %v121
    %1728 = vmatpush.msra.mxu0 %v113
    %1729 = vmatpush.msra.mxu0 %v105
    %1730 = vmatmul.f32.gmra.mxu0 %v93
    %v1731 = vpop.f32.mrf.mxu0
    %v1732 = vadd.f32 %v1003, %v1731
    %1733 = vdwg.mxu0
    %1734 = vmatpush.msra.mxu0 %v353
    %1735 = vmatpush.msra.mxu0 %v345
    %1736 = vmatpush.msra.mxu0 %v337
    %1737 = vmatpush.msra.mxu0 %v329
    %1738 = vmatpush.msra.mxu0 %v321
    %1739 = vmatpush.msra.mxu0 %v313
    %1740 = vmatpush.msra.mxu0 %v305
    %1741 = vmatpush.msra.mxu0 %v297
    %1742 = vmatpush.msra.mxu0 %v289
    %1743 = vmatpush.msra.mxu0 %v281
    %1744 = vmatpush.msra.mxu0 %v273
    %1745 = vmatpush.msra.mxu0 %v265
    %1746 = vmatpush.msra.mxu0 %v257
    %1747 = vmatpush.msra.mxu0 %v249
    %1748 = vmatpush.msra.mxu0 %v241
    %1749 = vmatpush.msra.mxu0 %v233
    %1750 = vmatmul.f32.gmra.mxu0 %v94
    %v1751 = vpop.f32.mrf.mxu0
    %v1752 = vadd.f32 %v1732, %v1751
    %1753 = vdwg.mxu0
    %1754 = vmatpush.msra.mxu0 %v481
    %1755 = vmatpush.msra.mxu0 %v473
    %1756 = vmatpush.msra.mxu0 %v465
    %1757 = vmatpush.msra.mxu0 %v457
    %1758 = vmatpush.msra.mxu0 %v449
    %1759 = vmatpush.msra.mxu0 %v441
    %1760 = vmatpush.msra.mxu0 %v433
    %1761 = vmatpush.msra.mxu0 %v425
    %1762 = vmatpush.msra.mxu0 %v417
    %1763 = vmatpush.msra.mxu0 %v409
    %1764 = vmatpush.msra.mxu0 %v401
    %1765 = vmatpush.msra.mxu0 %v393
    %1766 = vmatpush.msra.mxu0 %v385
    %1767 = vmatpush.msra.mxu0 %v377
    %1768 = vmatpush.msra.mxu0 %v369
    %1769 = vmatpush.msra.mxu0 %v361
    %1770 = vmatmul.f32.gmra.mxu0 %v95
    %v1771 = vpop.f32.mrf.mxu0
    %v1772 = vadd.f32 %v1752, %v1771
    %1773 = vdwg.mxu0
    %1774 = vmatpush.msra.mxu0 %v609
    %1775 = vmatpush.msra.mxu0 %v601
    %1776 = vmatpush.msra.mxu0 %v593
    %1777 = vmatpush.msra.mxu0 %v585
    %1778 = vmatpush.msra.mxu0 %v577
    %1779 = vmatpush.msra.mxu0 %v569
    %1780 = vmatpush.msra.mxu0 %v561
    %1781 = vmatpush.msra.mxu0 %v553
    %1782 = vmatpush.msra.mxu0 %v545
    %1783 = vmatpush.msra.mxu0 %v537
    %1784 = vmatpush.msra.mxu0 %v529
    %1785 = vmatpush.msra.mxu0 %v521
    %1786 = vmatpush.msra.mxu0 %v513
    %1787 = vmatpush.msra.mxu0 %v505
    %1788 = vmatpush.msra.mxu0 %v497
    %1789 = vmatpush.msra.mxu0 %v489
    %1790 = vmatmul.f32.gmra.mxu0 %v96
    %v1791 = vpop.f32.mrf.mxu0
    %v1792 = vadd.f32 %v1772, %v1791
    %1793 = vdwg.mxu0
    %1794 = vmatpush.msra.mxu0 %v737
    %1795 = vmatpush.msra.mxu0 %v729
    %1796 = vmatpush.msra.mxu0 %v721
    %1797 = vmatpush.msra.mxu0 %v713
    %1798 = vmatpush.msra.mxu0 %v705
    %1799 = vmatpush.msra.mxu0 %v697
    %1800 = vmatpush.msra.mxu0 %v689
    %1801 = vmatpush.msra.mxu0 %v681
    %1802 = vmatpush.msra.mxu0 %v673
    %1803 = vmatpush.msra.mxu0 %v665
    %1804 = vmatpush.msra.mxu0 %v657
    %1805 = vmatpush.msra.mxu0 %v649
    %1806 = vmatpush.msra.mxu0 %v641
    %1807 = vmatpush.msra.mxu0 %v633
    %1808 = vmatpush.msra.mxu0 %v625
    %1809 = vmatpush.msra.mxu0 %v617
    %1810 = vmatmul.f32.gmra.mxu0 %v97
    %v1811 = vpop.f32.mrf.mxu0
    %v1812 = vadd.f32 %v1792, %v1811
    %1813 = vdwg.mxu0
    %1814 = vmatpush.msra.mxu0 %v865
    %1815 = vmatpush.msra.mxu0 %v857
    %1816 = vmatpush.msra.mxu0 %v849
    %1817 = vmatpush.msra.mxu0 %v841
    %1818 = vmatpush.msra.mxu0 %v833
    %1819 = vmatpush.msra.mxu0 %v825
    %1820 = vmatpush.msra.mxu0 %v817
    %1821 = vmatpush.msra.mxu0 %v809
    %1822 = vmatpush.msra.mxu0 %v801
    %1823 = vmatpush.msra.mxu0 %v793
    %1824 = vmatpush.msra.mxu0 %v785
    %1825 = vmatpush.msra.mxu0 %v777
    %1826 = vmatpush.msra.mxu0 %v769
    %1827 = vmatpush.msra.mxu0 %v761
    %1828 = vmatpush.msra.mxu0 %v753
    %1829 = vmatpush.msra.mxu0 %v745
    %1830 = vmatmul.f32.gmra.mxu0 %v98
    %v1831 = vpop.f32.mrf.mxu0
    %v1832 = vadd.f32 %v1812, %v1831
    %1833 = vdwg.mxu0
    %1834 = vmatpush.msra.mxu0 %v993
    %1835 = vmatpush.msra.mxu0 %v985
    %1836 = vmatpush.msra.mxu0 %v977
    %1837 = vmatpush.msra.mxu0 %v969
    %1838 = vmatpush.msra.mxu0 %v961
    %1839 = vmatpush.msra.mxu0 %v953
    %1840 = vmatpush.msra.mxu0 %v945
    %1841 = vmatpush.msra.mxu0 %v937
    %1842 = vmatpush.msra.mxu0 %v929
    %1843 = vmatpush.msra.mxu0 %v921
    %1844 = vmatpush.msra.mxu0 %v913
    %1845 = vmatpush.msra.mxu0 %v905
    %1846 = vmatpush.msra.mxu0 %v897
    %1847 = vmatpush.msra.mxu0 %v889
    %1848 = vmatpush.msra.mxu0 %v881
    %1849 = vmatpush.msra.mxu0 %v873
    %1850 = vmatmul.f32.gmra.mxu0 %v99
    %v1851 = vpop.f32.mrf.mxu0
    %v1852 = vadd.f32 %v1832, %v1851
    %1853 = vdwg.mxu0
    %1854 = vmatpush.msra.mxu0 %v226
    %1855 = vmatpush.msra.mxu0 %v218
    %1856 = vmatpush.msra.mxu0 %v210
    %1857 = vmatpush.msra.mxu0 %v202
    %1858 = vmatpush.msra.mxu0 %v194
    %1859 = vmatpush.msra.mxu0 %v186
    %1860 = vmatpush.msra.mxu0 %v178
    %1861 = vmatpush.msra.mxu0 %v170
    %1862 = vmatpush.msra.mxu0 %v162
    %1863 = vmatpush.msra.mxu0 %v154
    %1864 = vmatpush.msra.mxu0 %v146
    %1865 = vmatpush.msra.mxu0 %v138
    %1866 = vmatpush.msra.mxu0 %v130
    %1867 = vmatpush.msra.mxu0 %v122
    %1868 = vmatpush.msra.mxu0 %v114
    %1869 = vmatpush.msra.mxu0 %v106
    %1870 = vmatmul.f32.gmra.mxu0 %v93
    %v1871 = vpop.f32.mrf.mxu0
    %v1872 = vadd.f32 %v1004, %v1871
    %1873 = vdwg.mxu0
    %1874 = vmatpush.msra.mxu0 %v354
    %1875 = vmatpush.msra.mxu0 %v346
    %1876 = vmatpush.msra.mxu0 %v338
    %1877 = vmatpush.msra.mxu0 %v330
    %1878 = vmatpush.msra.mxu0 %v322
    %1879 = vmatpush.msra.mxu0 %v314
    %1880 = vmatpush.msra.mxu0 %v306
    %1881 = vmatpush.msra.mxu0 %v298
    %1882 = vmatpush.msra.mxu0 %v290
    %1883 = vmatpush.msra.mxu0 %v282
    %1884 = vmatpush.msra.mxu0 %v274
    %1885 = vmatpush.msra.mxu0 %v266
    %1886 = vmatpush.msra.mxu0 %v258
    %1887 = vmatpush.msra.mxu0 %v250
    %1888 = vmatpush.msra.mxu0 %v242
    %1889 = vmatpush.msra.mxu0 %v234
    %1890 = vmatmul.f32.gmra.mxu0 %v94
    %v1891 = vpop.f32.mrf.mxu0
    %v1892 = vadd.f32 %v1872, %v1891
    %1893 = vdwg.mxu0
    %1894 = vmatpush.msra.mxu0 %v482
    %1895 = vmatpush.msra.mxu0 %v474
    %1896 = vmatpush.msra.mxu0 %v466
    %1897 = vmatpush.msra.mxu0 %v458
    %1898 = vmatpush.msra.mxu0 %v450
    %1899 = vmatpush.msra.mxu0 %v442
    %1900 = vmatpush.msra.mxu0 %v434
    %1901 = vmatpush.msra.mxu0 %v426
    %1902 = vmatpush.msra.mxu0 %v418
    %1903 = vmatpush.msra.mxu0 %v410
    %1904 = vmatpush.msra.mxu0 %v402
    %1905 = vmatpush.msra.mxu0 %v394
    %1906 = vmatpush.msra.mxu0 %v386
    %1907 = vmatpush.msra.mxu0 %v378
    %1908 = vmatpush.msra.mxu0 %v370
    %1909 = vmatpush.msra.mxu0 %v362
    %1910 = vmatmul.f32.gmra.mxu0 %v95
    %v1911 = vpop.f32.mrf.mxu0
    %v1912 = vadd.f32 %v1892, %v1911
    %1913 = vdwg.mxu0
    %1914 = vmatpush.msra.mxu0 %v610
    %1915 = vmatpush.msra.mxu0 %v602
    %1916 = vmatpush.msra.mxu0 %v594
    %1917 = vmatpush.msra.mxu0 %v586
    %1918 = vmatpush.msra.mxu0 %v578
    %1919 = vmatpush.msra.mxu0 %v570
    %1920 = vmatpush.msra.mxu0 %v562
    %1921 = vmatpush.msra.mxu0 %v554
    %1922 = vmatpush.msra.mxu0 %v546
    %1923 = vmatpush.msra.mxu0 %v538
    %1924 = vmatpush.msra.mxu0 %v530
    %1925 = vmatpush.msra.mxu0 %v522
    %1926 = vmatpush.msra.mxu0 %v514
    %1927 = vmatpush.msra.mxu0 %v506
    %1928 = vmatpush.msra.mxu0 %v498
    %1929 = vmatpush.msra.mxu0 %v490
    %1930 = vmatmul.f32.gmra.mxu0 %v96
    %v1931 = vpop.f32.mrf.mxu0
    %v1932 = vadd.f32 %v1912, %v1931
    %1933 = vdwg.mxu0
    %1934 = vmatpush.msra.mxu0 %v738
    %1935 = vmatpush.msra.mxu0 %v730
    %1936 = vmatpush.msra.mxu0 %v722
    %1937 = vmatpush.msra.mxu0 %v714
    %1938 = vmatpush.msra.mxu0 %v706
    %1939 = vmatpush.msra.mxu0 %v698
    %1940 = vmatpush.msra.mxu0 %v690
    %1941 = vmatpush.msra.mxu0 %v682
    %1942 = vmatpush.msra.mxu0 %v674
    %1943 = vmatpush.msra.mxu0 %v666
    %1944 = vmatpush.msra.mxu0 %v658
    %1945 = vmatpush.msra.mxu0 %v650
    %1946 = vmatpush.msra.mxu0 %v642
    %1947 = vmatpush.msra.mxu0 %v634
    %1948 = vmatpush.msra.mxu0 %v626
    %1949 = vmatpush.msra.mxu0 %v618
    %1950 = vmatmul.f32.gmra.mxu0 %v97
    %v1951 = vpop.f32.mrf.mxu0
    %v1952 = vadd.f32 %v1932, %v1951
    %1953 = vdwg.mxu0
    %1954 = vmatpush.msra.mxu0 %v866
    %1955 = vmatpush.msra.mxu0 %v858
    %1956 = vmatpush.msra.mxu0 %v850
    %1957 = vmatpush.msra.mxu0 %v842
    %1958 = vmatpush.msra.mxu0 %v834
    %1959 = vmatpush.msra.mxu0 %v826
    %1960 = vmatpush.msra.mxu0 %v818
    %1961 = vmatpush.msra.mxu0 %v810
    %1962 = vmatpush.msra.mxu0 %v802
    %1963 = vmatpush.msra.mxu0 %v794
    %1964 = vmatpush.msra.mxu0 %v786
    %1965 = vmatpush.msra.mxu0 %v778
    %1966 = vmatpush.msra.mxu0 %v770
    %1967 = vmatpush.msra.mxu0 %v762
    %1968 = vmatpush.msra.mxu0 %v754
    %1969 = vmatpush.msra.mxu0 %v746
    %1970 = vmatmul.f32.gmra.mxu0 %v98
    %v1971 = vpop.f32.mrf.mxu0
    %v1972 = vadd.f32 %v1952, %v1971
    %1973 = vdwg.mxu0
    %1974 = vmatpush.msra.mxu0 %v994
    %1975 = vmatpush.msra.mxu0 %v986
    %1976 = vmatpush.msra.mxu0 %v978
    %1977 = vmatpush.msra.mxu0 %v970
    %1978 = vmatpush.msra.mxu0 %v962
    %1979 = vmatpush.msra.mxu0 %v954
    %1980 = vmatpush.msra.mxu0 %v946
    %1981 = vmatpush.msra.mxu0 %v938
    %1982 = vmatpush.msra.mxu0 %v930
    %1983 = vmatpush.msra.mxu0 %v922
    %1984 = vmatpush.msra.mxu0 %v914
    %1985 = vmatpush.msra.mxu0 %v906
    %1986 = vmatpush.msra.mxu0 %v898
    %1987 = vmatpush.msra.mxu0 %v890
    %1988 = vmatpush.msra.mxu0 %v882
    %1989 = vmatpush.msra.mxu0 %v874
    %1990 = vmatmul.f32.gmra.mxu0 %v99
    %v1991 = vpop.f32.mrf.mxu0
    %v1992 = vadd.f32 %v1972, %v1991
    %1993 = vdwg.mxu0
    %1994 = vmatpush.msra.mxu0 %v227
    %1995 = vmatpush.msra.mxu0 %v219
    %1996 = vmatpush.msra.mxu0 %v211
    %1997 = vmatpush.msra.mxu0 %v203
    %1998 = vmatpush.msra.mxu0 %v195
    %1999 = vmatpush.msra.mxu0 %v187
    %2000 = vmatpush.msra.mxu0 %v179
    %2001 = vmatpush.msra.mxu0 %v171
    %2002 = vmatpush.msra.mxu0 %v163
    %2003 = vmatpush.msra.mxu0 %v155
    %2004 = vmatpush.msra.mxu0 %v147
    %2005 = vmatpush.msra.mxu0 %v139
    %2006 = vmatpush.msra.mxu0 %v131
    %2007 = vmatpush.msra.mxu0 %v123
    %2008 = vmatpush.msra.mxu0 %v115
    %2009 = vmatpush.msra.mxu0 %v107
    %2010 = vmatmul.f32.gmra.mxu0 %v93
    %v2011 = vpop.f32.mrf.mxu0
    %v2012 = vadd.f32 %v1005, %v2011
    %2013 = vdwg.mxu0
    %2014 = vmatpush.msra.mxu0 %v355
    %2015 = vmatpush.msra.mxu0 %v347
    %2016 = vmatpush.msra.mxu0 %v339
    %2017 = vmatpush.msra.mxu0 %v331
    %2018 = vmatpush.msra.mxu0 %v323
    %2019 = vmatpush.msra.mxu0 %v315
    %2020 = vmatpush.msra.mxu0 %v307
    %2021 = vmatpush.msra.mxu0 %v299
    %2022 = vmatpush.msra.mxu0 %v291
    %2023 = vmatpush.msra.mxu0 %v283
    %2024 = vmatpush.msra.mxu0 %v275
    %2025 = vmatpush.msra.mxu0 %v267
    %2026 = vmatpush.msra.mxu0 %v259
    %2027 = vmatpush.msra.mxu0 %v251
    %2028 = vmatpush.msra.mxu0 %v243
    %2029 = vmatpush.msra.mxu0 %v235
    %2030 = vmatmul.f32.gmra.mxu0 %v94
    %v2031 = vpop.f32.mrf.mxu0
    %v2032 = vadd.f32 %v2012, %v2031
    %2033 = vdwg.mxu0
    %2034 = vmatpush.msra.mxu0 %v483
    %2035 = vmatpush.msra.mxu0 %v475
    %2036 = vmatpush.msra.mxu0 %v467
    %2037 = vmatpush.msra.mxu0 %v459
    %2038 = vmatpush.msra.mxu0 %v451
    %2039 = vmatpush.msra.mxu0 %v443
    %2040 = vmatpush.msra.mxu0 %v435
    %2041 = vmatpush.msra.mxu0 %v427
    %2042 = vmatpush.msra.mxu0 %v419
    %2043 = vmatpush.msra.mxu0 %v411
    %2044 = vmatpush.msra.mxu0 %v403
    %2045 = vmatpush.msra.mxu0 %v395
    %2046 = vmatpush.msra.mxu0 %v387
    %2047 = vmatpush.msra.mxu0 %v379
    %2048 = vmatpush.msra.mxu0 %v371
    %2049 = vmatpush.msra.mxu0 %v363
    %2050 = vmatmul.f32.gmra.mxu0 %v95
    %v2051 = vpop.f32.mrf.mxu0
    %v2052 = vadd.f32 %v2032, %v2051
    %2053 = vdwg.mxu0
    %2054 = vmatpush.msra.mxu0 %v611
    %2055 = vmatpush.msra.mxu0 %v603
    %2056 = vmatpush.msra.mxu0 %v595
    %2057 = vmatpush.msra.mxu0 %v587
    %2058 = vmatpush.msra.mxu0 %v579
    %2059 = vmatpush.msra.mxu0 %v571
    %2060 = vmatpush.msra.mxu0 %v563
    %2061 = vmatpush.msra.mxu0 %v555
    %2062 = vmatpush.msra.mxu0 %v547
    %2063 = vmatpush.msra.mxu0 %v539
    %2064 = vmatpush.msra.mxu0 %v531
    %2065 = vmatpush.msra.mxu0 %v523
    %2066 = vmatpush.msra.mxu0 %v515
    %2067 = vmatpush.msra.mxu0 %v507
    %2068 = vmatpush.msra.mxu0 %v499
    %2069 = vmatpush.msra.mxu0 %v491
    %2070 = vmatmul.f32.gmra.mxu0 %v96
    %v2071 = vpop.f32.mrf.mxu0
    %v2072 = vadd.f32 %v2052, %v2071
    %2073 = vdwg.mxu0
    %2074 = vmatpush.msra.mxu0 %v739
    %2075 = vmatpush.msra.mxu0 %v731
    %2076 = vmatpush.msra.mxu0 %v723
    %2077 = vmatpush.msra.mxu0 %v715
    %2078 = vmatpush.msra.mxu0 %v707
    %2079 = vmatpush.msra.mxu0 %v699
    %2080 = vmatpush.msra.mxu0 %v691
    %2081 = vmatpush.msra.mxu0 %v683
    %2082 = vmatpush.msra.mxu0 %v675
    %2083 = vmatpush.msra.mxu0 %v667
    %2084 = vmatpush.msra.mxu0 %v659
    %2085 = vmatpush.msra.mxu0 %v651
    %2086 = vmatpush.msra.mxu0 %v643
    %2087 = vmatpush.msra.mxu0 %v635
    %2088 = vmatpush.msra.mxu0 %v627
    %2089 = vmatpush.msra.mxu0 %v619
    %2090 = vmatmul.f32.gmra.mxu0 %v97
    %v2091 = vpop.f32.mrf.mxu0
    %v2092 = vadd.f32 %v2072, %v2091
    %2093 = vdwg.mxu0
    %2094 = vmatpush.msra.mxu0 %v867
    %2095 = vmatpush.msra.mxu0 %v859
    %2096 = vmatpush.msra.mxu0 %v851
    %2097 = vmatpush.msra.mxu0 %v843
    %2098 = vmatpush.msra.mxu0 %v835
    %2099 = vmatpush.msra.mxu0 %v827
    %2100 = vmatpush.msra.mxu0 %v819
    %2101 = vmatpush.msra.mxu0 %v811
    %2102 = vmatpush.msra.mxu0 %v803
    %2103 = vmatpush.msra.mxu0 %v795
    %2104 = vmatpush.msra.mxu0 %v787
    %2105 = vmatpush.msra.mxu0 %v779
    %2106 = vmatpush.msra.mxu0 %v771
    %2107 = vmatpush.msra.mxu0 %v763
    %2108 = vmatpush.msra.mxu0 %v755
    %2109 = vmatpush.msra.mxu0 %v747
    %2110 = vmatmul.f32.gmra.mxu0 %v98
    %v2111 = vpop.f32.mrf.mxu0
    %v2112 = vadd.f32 %v2092, %v2111
    %2113 = vdwg.mxu0
    %2114 = vmatpush.msra.mxu0 %v995
    %2115 = vmatpush.msra.mxu0 %v987
    %2116 = vmatpush.msra.mxu0 %v979
    %2117 = vmatpush.msra.mxu0 %v971
    %2118 = vmatpush.msra.mxu0 %v963
    %2119 = vmatpush.msra.mxu0 %v955
    %2120 = vmatpush.msra.mxu0 %v947
    %2121 = vmatpush.msra.mxu0 %v939
    %2122 = vmatpush.msra.mxu0 %v931
    %2123 = vmatpush.msra.mxu0 %v923
    %2124 = vmatpush.msra.mxu0 %v915
    %2125 = vmatpush.msra.mxu0 %v907
    %2126 = vmatpush.msra.mxu0 %v899
    %2127 = vmatpush.msra.mxu0 %v891
    %2128 = vmatpush.msra.mxu0 %v883
    %2129 = vmatpush.msra.mxu0 %v875
    %2130 = vmatmul.f32.gmra.mxu0 %v99
    %v2131 = vpop.f32.mrf.mxu0
    %v2132 = vadd.f32 %v2112, %v2131
    %2133 = vdwg.mxu0
    %v2134 = vadd.f32 %v1152, 0.0
    %v2135 = vadd.f32 %v1292, 0.0
    %v2136 = vadd.f32 %v1432, 0.0
    %v2137 = vadd.f32 %v1572, 0.0
    %v2138 = vadd.f32 %v1712, 0.0
    %v2139 = vadd.f32 %v1852, 0.0
    %v2140 = vadd.f32 %v1992, 0.0
    %v2141 = vadd.f32 %v2132, 0.0
    %vm2142 = vcmp.ge.f32.partialorder %v2134, 1.0
    %vm2143 = vcmp.ge.f32.partialorder %v2135, 1.0
    %vm2144 = vcmp.ge.f32.partialorder %v2136, 1.0
    %vm2145 = vcmp.ge.f32.partialorder %v2137, 1.0
    %vm2146 = vcmp.ge.f32.partialorder %v2138, 1.0
    %vm2147 = vcmp.ge.f32.partialorder %v2139, 1.0
    %vm2148 = vcmp.ge.f32.partialorder %v2140, 1.0
    %vm2149 = vcmp.ge.f32.partialorder %v2141, 1.0
    %v2150 = vsel %vm2142, 1, 0
    %v2151 = vsel %vm2143, 1, 0
    %v2152 = vsel %vm2144, 1, 0
    %v2153 = vsel %vm2145, 1, 0
    %v2154 = vsel %vm2146, 1, 0
    %v2155 = vsel %vm2147, 1, 0
    %v2156 = vsel %vm2148, 1, 0
    %v2157 = vsel %vm2149, 1, 0
    %v2158 = vcvt.s32.f32 %v2150
    %v2159 = vcvt.s32.f32 %v2151
    %v2160 = vcvt.s32.f32 %v2152
    %v2161 = vcvt.s32.f32 %v2153
    %v2162 = vcvt.s32.f32 %v2154
    %v2163 = vcvt.s32.f32 %v2155
    %v2164 = vcvt.s32.f32 %v2156
    %v2165 = vcvt.s32.f32 %v2157
    %2166 = vst [vmem:[#allocation2] sm:$0xff] %v2158
    %2167 = vst [vmem:[#allocation2 + $0x8] sm:$0xff] %v2159
    %2168 = vst [vmem:[#allocation2 + $0x10] sm:$0xff] %v2160
    %2169 = vst [vmem:[#allocation2 + $0x18] sm:$0xff] %v2161
    %2170 = vst [vmem:[#allocation2 + $0x20] sm:$0xff] %v2162
    %2171 = vst [vmem:[#allocation2 + $0x28] sm:$0xff] %v2163
    %2172 = vst [vmem:[#allocation2 + $0x30] sm:$0xff] %v2164
    %2173 = vst [vmem:[#allocation2 + $0x38] sm:$0xff] %v2165
    %v2174 = vsub.f32 %v2134, %v2158
    %v2175 = vsub.f32 %v2135, %v2159
    %v2176 = vsub.f32 %v2136, %v2160
    %v2177 = vsub.f32 %v2137, %v2161
    %v2178 = vsub.f32 %v2138, %v2162
    %v2179 = vsub.f32 %v2139, %v2163
    %v2180 = vsub.f32 %v2140, %v2164
    %v2181 = vsub.f32 %v2141, %v2165
    %v2182 = vmul.f32 %v2174, 0.9
    %v2183 = vmul.f32 %v2175, 0.9
    %v2184 = vmul.f32 %v2176, 0.9
    %v2185 = vmul.f32 %v2177, 0.9
    %v2186 = vmul.f32 %v2178, 0.9
    %v2187 = vmul.f32 %v2179, 0.9
    %v2188 = vmul.f32 %v2180, 0.9
    %v2189 = vmul.f32 %v2181, 0.9
    %v2190 = vadd.f32 %v2182, %v1152
    %v2191 = vadd.f32 %v2183, %v1292
    %v2192 = vadd.f32 %v2184, %v1432
    %v2193 = vadd.f32 %v2185, %v1572
    %v2194 = vadd.f32 %v2186, %v1712
    %v2195 = vadd.f32 %v2187, %v1852
    %v2196 = vadd.f32 %v2188, %v1992
    %v2197 = vadd.f32 %v2189, %v2132
    %vm2198 = vcmp.ge.f32.partialorder %v2190, 1.0
    %vm2199 = vcmp.ge.f32.partialorder %v2191, 1.0
    %vm2200 = vcmp.ge.f32.partialorder %v2192, 1.0
    %vm2201 = vcmp.ge.f32.partialorder %v2193, 1.0
    %vm2202 = vcmp.ge.f32.partialorder %v2194, 1.0
    %vm2203 = vcmp.ge.f32.partialorder %v2195, 1.0
    %vm2204 = vcmp.ge.f32.partialorder %v2196, 1.0
    %vm2205 = vcmp.ge.f32.partialorder %v2197, 1.0
    %v2206 = vsel %vm2198, 1, 0
    %v2207 = vsel %vm2199, 1, 0
    %v2208 = vsel %vm2200, 1, 0
    %v2209 = vsel %vm2201, 1, 0
    %v2210 = vsel %vm2202, 1, 0
    %v2211 = vsel %vm2203, 1, 0
    %v2212 = vsel %vm2204, 1, 0
    %v2213 = vsel %vm2205, 1, 0
    %v2214 = vcvt.s32.f32 %v2206
    %v2215 = vcvt.s32.f32 %v2207
    %v2216 = vcvt.s32.f32 %v2208
    %v2217 = vcvt.s32.f32 %v2209
    %v2218 = vcvt.s32.f32 %v2210
    %v2219 = vcvt.s32.f32 %v2211
    %v2220 = vcvt.s32.f32 %v2212
    %v2221 = vcvt.s32.f32 %v2213
    %2222 = vst [vmem:[#allocation2 + $0x40] sm:$0xff] %v2214
    %2223 = vst [vmem:[#allocation2 + $0x48] sm:$0xff] %v2215
    %2224 = vst [vmem:[#allocation2 + $0x50] sm:$0xff] %v2216
    %2225 = vst [vmem:[#allocation2 + $0x58] sm:$0xff] %v2217
    %2226 = vst [vmem:[#allocation2 + $0x60] sm:$0xff] %v2218
    %2227 = vst [vmem:[#allocation2 + $0x68] sm:$0xff] %v2219
    %2228 = vst [vmem:[#allocation2 + $0x70] sm:$0xff] %v2220
    %2229 = vst [vmem:[#allocation2 + $0x78] sm:$0xff] %v2221
    %v2230 = vsub.f32 %v2190, %v2214
    %v2231 = vsub.f32 %v2191, %v2215
    %v2232 = vsub.f32 %v2192, %v2216
    %v2233 = vsub.f32 %v2193, %v2217
    %v2234 = vsub.f32 %v2194, %v2218
    %v2235 = vsub.f32 %v2195, %v2219
    %v2236 = vsub.f32 %v2196, %v2220
    %v2237 = vsub.f32 %v2197, %v2221
    %v2238 = vmul.f32 %v2230, 0.9
    %v2239 = vmul.f32 %v2231, 0.9
    %v2240 = vmul.f32 %v2232, 0.9
    %v2241 = vmul.f32 %v2233, 0.9
    %v2242 = vmul.f32 %v2234, 0.9
    %v2243 = vmul.f32 %v2235, 0.9
    %v2244 = vmul.f32 %v2236, 0.9
    %v2245 = vmul.f32 %v2237, 0.9
    %v2246 = vadd.f32 %v2238, %v1152
    %v2247 = vadd.f32 %v2239, %v1292
    %v2248 = vadd.f32 %v2240, %v1432
    %v2249 = vadd.f32 %v2241, %v1572
    %v2250 = vadd.f32 %v2242, %v1712
    %v2251 = vadd.f32 %v2243, %v1852
    %v2252 = vadd.f32 %v2244, %v1992
    %v2253 = vadd.f32 %v2245, %v2132
    %vm2254 = vcmp.ge.f32.partialorder %v2246, 1.0
    %vm2255 = vcmp.ge.f32.partialorder %v2247, 1.0
    %vm2256 = vcmp.ge.f32.partialorder %v2248, 1.0
    %vm2257 = vcmp.ge.f32.partialorder %v2249, 1.0
    %vm2258 = vcmp.ge.f32.partialorder %v2250, 1.0
    %vm2259 = vcmp.ge.f32.partialorder %v2251, 1.0
    %vm2260 = vcmp.ge.f32.partialorder %v2252, 1.0
    %vm2261 = vcmp.ge.f32.partialorder %v2253, 1.0
    %v2262 = vsel %vm2254, 1, 0
    %v2263 = vsel %vm2255, 1, 0
    %v2264 = vsel %vm2256, 1, 0
    %v2265 = vsel %vm2257, 1, 0
    %v2266 = vsel %vm2258, 1, 0
    %v2267 = vsel %vm2259, 1, 0
    %v2268 = vsel %vm2260, 1, 0
    %v2269 = vsel %vm2261, 1, 0
    %v2270 = vcvt.s32.f32 %v2262
    %v2271 = vcvt.s32.f32 %v2263
    %v2272 = vcvt.s32.f32 %v2264
    %v2273 = vcvt.s32.f32 %v2265
    %v2274 = vcvt.s32.f32 %v2266
    %v2275 = vcvt.s32.f32 %v2267
    %v2276 = vcvt.s32.f32 %v2268
    %v2277 = vcvt.s32.f32 %v2269
    %2278 = vst [vmem:[#allocation2 + $0x80] sm:$0xff] %v2270
    %2279 = vst [vmem:[#allocation2 + $0x88] sm:$0xff] %v2271
    %2280 = vst [vmem:[#allocation2 + $0x90] sm:$0xff] %v2272
    %2281 = vst [vmem:[#allocation2 + $0x98] sm:$0xff] %v2273
    %2282 = vst [vmem:[#allocation2 + $0xa0] sm:$0xff] %v2274
    %2283 = vst [vmem:[#allocation2 + $0xa8] sm:$0xff] %v2275
    %2284 = vst [vmem:[#allocation2 + $0xb0] sm:$0xff] %v2276
    %2285 = vst [vmem:[#allocation2 + $0xb8] sm:$0xff] %v2277
    %v2286 = vsub.f32 %v2246, %v2270
    %v2287 = vsub.f32 %v2247, %v2271
    %v2288 = vsub.f32 %v2248, %v2272
    %v2289 = vsub.f32 %v2249, %v2273
    %v2290 = vsub.f32 %v2250, %v2274
    %v2291 = vsub.f32 %v2251, %v2275
    %v2292 = vsub.f32 %v2252, %v2276
    %v2293 = vsub.f32 %v2253, %v2277
    %v2294 = vmul.f32 %v2286, 0.9
    %v2295 = vmul.f32 %v2287, 0.9
    %v2296 = vmul.f32 %v2288, 0.9
    %v2297 = vmul.f32 %v2289, 0.9
    %v2298 = vmul.f32 %v2290, 0.9
    %v2299 = vmul.f32 %v2291, 0.9
    %v2300 = vmul.f32 %v2292, 0.9
    %v2301 = vmul.f32 %v2293, 0.9
    %v2302 = vadd.f32 %v2294, %v1152
    %v2303 = vadd.f32 %v2295, %v1292
    %v2304 = vadd.f32 %v2296, %v1432
    %v2305 = vadd.f32 %v2297, %v1572
    %v2306 = vadd.f32 %v2298, %v1712
    %v2307 = vadd.f32 %v2299, %v1852
    %v2308 = vadd.f32 %v2300, %v1992
    %v2309 = vadd.f32 %v2301, %v2132
    %vm2310 = vcmp.ge.f32.partialorder %v2302, 1.0
    %vm2311 = vcmp.ge.f32.partialorder %v2303, 1.0
    %vm2312 = vcmp.ge.f32.partialorder %v2304, 1.0
    %vm2313 = vcmp.ge.f32.partialorder %v2305, 1.0
    %vm2314 = vcmp.ge.f32.partialorder %v2306, 1.0
    %vm2315 = vcmp.ge.f32.partialorder %v2307, 1.0
    %vm2316 = vcmp.ge.f32.partialorder %v2308, 1.0
    %vm2317 = vcmp.ge.f32.partialorder %v2309, 1.0
    %v2318 = vsel %vm2310, 1, 0
    %v2319 = vsel %vm2311, 1, 0
    %v2320 = vsel %vm2312, 1, 0
    %v2321 = vsel %vm2313, 1, 0
    %v2322 = vsel %vm2314, 1, 0
    %v2323 = vsel %vm2315, 1, 0
    %v2324 = vsel %vm2316, 1, 0
    %v2325 = vsel %vm2317, 1, 0
    %v2326 = vcvt.s32.f32 %v2318
    %v2327 = vcvt.s32.f32 %v2319
    %v2328 = vcvt.s32.f32 %v2320
    %v2329 = vcvt.s32.f32 %v2321
    %v2330 = vcvt.s32.f32 %v2322
    %v2331 = vcvt.s32.f32 %v2323
    %v2332 = vcvt.s32.f32 %v2324
    %v2333 = vcvt.s32.f32 %v2325
    %2334 = vst [vmem:[#allocation2 + $0xc0] sm:$0xff] %v2326
    %2335 = vst [vmem:[#allocation2 + $0xc8] sm:$0xff] %v2327
    %2336 = vst [vmem:[#allocation2 + $0xd0] sm:$0xff] %v2328
    %2337 = vst [vmem:[#allocation2 + $0xd8] sm:$0xff] %v2329
    %2338 = vst [vmem:[#allocation2 + $0xe0] sm:$0xff] %v2330
    %2339 = vst [vmem:[#allocation2 + $0xe8] sm:$0xff] %v2331
    %2340 = vst [vmem:[#allocation2 + $0xf0] sm:$0xff] %v2332
    %2341 = vst [vmem:[#allocation2 + $0xf8] sm:$0xff] %v2333
    %v2342 = vsub.f32 %v2302, %v2326
    %v2343 = vsub.f32 %v2303, %v2327
    %v2344 = vsub.f32 %v2304, %v2328
    %v2345 = vsub.f32 %v2305, %v2329
    %v2346 = vsub.f32 %v2306, %v2330
    %v2347 = vsub.f32 %v2307, %v2331
    %v2348 = vsub.f32 %v2308, %v2332
    %v2349 = vsub.f32 %v2309, %v2333
    %v2350 = vmul.f32 %v2342, 0.9
    %v2351 = vmul.f32 %v2343, 0.9
    %v2352 = vmul.f32 %v2344, 0.9
    %v2353 = vmul.f32 %v2345, 0.9
    %v2354 = vmul.f32 %v2346, 0.9
    %v2355 = vmul.f32 %v2347, 0.9
    %v2356 = vmul.f32 %v2348, 0.9
    %v2357 = vmul.f32 %v2349, 0.9
    %v2358 = vadd.f32 %v2350, %v1152
    %v2359 = vadd.f32 %v2351, %v1292
    %v2360 = vadd.f32 %v2352, %v1432
    %v2361 = vadd.f32 %v2353, %v1572
    %v2362 = vadd.f32 %v2354, %v1712
    %v2363 = vadd.f32 %v2355, %v1852
    %v2364 = vadd.f32 %v2356, %v1992
    %v2365 = vadd.f32 %v2357, %v2132
    %vm2366 = vcmp.ge.f32.partialorder %v2358, 1.0
    %vm2367 = vcmp.ge.f32.partialorder %v2359, 1.0
    %vm2368 = vcmp.ge.f32.partialorder %v2360, 1.0
    %vm2369 = vcmp.ge.f32.partialorder %v2361, 1.0
    %vm2370 = vcmp.ge.f32.partialorder %v2362, 1.0
    %vm2371 = vcmp.ge.f32.partialorder %v2363, 1.0
    %vm2372 = vcmp.ge.f32.partialorder %v2364, 1.0
    %vm2373 = vcmp.ge.f32.partialorder %v2365, 1.0
    %v2374 = vsel %vm2366, 1, 0
    %v2375 = vsel %vm2367, 1, 0
    %v2376 = vsel %vm2368, 1, 0
    %v2377 = vsel %vm2369, 1, 0
    %v2378 = vsel %vm2370, 1, 0
    %v2379 = vsel %vm2371, 1, 0
    %v2380 = vsel %vm2372, 1, 0
    %v2381 = vsel %vm2373, 1, 0
    %v2382 = vcvt.s32.f32 %v2374
    %v2383 = vcvt.s32.f32 %v2375
    %v2384 = vcvt.s32.f32 %v2376
    %v2385 = vcvt.s32.f32 %v2377
    %v2386 = vcvt.s32.f32 %v2378
    %v2387 = vcvt.s32.f32 %v2379
    %v2388 = vcvt.s32.f32 %v2380
    %v2389 = vcvt.s32.f32 %v2381
    %2390 = vst [vmem:[#allocation2 + $0x100] sm:$0xff] %v2382
    %2391 = vst [vmem:[#allocation2 + $0x108] sm:$0xff] %v2383
    %2392 = vst [vmem:[#allocation2 + $0x110] sm:$0xff] %v2384
    %2393 = vst [vmem:[#allocation2 + $0x118] sm:$0xff] %v2385
    %2394 = vst [vmem:[#allocation2 + $0x120] sm:$0xff] %v2386
    %2395 = vst [vmem:[#allocation2 + $0x128] sm:$0xff] %v2387
    %2396 = vst [vmem:[#allocation2 + $0x130] sm:$0xff] %v2388
    %2397 = vst [vmem:[#allocation2 + $0x138] sm:$0xff] %v2389
    %v2398 = vsub.f32 %v2358, %v2382
    %v2399 = vsub.f32 %v2359, %v2383
    %v2400 = vsub.f32 %v2360, %v2384
    %v2401 = vsub.f32 %v2361, %v2385
    %v2402 = vsub.f32 %v2362, %v2386
    %v2403 = vsub.f32 %v2363, %v2387
    %v2404 = vsub.f32 %v2364, %v2388
    %v2405 = vsub.f32 %v2365, %v2389
    %v2406 = vmul.f32 %v2398, 0.9
    %v2407 = vmul.f32 %v2399, 0.9
    %v2408 = vmul.f32 %v2400, 0.9
    %v2409 = vmul.f32 %v2401, 0.9
    %v2410 = vmul.f32 %v2402, 0.9
    %v2411 = vmul.f32 %v2403, 0.9
    %v2412 = vmul.f32 %v2404, 0.9
    %v2413 = vmul.f32 %v2405, 0.9
    %v2414 = vadd.f32 %v2406, %v1152
    %v2415 = vadd.f32 %v2407, %v1292
    %v2416 = vadd.f32 %v2408, %v1432
    %v2417 = vadd.f32 %v2409, %v1572
    %v2418 = vadd.f32 %v2410, %v1712
    %v2419 = vadd.f32 %v2411, %v1852
    %v2420 = vadd.f32 %v2412, %v1992
    %v2421 = vadd.f32 %v2413, %v2132
    %vm2422 = vcmp.ge.f32.partialorder %v2414, 1.0
    %vm2423 = vcmp.ge.f32.partialorder %v2415, 1.0
    %vm2424 = vcmp.ge.f32.partialorder %v2416, 1.0
    %vm2425 = vcmp.ge.f32.partialorder %v2417, 1.0
    %vm2426 = vcmp.ge.f32.partialorder %v2418, 1.0
    %vm2427 = vcmp.ge.f32.partialorder %v2419, 1.0
    %vm2428 = vcmp.ge.f32.partialorder %v2420, 1.0
    %vm2429 = vcmp.ge.f32.partialorder %v2421, 1.0
    %v2430 = vsel %vm2422, 1, 0
    %v2431 = vsel %vm2423, 1, 0
    %v2432 = vsel %vm2424, 1, 0
    %v2433 = vsel %vm2425, 1, 0
    %v2434 = vsel %vm2426, 1, 0
    %v2435 = vsel %vm2427, 1, 0
    %v2436 = vsel %vm2428, 1, 0
    %v2437 = vsel %vm2429, 1, 0
    %v2438 = vcvt.s32.f32 %v2430
    %v2439 = vcvt.s32.f32 %v2431
    %v2440 = vcvt.s32.f32 %v2432
    %v2441 = vcvt.s32.f32 %v2433
    %v2442 = vcvt.s32.f32 %v2434
    %v2443 = vcvt.s32.f32 %v2435
    %v2444 = vcvt.s32.f32 %v2436
    %v2445 = vcvt.s32.f32 %v2437
    %2446 = vst [vmem:[#allocation2 + $0x140] sm:$0xff] %v2438
    %2447 = vst [vmem:[#allocation2 + $0x148] sm:$0xff] %v2439
    %2448 = vst [vmem:[#allocation2 + $0x150] sm:$0xff] %v2440
    %2449 = vst [vmem:[#allocation2 + $0x158] sm:$0xff] %v2441
    %2450 = vst [vmem:[#allocation2 + $0x160] sm:$0xff] %v2442
    %2451 = vst [vmem:[#allocation2 + $0x168] sm:$0xff] %v2443
    %2452 = vst [vmem:[#allocation2 + $0x170] sm:$0xff] %v2444
    %2453 = vst [vmem:[#allocation2 + $0x178] sm:$0xff] %v2445
    %v2454 = vsub.f32 %v2414, %v2438
    %v2455 = vsub.f32 %v2415, %v2439
    %v2456 = vsub.f32 %v2416, %v2440
    %v2457 = vsub.f32 %v2417, %v2441
    %v2458 = vsub.f32 %v2418, %v2442
    %v2459 = vsub.f32 %v2419, %v2443
    %v2460 = vsub.f32 %v2420, %v2444
    %v2461 = vsub.f32 %v2421, %v2445
    %v2462 = vmul.f32 %v2454, 0.9
    %v2463 = vmul.f32 %v2455, 0.9
    %v2464 = vmul.f32 %v2456, 0.9
    %v2465 = vmul.f32 %v2457, 0.9
    %v2466 = vmul.f32 %v2458, 0.9
    %v2467 = vmul.f32 %v2459, 0.9
    %v2468 = vmul.f32 %v2460, 0.9
    %v2469 = vmul.f32 %v2461, 0.9
    %v2470 = vadd.f32 %v2462, %v1152
    %v2471 = vadd.f32 %v2463, %v1292
    %v2472 = vadd.f32 %v2464, %v1432
    %v2473 = vadd.f32 %v2465, %v1572
    %v2474 = vadd.f32 %v2466, %v1712
    %v2475 = vadd.f32 %v2467, %v1852
    %v2476 = vadd.f32 %v2468, %v1992
    %v2477 = vadd.f32 %v2469, %v2132
    %vm2478 = vcmp.ge.f32.partialorder %v2470, 1.0
    %vm2479 = vcmp.ge.f32.partialorder %v2471, 1.0
    %vm2480 = vcmp.ge.f32.partialorder %v2472, 1.0
    %vm2481 = vcmp.ge.f32.partialorder %v2473, 1.0
    %vm2482 = vcmp.ge.f32.partialorder %v2474, 1.0
    %vm2483 = vcmp.ge.f32.partialorder %v2475, 1.0
    %vm2484 = vcmp.ge.f32.partialorder %v2476, 1.0
    %vm2485 = vcmp.ge.f32.partialorder %v2477, 1.0
    %v2486 = vsel %vm2478, 1, 0
    %v2487 = vsel %vm2479, 1, 0
    %v2488 = vsel %vm2480, 1, 0
    %v2489 = vsel %vm2481, 1, 0
    %v2490 = vsel %vm2482, 1, 0
    %v2491 = vsel %vm2483, 1, 0
    %v2492 = vsel %vm2484, 1, 0
    %v2493 = vsel %vm2485, 1, 0
    %v2494 = vcvt.s32.f32 %v2486
    %v2495 = vcvt.s32.f32 %v2487
    %v2496 = vcvt.s32.f32 %v2488
    %v2497 = vcvt.s32.f32 %v2489
    %v2498 = vcvt.s32.f32 %v2490
    %v2499 = vcvt.s32.f32 %v2491
    %v2500 = vcvt.s32.f32 %v2492
    %v2501 = vcvt.s32.f32 %v2493
    %2502 = vst [vmem:[#allocation2 + $0x180] sm:$0xff] %v2494
    %2503 = vst [vmem:[#allocation2 + $0x188] sm:$0xff] %v2495
    %2504 = vst [vmem:[#allocation2 + $0x190] sm:$0xff] %v2496
    %2505 = vst [vmem:[#allocation2 + $0x198] sm:$0xff] %v2497
    %2506 = vst [vmem:[#allocation2 + $0x1a0] sm:$0xff] %v2498
    %2507 = vst [vmem:[#allocation2 + $0x1a8] sm:$0xff] %v2499
    %2508 = vst [vmem:[#allocation2 + $0x1b0] sm:$0xff] %v2500
    %2509 = vst [vmem:[#allocation2 + $0x1b8] sm:$0xff] %v2501
    %v2510 = vsub.f32 %v2470, %v2494
    %v2511 = vsub.f32 %v2471, %v2495
    %v2512 = vsub.f32 %v2472, %v2496
    %v2513 = vsub.f32 %v2473, %v2497
    %v2514 = vsub.f32 %v2474, %v2498
    %v2515 = vsub.f32 %v2475, %v2499
    %v2516 = vsub.f32 %v2476, %v2500
    %v2517 = vsub.f32 %v2477, %v2501
    %v2518 = vmul.f32 %v2510, 0.9
    %v2519 = vmul.f32 %v2511, 0.9
    %v2520 = vmul.f32 %v2512, 0.9
    %v2521 = vmul.f32 %v2513, 0.9
    %v2522 = vmul.f32 %v2514, 0.9
    %v2523 = vmul.f32 %v2515, 0.9
    %v2524 = vmul.f32 %v2516, 0.9
    %v2525 = vmul.f32 %v2517, 0.9
    %v2526 = vadd.f32 %v2518, %v1152
    %v2527 = vadd.f32 %v2519, %v1292
    %v2528 = vadd.f32 %v2520, %v1432
    %v2529 = vadd.f32 %v2521, %v1572
    %v2530 = vadd.f32 %v2522, %v1712
    %v2531 = vadd.f32 %v2523, %v1852
    %v2532 = vadd.f32 %v2524, %v1992
    %v2533 = vadd.f32 %v2525, %v2132
    %vm2534 = vcmp.ge.f32.partialorder %v2526, 1.0
    %vm2535 = vcmp.ge.f32.partialorder %v2527, 1.0
    %vm2536 = vcmp.ge.f32.partialorder %v2528, 1.0
    %vm2537 = vcmp.ge.f32.partialorder %v2529, 1.0
    %vm2538 = vcmp.ge.f32.partialorder %v2530, 1.0
    %vm2539 = vcmp.ge.f32.partialorder %v2531, 1.0
    %vm2540 = vcmp.ge.f32.partialorder %v2532, 1.0
    %vm2541 = vcmp.ge.f32.partialorder %v2533, 1.0
    %v2542 = vsel %vm2534, 1, 0
    %v2543 = vsel %vm2535, 1, 0
    %v2544 = vsel %vm2536, 1, 0
    %v2545 = vsel %vm2537, 1, 0
    %v2546 = vsel %vm2538, 1, 0
    %v2547 = vsel %vm2539, 1, 0
    %v2548 = vsel %vm2540, 1, 0
    %v2549 = vsel %vm2541, 1, 0
    %v2550 = vcvt.s32.f32 %v2542
    %v2551 = vcvt.s32.f32 %v2543
    %v2552 = vcvt.s32.f32 %v2544
    %v2553 = vcvt.s32.f32 %v2545
    %v2554 = vcvt.s32.f32 %v2546
    %v2555 = vcvt.s32.f32 %v2547
    %v2556 = vcvt.s32.f32 %v2548
    %v2557 = vcvt.s32.f32 %v2549
    %2558 = vst [vmem:[#allocation2 + $0x1c0] sm:$0xff] %v2550
    %2559 = vst [vmem:[#allocation2 + $0x1c8] sm:$0xff] %v2551
    %2560 = vst [vmem:[#allocation2 + $0x1d0] sm:$0xff] %v2552
    %2561 = vst [vmem:[#allocation2 + $0x1d8] sm:$0xff] %v2553
    %2562 = vst [vmem:[#allocation2 + $0x1e0] sm:$0xff] %v2554
    %2563 = vst [vmem:[#allocation2 + $0x1e8] sm:$0xff] %v2555
    %2564 = vst [vmem:[#allocation2 + $0x1f0] sm:$0xff] %v2556
    %2565 = vst [vmem:[#allocation2 + $0x1f8] sm:$0xff] %v2557
    %v2566 = vsub.f32 %v2526, %v2550
    %v2567 = vsub.f32 %v2527, %v2551
    %v2568 = vsub.f32 %v2528, %v2552
    %v2569 = vsub.f32 %v2529, %v2553
    %v2570 = vsub.f32 %v2530, %v2554
    %v2571 = vsub.f32 %v2531, %v2555
    %v2572 = vsub.f32 %v2532, %v2556
    %v2573 = vsub.f32 %v2533, %v2557
    %v2574 = vmul.f32 %v2566, 0.9
    %v2575 = vmul.f32 %v2567, 0.9
    %v2576 = vmul.f32 %v2568, 0.9
    %v2577 = vmul.f32 %v2569, 0.9
    %v2578 = vmul.f32 %v2570, 0.9
    %v2579 = vmul.f32 %v2571, 0.9
    %v2580 = vmul.f32 %v2572, 0.9
    %v2581 = vmul.f32 %v2573, 0.9
    %v2582 = vadd.f32 %v2574, %v1152
    %v2583 = vadd.f32 %v2575, %v1292
    %v2584 = vadd.f32 %v2576, %v1432
    %v2585 = vadd.f32 %v2577, %v1572
    %v2586 = vadd.f32 %v2578, %v1712
    %v2587 = vadd.f32 %v2579, %v1852
    %v2588 = vadd.f32 %v2580, %v1992
    %v2589 = vadd.f32 %v2581, %v2132
    %vm2590 = vcmp.ge.f32.partialorder %v2582, 1.0
    %vm2591 = vcmp.ge.f32.partialorder %v2583, 1.0
    %vm2592 = vcmp.ge.f32.partialorder %v2584, 1.0
    %vm2593 = vcmp.ge.f32.partialorder %v2585, 1.0
    %vm2594 = vcmp.ge.f32.partialorder %v2586, 1.0
    %vm2595 = vcmp.ge.f32.partialorder %v2587, 1.0
    %vm2596 = vcmp.ge.f32.partialorder %v2588, 1.0
    %vm2597 = vcmp.ge.f32.partialorder %v2589, 1.0
    %v2598 = vsel %vm2590, 1, 0
    %v2599 = vsel %vm2591, 1, 0
    %v2600 = vsel %vm2592, 1, 0
    %v2601 = vsel %vm2593, 1, 0
    %v2602 = vsel %vm2594, 1, 0
    %v2603 = vsel %vm2595, 1, 0
    %v2604 = vsel %vm2596, 1, 0
    %v2605 = vsel %vm2597, 1, 0
    %v2606 = vcvt.s32.f32 %v2598
    %v2607 = vcvt.s32.f32 %v2599
    %v2608 = vcvt.s32.f32 %v2600
    %v2609 = vcvt.s32.f32 %v2601
    %v2610 = vcvt.s32.f32 %v2602
    %v2611 = vcvt.s32.f32 %v2603
    %v2612 = vcvt.s32.f32 %v2604
    %v2613 = vcvt.s32.f32 %v2605
    %2614 = vst [vmem:[#allocation2 + $0x200] sm:$0xff] %v2606
    %2615 = vst [vmem:[#allocation2 + $0x208] sm:$0xff] %v2607
    %2616 = vst [vmem:[#allocation2 + $0x210] sm:$0xff] %v2608
    %2617 = vst [vmem:[#allocation2 + $0x218] sm:$0xff] %v2609
    %2618 = vst [vmem:[#allocation2 + $0x220] sm:$0xff] %v2610
    %2619 = vst [vmem:[#allocation2 + $0x228] sm:$0xff] %v2611
    %2620 = vst [vmem:[#allocation2 + $0x230] sm:$0xff] %v2612
    %2621 = vst [vmem:[#allocation2 + $0x238] sm:$0xff] %v2613
    %v2622 = vsub.f32 %v2582, %v2606
    %v2623 = vsub.f32 %v2583, %v2607
    %v2624 = vsub.f32 %v2584, %v2608
    %v2625 = vsub.f32 %v2585, %v2609
    %v2626 = vsub.f32 %v2586, %v2610
    %v2627 = vsub.f32 %v2587, %v2611
    %v2628 = vsub.f32 %v2588, %v2612
    %v2629 = vsub.f32 %v2589, %v2613
    %v2630 = vmul.f32 %v2622, 0.9
    %v2631 = vmul.f32 %v2623, 0.9
    %v2632 = vmul.f32 %v2624, 0.9
    %v2633 = vmul.f32 %v2625, 0.9
    %v2634 = vmul.f32 %v2626, 0.9
    %v2635 = vmul.f32 %v2627, 0.9
    %v2636 = vmul.f32 %v2628, 0.9
    %v2637 = vmul.f32 %v2629, 0.9
    %v2638 = vadd.f32 %v2630, %v1152
    %v2639 = vadd.f32 %v2631, %v1292
    %v2640 = vadd.f32 %v2632, %v1432
    %v2641 = vadd.f32 %v2633, %v1572
    %v2642 = vadd.f32 %v2634, %v1712
    %v2643 = vadd.f32 %v2635, %v1852
    %v2644 = vadd.f32 %v2636, %v1992
    %v2645 = vadd.f32 %v2637, %v2132
    %vm2646 = vcmp.ge.f32.partialorder %v2638, 1.0
    %vm2647 = vcmp.ge.f32.partialorder %v2639, 1.0
    %vm2648 = vcmp.ge.f32.partialorder %v2640, 1.0
    %vm2649 = vcmp.ge.f32.partialorder %v2641, 1.0
    %vm2650 = vcmp.ge.f32.partialorder %v2642, 1.0
    %vm2651 = vcmp.ge.f32.partialorder %v2643, 1.0
    %vm2652 = vcmp.ge.f32.partialorder %v2644, 1.0
    %vm2653 = vcmp.ge.f32.partialorder %v2645, 1.0
    %v2654 = vsel %vm2646, 1, 0
    %v2655 = vsel %vm2647, 1, 0
    %v2656 = vsel %vm2648, 1, 0
    %v2657 = vsel %vm2649, 1, 0
    %v2658 = vsel %vm2650, 1, 0
    %v2659 = vsel %vm2651, 1, 0
    %v2660 = vsel %vm2652, 1, 0
    %v2661 = vsel %vm2653, 1, 0
    %v2662 = vcvt.s32.f32 %v2654
    %v2663 = vcvt.s32.f32 %v2655
    %v2664 = vcvt.s32.f32 %v2656
    %v2665 = vcvt.s32.f32 %v2657
    %v2666 = vcvt.s32.f32 %v2658
    %v2667 = vcvt.s32.f32 %v2659
    %v2668 = vcvt.s32.f32 %v2660
    %v2669 = vcvt.s32.f32 %v2661
    %2670 = vst [vmem:[#allocation2 + $0x240] sm:$0xff] %v2662
    %2671 = vst [vmem:[#allocation2 + $0x248] sm:$0xff] %v2663
    %2672 = vst [vmem:[#allocation2 + $0x250] sm:$0xff] %v2664
    %2673 = vst [vmem:[#allocation2 + $0x258] sm:$0xff] %v2665
    %2674 = vst [vmem:[#allocation2 + $0x260] sm:$0xff] %v2666
    %2675 = vst [vmem:[#allocation2 + $0x268] sm:$0xff] %v2667
    %2676 = vst [vmem:[#allocation2 + $0x270] sm:$0xff] %v2668
    %2677 = vst [vmem:[#allocation2 + $0x278] sm:$0xff] %v2669
    %v2678 = vsub.f32 %v2638, %v2662
    %v2679 = vsub.f32 %v2639, %v2663
    %v2680 = vsub.f32 %v2640, %v2664
    %v2681 = vsub.f32 %v2641, %v2665
    %v2682 = vsub.f32 %v2642, %v2666
    %v2683 = vsub.f32 %v2643, %v2667
    %v2684 = vsub.f32 %v2644, %v2668
    %v2685 = vsub.f32 %v2645, %v2669
    %v2686 = vmul.f32 %v2678, 0.9
    %v2687 = vmul.f32 %v2679, 0.9
    %v2688 = vmul.f32 %v2680, 0.9
    %v2689 = vmul.f32 %v2681, 0.9
    %v2690 = vmul.f32 %v2682, 0.9
    %v2691 = vmul.f32 %v2683, 0.9
    %v2692 = vmul.f32 %v2684, 0.9
    %v2693 = vmul.f32 %v2685, 0.9
    %v2694 = vadd.f32 %v2686, %v1152
    %v2695 = vadd.f32 %v2687, %v1292
    %v2696 = vadd.f32 %v2688, %v1432
    %v2697 = vadd.f32 %v2689, %v1572
    %v2698 = vadd.f32 %v2690, %v1712
    %v2699 = vadd.f32 %v2691, %v1852
    %v2700 = vadd.f32 %v2692, %v1992
    %v2701 = vadd.f32 %v2693, %v2132
    %vm2702 = vcmp.ge.f32.partialorder %v2694, 1.0
    %vm2703 = vcmp.ge.f32.partialorder %v2695, 1.0
    %vm2704 = vcmp.ge.f32.partialorder %v2696, 1.0
    %vm2705 = vcmp.ge.f32.partialorder %v2697, 1.0
    %vm2706 = vcmp.ge.f32.partialorder %v2698, 1.0
    %vm2707 = vcmp.ge.f32.partialorder %v2699, 1.0
    %vm2708 = vcmp.ge.f32.partialorder %v2700, 1.0
    %vm2709 = vcmp.ge.f32.partialorder %v2701, 1.0
    %v2710 = vsel %vm2702, 1, 0
    %v2711 = vsel %vm2703, 1, 0
    %v2712 = vsel %vm2704, 1, 0
    %v2713 = vsel %vm2705, 1, 0
    %v2714 = vsel %vm2706, 1, 0
    %v2715 = vsel %vm2707, 1, 0
    %v2716 = vsel %vm2708, 1, 0
    %v2717 = vsel %vm2709, 1, 0
    %v2718 = vcvt.s32.f32 %v2710
    %v2719 = vcvt.s32.f32 %v2711
    %v2720 = vcvt.s32.f32 %v2712
    %v2721 = vcvt.s32.f32 %v2713
    %v2722 = vcvt.s32.f32 %v2714
    %v2723 = vcvt.s32.f32 %v2715
    %v2724 = vcvt.s32.f32 %v2716
    %v2725 = vcvt.s32.f32 %v2717
    %2726 = vst [vmem:[#allocation2 + $0x280] sm:$0xff] %v2718
    %2727 = vst [vmem:[#allocation2 + $0x288] sm:$0xff] %v2719
    %2728 = vst [vmem:[#allocation2 + $0x290] sm:$0xff] %v2720
    %2729 = vst [vmem:[#allocation2 + $0x298] sm:$0xff] %v2721
    %2730 = vst [vmem:[#allocation2 + $0x2a0] sm:$0xff] %v2722
    %2731 = vst [vmem:[#allocation2 + $0x2a8] sm:$0xff] %v2723
    %2732 = vst [vmem:[#allocation2 + $0x2b0] sm:$0xff] %v2724
    %2733 = vst [vmem:[#allocation2 + $0x2b8] sm:$0xff] %v2725
    %v2734 = vsub.f32 %v2694, %v2718
    %v2735 = vsub.f32 %v2695, %v2719
    %v2736 = vsub.f32 %v2696, %v2720
    %v2737 = vsub.f32 %v2697, %v2721
    %v2738 = vsub.f32 %v2698, %v2722
    %v2739 = vsub.f32 %v2699, %v2723
    %v2740 = vsub.f32 %v2700, %v2724
    %v2741 = vsub.f32 %v2701, %v2725
    %v2742 = vmul.f32 %v2734, 0.9
    %v2743 = vmul.f32 %v2735, 0.9
    %v2744 = vmul.f32 %v2736, 0.9
    %v2745 = vmul.f32 %v2737, 0.9
    %v2746 = vmul.f32 %v2738, 0.9
    %v2747 = vmul.f32 %v2739, 0.9
    %v2748 = vmul.f32 %v2740, 0.9
    %v2749 = vmul.f32 %v2741, 0.9
    %v2750 = vadd.f32 %v2742, %v1152
    %v2751 = vadd.f32 %v2743, %v1292
    %v2752 = vadd.f32 %v2744, %v1432
    %v2753 = vadd.f32 %v2745, %v1572
    %v2754 = vadd.f32 %v2746, %v1712
    %v2755 = vadd.f32 %v2747, %v1852
    %v2756 = vadd.f32 %v2748, %v1992
    %v2757 = vadd.f32 %v2749, %v2132
    %vm2758 = vcmp.ge.f32.partialorder %v2750, 1.0
    %vm2759 = vcmp.ge.f32.partialorder %v2751, 1.0
    %vm2760 = vcmp.ge.f32.partialorder %v2752, 1.0
    %vm2761 = vcmp.ge.f32.partialorder %v2753, 1.0
    %vm2762 = vcmp.ge.f32.partialorder %v2754, 1.0
    %vm2763 = vcmp.ge.f32.partialorder %v2755, 1.0
    %vm2764 = vcmp.ge.f32.partialorder %v2756, 1.0
    %vm2765 = vcmp.ge.f32.partialorder %v2757, 1.0
    %v2766 = vsel %vm2758, 1, 0
    %v2767 = vsel %vm2759, 1, 0
    %v2768 = vsel %vm2760, 1, 0
    %v2769 = vsel %vm2761, 1, 0
    %v2770 = vsel %vm2762, 1, 0
    %v2771 = vsel %vm2763, 1, 0
    %v2772 = vsel %vm2764, 1, 0
    %v2773 = vsel %vm2765, 1, 0
    %v2774 = vcvt.s32.f32 %v2766
    %v2775 = vcvt.s32.f32 %v2767
    %v2776 = vcvt.s32.f32 %v2768
    %v2777 = vcvt.s32.f32 %v2769
    %v2778 = vcvt.s32.f32 %v2770
    %v2779 = vcvt.s32.f32 %v2771
    %v2780 = vcvt.s32.f32 %v2772
    %v2781 = vcvt.s32.f32 %v2773
    %2782 = vst [vmem:[#allocation2 + $0x2c0] sm:$0xff] %v2774
    %2783 = vst [vmem:[#allocation2 + $0x2c8] sm:$0xff] %v2775
    %2784 = vst [vmem:[#allocation2 + $0x2d0] sm:$0xff] %v2776
    %2785 = vst [vmem:[#allocation2 + $0x2d8] sm:$0xff] %v2777
    %2786 = vst [vmem:[#allocation2 + $0x2e0] sm:$0xff] %v2778
    %2787 = vst [vmem:[#allocation2 + $0x2e8] sm:$0xff] %v2779
    %2788 = vst [vmem:[#allocation2 + $0x2f0] sm:$0xff] %v2780
    %2789 = vst [vmem:[#allocation2 + $0x2f8] sm:$0xff] %v2781
    %v2790 = vsub.f32 %v2750, %v2774
    %v2791 = vsub.f32 %v2751, %v2775
    %v2792 = vsub.f32 %v2752, %v2776
    %v2793 = vsub.f32 %v2753, %v2777
    %v2794 = vsub.f32 %v2754, %v2778
    %v2795 = vsub.f32 %v2755, %v2779
    %v2796 = vsub.f32 %v2756, %v2780
    %v2797 = vsub.f32 %v2757, %v2781
    %v2798 = vmul.f32 %v2790, 0.9
    %v2799 = vmul.f32 %v2791, 0.9
    %v2800 = vmul.f32 %v2792, 0.9
    %v2801 = vmul.f32 %v2793, 0.9
    %v2802 = vmul.f32 %v2794, 0.9
    %v2803 = vmul.f32 %v2795, 0.9
    %v2804 = vmul.f32 %v2796, 0.9
    %v2805 = vmul.f32 %v2797, 0.9
    %v2806 = vadd.f32 %v2798, %v1152
    %v2807 = vadd.f32 %v2799, %v1292
    %v2808 = vadd.f32 %v2800, %v1432
    %v2809 = vadd.f32 %v2801, %v1572
    %v2810 = vadd.f32 %v2802, %v1712
    %v2811 = vadd.f32 %v2803, %v1852
    %v2812 = vadd.f32 %v2804, %v1992
    %v2813 = vadd.f32 %v2805, %v2132
    %vm2814 = vcmp.ge.f32.partialorder %v2806, 1.0
    %vm2815 = vcmp.ge.f32.partialorder %v2807, 1.0
    %vm2816 = vcmp.ge.f32.partialorder %v2808, 1.0
    %vm2817 = vcmp.ge.f32.partialorder %v2809, 1.0
    %vm2818 = vcmp.ge.f32.partialorder %v2810, 1.0
    %vm2819 = vcmp.ge.f32.partialorder %v2811, 1.0
    %vm2820 = vcmp.ge.f32.partialorder %v2812, 1.0
    %vm2821 = vcmp.ge.f32.partialorder %v2813, 1.0
    %v2822 = vsel %vm2814, 1, 0
    %v2823 = vsel %vm2815, 1, 0
    %v2824 = vsel %vm2816, 1, 0
    %v2825 = vsel %vm2817, 1, 0
    %v2826 = vsel %vm2818, 1, 0
    %v2827 = vsel %vm2819, 1, 0
    %v2828 = vsel %vm2820, 1, 0
    %v2829 = vsel %vm2821, 1, 0
    %v2830 = vcvt.s32.f32 %v2822
    %v2831 = vcvt.s32.f32 %v2823
    %v2832 = vcvt.s32.f32 %v2824
    %v2833 = vcvt.s32.f32 %v2825
    %v2834 = vcvt.s32.f32 %v2826
    %v2835 = vcvt.s32.f32 %v2827
    %v2836 = vcvt.s32.f32 %v2828
    %v2837 = vcvt.s32.f32 %v2829
    %2838 = vst [vmem:[#allocation2 + $0x300] sm:$0xff] %v2830
    %2839 = vst [vmem:[#allocation2 + $0x308] sm:$0xff] %v2831
    %2840 = vst [vmem:[#allocation2 + $0x310] sm:$0xff] %v2832
    %2841 = vst [vmem:[#allocation2 + $0x318] sm:$0xff] %v2833
    %2842 = vst [vmem:[#allocation2 + $0x320] sm:$0xff] %v2834
    %2843 = vst [vmem:[#allocation2 + $0x328] sm:$0xff] %v2835
    %2844 = vst [vmem:[#allocation2 + $0x330] sm:$0xff] %v2836
    %2845 = vst [vmem:[#allocation2 + $0x338] sm:$0xff] %v2837
    %v2846 = vsub.f32 %v2806, %v2830
    %v2847 = vsub.f32 %v2807, %v2831
    %v2848 = vsub.f32 %v2808, %v2832
    %v2849 = vsub.f32 %v2809, %v2833
    %v2850 = vsub.f32 %v2810, %v2834
    %v2851 = vsub.f32 %v2811, %v2835
    %v2852 = vsub.f32 %v2812, %v2836
    %v2853 = vsub.f32 %v2813, %v2837
    %v2854 = vmul.f32 %v2846, 0.9
    %v2855 = vmul.f32 %v2847, 0.9
    %v2856 = vmul.f32 %v2848, 0.9
    %v2857 = vmul.f32 %v2849, 0.9
    %v2858 = vmul.f32 %v2850, 0.9
    %v2859 = vmul.f32 %v2851, 0.9
    %v2860 = vmul.f32 %v2852, 0.9
    %v2861 = vmul.f32 %v2853, 0.9
    %v2862 = vadd.f32 %v2854, %v1152
    %v2863 = vadd.f32 %v2855, %v1292
    %v2864 = vadd.f32 %v2856, %v1432
    %v2865 = vadd.f32 %v2857, %v1572
    %v2866 = vadd.f32 %v2858, %v1712
    %v2867 = vadd.f32 %v2859, %v1852
    %v2868 = vadd.f32 %v2860, %v1992
    %v2869 = vadd.f32 %v2861, %v2132
    %vm2870 = vcmp.ge.f32.partialorder %v2862, 1.0
    %vm2871 = vcmp.ge.f32.partialorder %v2863, 1.0
    %vm2872 = vcmp.ge.f32.partialorder %v2864, 1.0
    %vm2873 = vcmp.ge.f32.partialorder %v2865, 1.0
    %vm2874 = vcmp.ge.f32.partialorder %v2866, 1.0
    %vm2875 = vcmp.ge.f32.partialorder %v2867, 1.0
    %vm2876 = vcmp.ge.f32.partialorder %v2868, 1.0
    %vm2877 = vcmp.ge.f32.partialorder %v2869, 1.0
    %v2878 = vsel %vm2870, 1, 0
    %v2879 = vsel %vm2871, 1, 0
    %v2880 = vsel %vm2872, 1, 0
    %v2881 = vsel %vm2873, 1, 0
    %v2882 = vsel %vm2874, 1, 0
    %v2883 = vsel %vm2875, 1, 0
    %v2884 = vsel %vm2876, 1, 0
    %v2885 = vsel %vm2877, 1, 0
    %v2886 = vcvt.s32.f32 %v2878
    %v2887 = vcvt.s32.f32 %v2879
    %v2888 = vcvt.s32.f32 %v2880
    %v2889 = vcvt.s32.f32 %v2881
    %v2890 = vcvt.s32.f32 %v2882
    %v2891 = vcvt.s32.f32 %v2883
    %v2892 = vcvt.s32.f32 %v2884
    %v2893 = vcvt.s32.f32 %v2885
    %2894 = vst [vmem:[#allocation2 + $0x340] sm:$0xff] %v2886
    %2895 = vst [vmem:[#allocation2 + $0x348] sm:$0xff] %v2887
    %2896 = vst [vmem:[#allocation2 + $0x350] sm:$0xff] %v2888
    %2897 = vst [vmem:[#allocation2 + $0x358] sm:$0xff] %v2889
    %2898 = vst [vmem:[#allocation2 + $0x360] sm:$0xff] %v2890
    %2899 = vst [vmem:[#allocation2 + $0x368] sm:$0xff] %v2891
    %2900 = vst [vmem:[#allocation2 + $0x370] sm:$0xff] %v2892
    %2901 = vst [vmem:[#allocation2 + $0x378] sm:$0xff] %v2893
    %v2902 = vsub.f32 %v2862, %v2886
    %v2903 = vsub.f32 %v2863, %v2887
    %v2904 = vsub.f32 %v2864, %v2888
    %v2905 = vsub.f32 %v2865, %v2889
    %v2906 = vsub.f32 %v2866, %v2890
    %v2907 = vsub.f32 %v2867, %v2891
    %v2908 = vsub.f32 %v2868, %v2892
    %v2909 = vsub.f32 %v2869, %v2893
    %v2910 = vmul.f32 %v2902, 0.9
    %v2911 = vmul.f32 %v2903, 0.9
    %v2912 = vmul.f32 %v2904, 0.9
    %v2913 = vmul.f32 %v2905, 0.9
    %v2914 = vmul.f32 %v2906, 0.9
    %v2915 = vmul.f32 %v2907, 0.9
    %v2916 = vmul.f32 %v2908, 0.9
    %v2917 = vmul.f32 %v2909, 0.9
    %v2918 = vadd.f32 %v2910, %v1152
    %v2919 = vadd.f32 %v2911, %v1292
    %v2920 = vadd.f32 %v2912, %v1432
    %v2921 = vadd.f32 %v2913, %v1572
    %v2922 = vadd.f32 %v2914, %v1712
    %v2923 = vadd.f32 %v2915, %v1852
    %v2924 = vadd.f32 %v2916, %v1992
    %v2925 = vadd.f32 %v2917, %v2132
    %vm2926 = vcmp.ge.f32.partialorder %v2918, 1.0
    %vm2927 = vcmp.ge.f32.partialorder %v2919, 1.0
    %vm2928 = vcmp.ge.f32.partialorder %v2920, 1.0
    %vm2929 = vcmp.ge.f32.partialorder %v2921, 1.0
    %vm2930 = vcmp.ge.f32.partialorder %v2922, 1.0
    %vm2931 = vcmp.ge.f32.partialorder %v2923, 1.0
    %vm2932 = vcmp.ge.f32.partialorder %v2924, 1.0
    %vm2933 = vcmp.ge.f32.partialorder %v2925, 1.0
    %v2934 = vsel %vm2926, 1, 0
    %v2935 = vsel %vm2927, 1, 0
    %v2936 = vsel %vm2928, 1, 0
    %v2937 = vsel %vm2929, 1, 0
    %v2938 = vsel %vm2930, 1, 0
    %v2939 = vsel %vm2931, 1, 0
    %v2940 = vsel %vm2932, 1, 0
    %v2941 = vsel %vm2933, 1, 0
    %v2942 = vcvt.s32.f32 %v2934
    %v2943 = vcvt.s32.f32 %v2935
    %v2944 = vcvt.s32.f32 %v2936
    %v2945 = vcvt.s32.f32 %v2937
    %v2946 = vcvt.s32.f32 %v2938
    %v2947 = vcvt.s32.f32 %v2939
    %v2948 = vcvt.s32.f32 %v2940
    %v2949 = vcvt.s32.f32 %v2941
    %2950 = vst [vmem:[#allocation2 + $0x380] sm:$0xff] %v2942
    %2951 = vst [vmem:[#allocation2 + $0x388] sm:$0xff] %v2943
    %2952 = vst [vmem:[#allocation2 + $0x390] sm:$0xff] %v2944
    %2953 = vst [vmem:[#allocation2 + $0x398] sm:$0xff] %v2945
    %2954 = vst [vmem:[#allocation2 + $0x3a0] sm:$0xff] %v2946
    %2955 = vst [vmem:[#allocation2 + $0x3a8] sm:$0xff] %v2947
    %2956 = vst [vmem:[#allocation2 + $0x3b0] sm:$0xff] %v2948
    %2957 = vst [vmem:[#allocation2 + $0x3b8] sm:$0xff] %v2949
    %v2958 = vsub.f32 %v2918, %v2942
    %v2959 = vsub.f32 %v2919, %v2943
    %v2960 = vsub.f32 %v2920, %v2944
    %v2961 = vsub.f32 %v2921, %v2945
    %v2962 = vsub.f32 %v2922, %v2946
    %v2963 = vsub.f32 %v2923, %v2947
    %v2964 = vsub.f32 %v2924, %v2948
    %v2965 = vsub.f32 %v2925, %v2949
    %v2966 = vmul.f32 %v2958, 0.9
    %v2967 = vmul.f32 %v2959, 0.9
    %v2968 = vmul.f32 %v2960, 0.9
    %v2969 = vmul.f32 %v2961, 0.9
    %v2970 = vmul.f32 %v2962, 0.9
    %v2971 = vmul.f32 %v2963, 0.9
    %v2972 = vmul.f32 %v2964, 0.9
    %v2973 = vmul.f32 %v2965, 0.9
    %v2974 = vadd.f32 %v2966, %v1152
    %v2975 = vadd.f32 %v2967, %v1292
    %v2976 = vadd.f32 %v2968, %v1432
    %v2977 = vadd.f32 %v2969, %v1572
    %v2978 = vadd.f32 %v2970, %v1712
    %v2979 = vadd.f32 %v2971, %v1852
    %v2980 = vadd.f32 %v2972, %v1992
    %v2981 = vadd.f32 %v2973, %v2132
    %vm2982 = vcmp.ge.f32.partialorder %v2974, 1.0
    %vm2983 = vcmp.ge.f32.partialorder %v2975, 1.0
    %vm2984 = vcmp.ge.f32.partialorder %v2976, 1.0
    %vm2985 = vcmp.ge.f32.partialorder %v2977, 1.0
    %vm2986 = vcmp.ge.f32.partialorder %v2978, 1.0
    %vm2987 = vcmp.ge.f32.partialorder %v2979, 1.0
    %vm2988 = vcmp.ge.f32.partialorder %v2980, 1.0
    %vm2989 = vcmp.ge.f32.partialorder %v2981, 1.0
    %v2990 = vsel %vm2982, 1, 0
    %v2991 = vsel %vm2983, 1, 0
    %v2992 = vsel %vm2984, 1, 0
    %v2993 = vsel %vm2985, 1, 0
    %v2994 = vsel %vm2986, 1, 0
    %v2995 = vsel %vm2987, 1, 0
    %v2996 = vsel %vm2988, 1, 0
    %v2997 = vsel %vm2989, 1, 0
    %v2998 = vcvt.s32.f32 %v2990
    %v2999 = vcvt.s32.f32 %v2991
    %v3000 = vcvt.s32.f32 %v2992
    %v3001 = vcvt.s32.f32 %v2993
    %v3002 = vcvt.s32.f32 %v2994
    %v3003 = vcvt.s32.f32 %v2995
    %v3004 = vcvt.s32.f32 %v2996
    %v3005 = vcvt.s32.f32 %v2997
    %3006 = vst [vmem:[#allocation2 + $0x3c0] sm:$0xff] %v2998
    %3007 = vst [vmem:[#allocation2 + $0x3c8] sm:$0xff] %v2999
    %3008 = vst [vmem:[#allocation2 + $0x3d0] sm:$0xff] %v3000
    %3009 = vst [vmem:[#allocation2 + $0x3d8] sm:$0xff] %v3001
    %3010 = vst [vmem:[#allocation2 + $0x3e0] sm:$0xff] %v3002
    %3011 = vst [vmem:[#allocation2 + $0x3e8] sm:$0xff] %v3003
    %3012 = vst [vmem:[#allocation2 + $0x3f0] sm:$0xff] %v3004
    %3013 = vst [vmem:[#allocation2 + $0x3f8] sm:$0xff] %v3005
    %v3014 = vsub.f32 %v2974, %v2998
    %v3015 = vsub.f32 %v2975, %v2999
    %v3016 = vsub.f32 %v2976, %v3000
    %v3017 = vsub.f32 %v2977, %v3001
    %v3018 = vsub.f32 %v2978, %v3002
    %v3019 = vsub.f32 %v2979, %v3003
    %v3020 = vsub.f32 %v2980, %v3004
    %v3021 = vsub.f32 %v2981, %v3005
    %v3022 = vmul.f32 %v3014, 0.9
    %v3023 = vmul.f32 %v3015, 0.9
    %v3024 = vmul.f32 %v3016, 0.9
    %v3025 = vmul.f32 %v3017, 0.9
    %v3026 = vmul.f32 %v3018, 0.9
    %v3027 = vmul.f32 %v3019, 0.9
    %v3028 = vmul.f32 %v3020, 0.9
    %v3029 = vmul.f32 %v3021, 0.9
    %v3030 = vadd.f32 %v3022, %v1152
    %v3031 = vadd.f32 %v3023, %v1292
    %v3032 = vadd.f32 %v3024, %v1432
    %v3033 = vadd.f32 %v3025, %v1572
    %v3034 = vadd.f32 %v3026, %v1712
    %v3035 = vadd.f32 %v3027, %v1852
    %v3036 = vadd.f32 %v3028, %v1992
    %v3037 = vadd.f32 %v3029, %v2132
    %vm3038 = vcmp.ge.f32.partialorder %v3030, 1.0
    %vm3039 = vcmp.ge.f32.partialorder %v3031, 1.0
    %vm3040 = vcmp.ge.f32.partialorder %v3032, 1.0
    %vm3041 = vcmp.ge.f32.partialorder %v3033, 1.0
    %vm3042 = vcmp.ge.f32.partialorder %v3034, 1.0
    %vm3043 = vcmp.ge.f32.partialorder %v3035, 1.0
    %vm3044 = vcmp.ge.f32.partialorder %v3036, 1.0
    %vm3045 = vcmp.ge.f32.partialorder %v3037, 1.0
    %v3046 = vsel %vm3038, 1, 0
    %v3047 = vsel %vm3039, 1, 0
    %v3048 = vsel %vm3040, 1, 0
    %v3049 = vsel %vm3041, 1, 0
    %v3050 = vsel %vm3042, 1, 0
    %v3051 = vsel %vm3043, 1, 0
    %v3052 = vsel %vm3044, 1, 0
    %v3053 = vsel %vm3045, 1, 0
    %v3054 = vcvt.s32.f32 %v3046
    %v3055 = vcvt.s32.f32 %v3047
    %v3056 = vcvt.s32.f32 %v3048
    %v3057 = vcvt.s32.f32 %v3049
    %v3058 = vcvt.s32.f32 %v3050
    %v3059 = vcvt.s32.f32 %v3051
    %v3060 = vcvt.s32.f32 %v3052
    %v3061 = vcvt.s32.f32 %v3053
    %3062 = vst [vmem:[#allocation2 + $0x400] sm:$0xff] %v3054
    %3063 = vst [vmem:[#allocation2 + $0x408] sm:$0xff] %v3055
    %3064 = vst [vmem:[#allocation2 + $0x410] sm:$0xff] %v3056
    %3065 = vst [vmem:[#allocation2 + $0x418] sm:$0xff] %v3057
    %3066 = vst [vmem:[#allocation2 + $0x420] sm:$0xff] %v3058
    %3067 = vst [vmem:[#allocation2 + $0x428] sm:$0xff] %v3059
    %3068 = vst [vmem:[#allocation2 + $0x430] sm:$0xff] %v3060
    %3069 = vst [vmem:[#allocation2 + $0x438] sm:$0xff] %v3061
    %v3070 = vsub.f32 %v3030, %v3054
    %v3071 = vsub.f32 %v3031, %v3055
    %v3072 = vsub.f32 %v3032, %v3056
    %v3073 = vsub.f32 %v3033, %v3057
    %v3074 = vsub.f32 %v3034, %v3058
    %v3075 = vsub.f32 %v3035, %v3059
    %v3076 = vsub.f32 %v3036, %v3060
    %v3077 = vsub.f32 %v3037, %v3061
    %v3078 = vmul.f32 %v3070, 0.9
    %v3079 = vmul.f32 %v3071, 0.9
    %v3080 = vmul.f32 %v3072, 0.9
    %v3081 = vmul.f32 %v3073, 0.9
    %v3082 = vmul.f32 %v3074, 0.9
    %v3083 = vmul.f32 %v3075, 0.9
    %v3084 = vmul.f32 %v3076, 0.9
    %v3085 = vmul.f32 %v3077, 0.9
    %v3086 = vadd.f32 %v3078, %v1152
    %v3087 = vadd.f32 %v3079, %v1292
    %v3088 = vadd.f32 %v3080, %v1432
    %v3089 = vadd.f32 %v3081, %v1572
    %v3090 = vadd.f32 %v3082, %v1712
    %v3091 = vadd.f32 %v3083, %v1852
    %v3092 = vadd.f32 %v3084, %v1992
    %v3093 = vadd.f32 %v3085, %v2132
    %vm3094 = vcmp.ge.f32.partialorder %v3086, 1.0
    %vm3095 = vcmp.ge.f32.partialorder %v3087, 1.0
    %vm3096 = vcmp.ge.f32.partialorder %v3088, 1.0
    %vm3097 = vcmp.ge.f32.partialorder %v3089, 1.0
    %vm3098 = vcmp.ge.f32.partialorder %v3090, 1.0
    %vm3099 = vcmp.ge.f32.partialorder %v3091, 1.0
    %vm3100 = vcmp.ge.f32.partialorder %v3092, 1.0
    %vm3101 = vcmp.ge.f32.partialorder %v3093, 1.0
    %v3102 = vsel %vm3094, 1, 0
    %v3103 = vsel %vm3095, 1, 0
    %v3104 = vsel %vm3096, 1, 0
    %v3105 = vsel %vm3097, 1, 0
    %v3106 = vsel %vm3098, 1, 0
    %v3107 = vsel %vm3099, 1, 0
    %v3108 = vsel %vm3100, 1, 0
    %v3109 = vsel %vm3101, 1, 0
    %v3110 = vcvt.s32.f32 %v3102
    %v3111 = vcvt.s32.f32 %v3103
    %v3112 = vcvt.s32.f32 %v3104
    %v3113 = vcvt.s32.f32 %v3105
    %v3114 = vcvt.s32.f32 %v3106
    %v3115 = vcvt.s32.f32 %v3107
    %v3116 = vcvt.s32.f32 %v3108
    %v3117 = vcvt.s32.f32 %v3109
    %3118 = vst [vmem:[#allocation2 + $0x440] sm:$0xff] %v3110
    %3119 = vst [vmem:[#allocation2 + $0x448] sm:$0xff] %v3111
    %3120 = vst [vmem:[#allocation2 + $0x450] sm:$0xff] %v3112
    %3121 = vst [vmem:[#allocation2 + $0x458] sm:$0xff] %v3113
    %3122 = vst [vmem:[#allocation2 + $0x460] sm:$0xff] %v3114
    %3123 = vst [vmem:[#allocation2 + $0x468] sm:$0xff] %v3115
    %3124 = vst [vmem:[#allocation2 + $0x470] sm:$0xff] %v3116
    %3125 = vst [vmem:[#allocation2 + $0x478] sm:$0xff] %v3117
    %v3126 = vsub.f32 %v3086, %v3110
    %v3127 = vsub.f32 %v3087, %v3111
    %v3128 = vsub.f32 %v3088, %v3112
    %v3129 = vsub.f32 %v3089, %v3113
    %v3130 = vsub.f32 %v3090, %v3114
    %v3131 = vsub.f32 %v3091, %v3115
    %v3132 = vsub.f32 %v3092, %v3116
    %v3133 = vsub.f32 %v3093, %v3117
    %v3134 = vmul.f32 %v3126, 0.9
    %v3135 = vmul.f32 %v3127, 0.9
    %v3136 = vmul.f32 %v3128, 0.9
    %v3137 = vmul.f32 %v3129, 0.9
    %v3138 = vmul.f32 %v3130, 0.9
    %v3139 = vmul.f32 %v3131, 0.9
    %v3140 = vmul.f32 %v3132, 0.9
    %v3141 = vmul.f32 %v3133, 0.9
    %v3142 = vadd.f32 %v3134, %v1152
    %v3143 = vadd.f32 %v3135, %v1292
    %v3144 = vadd.f32 %v3136, %v1432
    %v3145 = vadd.f32 %v3137, %v1572
    %v3146 = vadd.f32 %v3138, %v1712
    %v3147 = vadd.f32 %v3139, %v1852
    %v3148 = vadd.f32 %v3140, %v1992
    %v3149 = vadd.f32 %v3141, %v2132
    %vm3150 = vcmp.ge.f32.partialorder %v3142, 1.0
    %vm3151 = vcmp.ge.f32.partialorder %v3143, 1.0
    %vm3152 = vcmp.ge.f32.partialorder %v3144, 1.0
    %vm3153 = vcmp.ge.f32.partialorder %v3145, 1.0
    %vm3154 = vcmp.ge.f32.partialorder %v3146, 1.0
    %vm3155 = vcmp.ge.f32.partialorder %v3147, 1.0
    %vm3156 = vcmp.ge.f32.partialorder %v3148, 1.0
    %vm3157 = vcmp.ge.f32.partialorder %v3149, 1.0
    %v3158 = vsel %vm3150, 1, 0
    %v3159 = vsel %vm3151, 1, 0
    %v3160 = vsel %vm3152, 1, 0
    %v3161 = vsel %vm3153, 1, 0
    %v3162 = vsel %vm3154, 1, 0
    %v3163 = vsel %vm3155, 1, 0
    %v3164 = vsel %vm3156, 1, 0
    %v3165 = vsel %vm3157, 1, 0
    %v3166 = vcvt.s32.f32 %v3158
    %v3167 = vcvt.s32.f32 %v3159
    %v3168 = vcvt.s32.f32 %v3160
    %v3169 = vcvt.s32.f32 %v3161
    %v3170 = vcvt.s32.f32 %v3162
    %v3171 = vcvt.s32.f32 %v3163
    %v3172 = vcvt.s32.f32 %v3164
    %v3173 = vcvt.s32.f32 %v3165
    %3174 = vst [vmem:[#allocation2 + $0x480] sm:$0xff] %v3166
    %3175 = vst [vmem:[#allocation2 + $0x488] sm:$0xff] %v3167
    %3176 = vst [vmem:[#allocation2 + $0x490] sm:$0xff] %v3168
    %3177 = vst [vmem:[#allocation2 + $0x498] sm:$0xff] %v3169
    %3178 = vst [vmem:[#allocation2 + $0x4a0] sm:$0xff] %v3170
    %3179 = vst [vmem:[#allocation2 + $0x4a8] sm:$0xff] %v3171
    %3180 = vst [vmem:[#allocation2 + $0x4b0] sm:$0xff] %v3172
    %3181 = vst [vmem:[#allocation2 + $0x4b8] sm:$0xff] %v3173
    %v3182 = vsub.f32 %v3142, %v3166
    %v3183 = vsub.f32 %v3143, %v3167
    %v3184 = vsub.f32 %v3144, %v3168
    %v3185 = vsub.f32 %v3145, %v3169
    %v3186 = vsub.f32 %v3146, %v3170
    %v3187 = vsub.f32 %v3147, %v3171
    %v3188 = vsub.f32 %v3148, %v3172
    %v3189 = vsub.f32 %v3149, %v3173
    %v3190 = vmul.f32 %v3182, 0.9
    %v3191 = vmul.f32 %v3183, 0.9
    %v3192 = vmul.f32 %v3184, 0.9
    %v3193 = vmul.f32 %v3185, 0.9
    %v3194 = vmul.f32 %v3186, 0.9
    %v3195 = vmul.f32 %v3187, 0.9
    %v3196 = vmul.f32 %v3188, 0.9
    %v3197 = vmul.f32 %v3189, 0.9
    %v3198 = vadd.f32 %v3190, %v1152
    %v3199 = vadd.f32 %v3191, %v1292
    %v3200 = vadd.f32 %v3192, %v1432
    %v3201 = vadd.f32 %v3193, %v1572
    %v3202 = vadd.f32 %v3194, %v1712
    %v3203 = vadd.f32 %v3195, %v1852
    %v3204 = vadd.f32 %v3196, %v1992
    %v3205 = vadd.f32 %v3197, %v2132
    %vm3206 = vcmp.ge.f32.partialorder %v3198, 1.0
    %vm3207 = vcmp.ge.f32.partialorder %v3199, 1.0
    %vm3208 = vcmp.ge.f32.partialorder %v3200, 1.0
    %vm3209 = vcmp.ge.f32.partialorder %v3201, 1.0
    %vm3210 = vcmp.ge.f32.partialorder %v3202, 1.0
    %vm3211 = vcmp.ge.f32.partialorder %v3203, 1.0
    %vm3212 = vcmp.ge.f32.partialorder %v3204, 1.0
    %vm3213 = vcmp.ge.f32.partialorder %v3205, 1.0
    %v3214 = vsel %vm3206, 1, 0
    %v3215 = vsel %vm3207, 1, 0
    %v3216 = vsel %vm3208, 1, 0
    %v3217 = vsel %vm3209, 1, 0
    %v3218 = vsel %vm3210, 1, 0
    %v3219 = vsel %vm3211, 1, 0
    %v3220 = vsel %vm3212, 1, 0
    %v3221 = vsel %vm3213, 1, 0
    %v3222 = vcvt.s32.f32 %v3214
    %v3223 = vcvt.s32.f32 %v3215
    %v3224 = vcvt.s32.f32 %v3216
    %v3225 = vcvt.s32.f32 %v3217
    %v3226 = vcvt.s32.f32 %v3218
    %v3227 = vcvt.s32.f32 %v3219
    %v3228 = vcvt.s32.f32 %v3220
    %v3229 = vcvt.s32.f32 %v3221
    %3230 = vst [vmem:[#allocation2 + $0x4c0] sm:$0xff] %v3222
    %3231 = vst [vmem:[#allocation2 + $0x4c8] sm:$0xff] %v3223
    %3232 = vst [vmem:[#allocation2 + $0x4d0] sm:$0xff] %v3224
    %3233 = vst [vmem:[#allocation2 + $0x4d8] sm:$0xff] %v3225
    %3234 = vst [vmem:[#allocation2 + $0x4e0] sm:$0xff] %v3226
    %3235 = vst [vmem:[#allocation2 + $0x4e8] sm:$0xff] %v3227
    %3236 = vst [vmem:[#allocation2 + $0x4f0] sm:$0xff] %v3228
    %3237 = vst [vmem:[#allocation2 + $0x4f8] sm:$0xff] %v3229
    %v3238 = vsub.f32 %v3198, %v3222
    %v3239 = vsub.f32 %v3199, %v3223
    %v3240 = vsub.f32 %v3200, %v3224
    %v3241 = vsub.f32 %v3201, %v3225
    %v3242 = vsub.f32 %v3202, %v3226
    %v3243 = vsub.f32 %v3203, %v3227
    %v3244 = vsub.f32 %v3204, %v3228
    %v3245 = vsub.f32 %v3205, %v3229
    %v3246 = vmul.f32 %v3238, 0.9
    %v3247 = vmul.f32 %v3239, 0.9
    %v3248 = vmul.f32 %v3240, 0.9
    %v3249 = vmul.f32 %v3241, 0.9
    %v3250 = vmul.f32 %v3242, 0.9
    %v3251 = vmul.f32 %v3243, 0.9
    %v3252 = vmul.f32 %v3244, 0.9
    %v3253 = vmul.f32 %v3245, 0.9
    %v3254 = vadd.f32 %v3246, %v1152
    %v3255 = vadd.f32 %v3247, %v1292
    %v3256 = vadd.f32 %v3248, %v1432
    %v3257 = vadd.f32 %v3249, %v1572
    %v3258 = vadd.f32 %v3250, %v1712
    %v3259 = vadd.f32 %v3251, %v1852
    %v3260 = vadd.f32 %v3252, %v1992
    %v3261 = vadd.f32 %v3253, %v2132
    %vm3262 = vcmp.ge.f32.partialorder %v3254, 1.0
    %vm3263 = vcmp.ge.f32.partialorder %v3255, 1.0
    %vm3264 = vcmp.ge.f32.partialorder %v3256, 1.0
    %vm3265 = vcmp.ge.f32.partialorder %v3257, 1.0
    %vm3266 = vcmp.ge.f32.partialorder %v3258, 1.0
    %vm3267 = vcmp.ge.f32.partialorder %v3259, 1.0
    %vm3268 = vcmp.ge.f32.partialorder %v3260, 1.0
    %vm3269 = vcmp.ge.f32.partialorder %v3261, 1.0
    %v3270 = vsel %vm3262, 1, 0
    %v3271 = vsel %vm3263, 1, 0
    %v3272 = vsel %vm3264, 1, 0
    %v3273 = vsel %vm3265, 1, 0
    %v3274 = vsel %vm3266, 1, 0
    %v3275 = vsel %vm3267, 1, 0
    %v3276 = vsel %vm3268, 1, 0
    %v3277 = vsel %vm3269, 1, 0
    %v3278 = vcvt.s32.f32 %v3270
    %v3279 = vcvt.s32.f32 %v3271
    %v3280 = vcvt.s32.f32 %v3272
    %v3281 = vcvt.s32.f32 %v3273
    %v3282 = vcvt.s32.f32 %v3274
    %v3283 = vcvt.s32.f32 %v3275
    %v3284 = vcvt.s32.f32 %v3276
    %v3285 = vcvt.s32.f32 %v3277
    %3286 = vst [vmem:[#allocation2 + $0x500] sm:$0xff] %v3278
    %3287 = vst [vmem:[#allocation2 + $0x508] sm:$0xff] %v3279
    %3288 = vst [vmem:[#allocation2 + $0x510] sm:$0xff] %v3280
    %3289 = vst [vmem:[#allocation2 + $0x518] sm:$0xff] %v3281
    %3290 = vst [vmem:[#allocation2 + $0x520] sm:$0xff] %v3282
    %3291 = vst [vmem:[#allocation2 + $0x528] sm:$0xff] %v3283
    %3292 = vst [vmem:[#allocation2 + $0x530] sm:$0xff] %v3284
    %3293 = vst [vmem:[#allocation2 + $0x538] sm:$0xff] %v3285
    %v3294 = vsub.f32 %v3254, %v3278
    %v3295 = vsub.f32 %v3255, %v3279
    %v3296 = vsub.f32 %v3256, %v3280
    %v3297 = vsub.f32 %v3257, %v3281
    %v3298 = vsub.f32 %v3258, %v3282
    %v3299 = vsub.f32 %v3259, %v3283
    %v3300 = vsub.f32 %v3260, %v3284
    %v3301 = vsub.f32 %v3261, %v3285
    %v3302 = vmul.f32 %v3294, 0.9
    %v3303 = vmul.f32 %v3295, 0.9
    %v3304 = vmul.f32 %v3296, 0.9
    %v3305 = vmul.f32 %v3297, 0.9
    %v3306 = vmul.f32 %v3298, 0.9
    %v3307 = vmul.f32 %v3299, 0.9
    %v3308 = vmul.f32 %v3300, 0.9
    %v3309 = vmul.f32 %v3301, 0.9
    %v3310 = vadd.f32 %v3302, %v1152
    %v3311 = vadd.f32 %v3303, %v1292
    %v3312 = vadd.f32 %v3304, %v1432
    %v3313 = vadd.f32 %v3305, %v1572
    %v3314 = vadd.f32 %v3306, %v1712
    %v3315 = vadd.f32 %v3307, %v1852
    %v3316 = vadd.f32 %v3308, %v1992
    %v3317 = vadd.f32 %v3309, %v2132
    %vm3318 = vcmp.ge.f32.partialorder %v3310, 1.0
    %vm3319 = vcmp.ge.f32.partialorder %v3311, 1.0
    %vm3320 = vcmp.ge.f32.partialorder %v3312, 1.0
    %vm3321 = vcmp.ge.f32.partialorder %v3313, 1.0
    %vm3322 = vcmp.ge.f32.partialorder %v3314, 1.0
    %vm3323 = vcmp.ge.f32.partialorder %v3315, 1.0
    %vm3324 = vcmp.ge.f32.partialorder %v3316, 1.0
    %vm3325 = vcmp.ge.f32.partialorder %v3317, 1.0
    %v3326 = vsel %vm3318, 1, 0
    %v3327 = vsel %vm3319, 1, 0
    %v3328 = vsel %vm3320, 1, 0
    %v3329 = vsel %vm3321, 1, 0
    %v3330 = vsel %vm3322, 1, 0
    %v3331 = vsel %vm3323, 1, 0
    %v3332 = vsel %vm3324, 1, 0
    %v3333 = vsel %vm3325, 1, 0
    %v3334 = vcvt.s32.f32 %v3326
    %v3335 = vcvt.s32.f32 %v3327
    %v3336 = vcvt.s32.f32 %v3328
    %v3337 = vcvt.s32.f32 %v3329
    %v3338 = vcvt.s32.f32 %v3330
    %v3339 = vcvt.s32.f32 %v3331
    %v3340 = vcvt.s32.f32 %v3332
    %v3341 = vcvt.s32.f32 %v3333
    %3342 = vst [vmem:[#allocation2 + $0x540] sm:$0xff] %v3334
    %3343 = vst [vmem:[#allocation2 + $0x548] sm:$0xff] %v3335
    %3344 = vst [vmem:[#allocation2 + $0x550] sm:$0xff] %v3336
    %3345 = vst [vmem:[#allocation2 + $0x558] sm:$0xff] %v3337
    %3346 = vst [vmem:[#allocation2 + $0x560] sm:$0xff] %v3338
    %3347 = vst [vmem:[#allocation2 + $0x568] sm:$0xff] %v3339
    %3348 = vst [vmem:[#allocation2 + $0x570] sm:$0xff] %v3340
    %3349 = vst [vmem:[#allocation2 + $0x578] sm:$0xff] %v3341
    %v3350 = vsub.f32 %v3310, %v3334
    %v3351 = vsub.f32 %v3311, %v3335
    %v3352 = vsub.f32 %v3312, %v3336
    %v3353 = vsub.f32 %v3313, %v3337
    %v3354 = vsub.f32 %v3314, %v3338
    %v3355 = vsub.f32 %v3315, %v3339
    %v3356 = vsub.f32 %v3316, %v3340
    %v3357 = vsub.f32 %v3317, %v3341
    %v3358 = vmul.f32 %v3350, 0.9
    %v3359 = vmul.f32 %v3351, 0.9
    %v3360 = vmul.f32 %v3352, 0.9
    %v3361 = vmul.f32 %v3353, 0.9
    %v3362 = vmul.f32 %v3354, 0.9
    %v3363 = vmul.f32 %v3355, 0.9
    %v3364 = vmul.f32 %v3356, 0.9
    %v3365 = vmul.f32 %v3357, 0.9
    %v3366 = vadd.f32 %v3358, %v1152
    %v3367 = vadd.f32 %v3359, %v1292
    %v3368 = vadd.f32 %v3360, %v1432
    %v3369 = vadd.f32 %v3361, %v1572
    %v3370 = vadd.f32 %v3362, %v1712
    %v3371 = vadd.f32 %v3363, %v1852
    %v3372 = vadd.f32 %v3364, %v1992
    %v3373 = vadd.f32 %v3365, %v2132
    %vm3374 = vcmp.ge.f32.partialorder %v3366, 1.0
    %vm3375 = vcmp.ge.f32.partialorder %v3367, 1.0
    %vm3376 = vcmp.ge.f32.partialorder %v3368, 1.0
    %vm3377 = vcmp.ge.f32.partialorder %v3369, 1.0
    %vm3378 = vcmp.ge.f32.partialorder %v3370, 1.0
    %vm3379 = vcmp.ge.f32.partialorder %v3371, 1.0
    %vm3380 = vcmp.ge.f32.partialorder %v3372, 1.0
    %vm3381 = vcmp.ge.f32.partialorder %v3373, 1.0
    %v3382 = vsel %vm3374, 1, 0
    %v3383 = vsel %vm3375, 1, 0
    %v3384 = vsel %vm3376, 1, 0
    %v3385 = vsel %vm3377, 1, 0
    %v3386 = vsel %vm3378, 1, 0
    %v3387 = vsel %vm3379, 1, 0
    %v3388 = vsel %vm3380, 1, 0
    %v3389 = vsel %vm3381, 1, 0
    %v3390 = vcvt.s32.f32 %v3382
    %v3391 = vcvt.s32.f32 %v3383
    %v3392 = vcvt.s32.f32 %v3384
    %v3393 = vcvt.s32.f32 %v3385
    %v3394 = vcvt.s32.f32 %v3386
    %v3395 = vcvt.s32.f32 %v3387
    %v3396 = vcvt.s32.f32 %v3388
    %v3397 = vcvt.s32.f32 %v3389
    %3398 = vst [vmem:[#allocation2 + $0x580] sm:$0xff] %v3390
    %3399 = vst [vmem:[#allocation2 + $0x588] sm:$0xff] %v3391
    %3400 = vst [vmem:[#allocation2 + $0x590] sm:$0xff] %v3392
    %3401 = vst [vmem:[#allocation2 + $0x598] sm:$0xff] %v3393
    %3402 = vst [vmem:[#allocation2 + $0x5a0] sm:$0xff] %v3394
    %3403 = vst [vmem:[#allocation2 + $0x5a8] sm:$0xff] %v3395
    %3404 = vst [vmem:[#allocation2 + $0x5b0] sm:$0xff] %v3396
    %3405 = vst [vmem:[#allocation2 + $0x5b8] sm:$0xff] %v3397
    %v3406 = vsub.f32 %v3366, %v3390
    %v3407 = vsub.f32 %v3367, %v3391
    %v3408 = vsub.f32 %v3368, %v3392
    %v3409 = vsub.f32 %v3369, %v3393
    %v3410 = vsub.f32 %v3370, %v3394
    %v3411 = vsub.f32 %v3371, %v3395
    %v3412 = vsub.f32 %v3372, %v3396
    %v3413 = vsub.f32 %v3373, %v3397
    %v3414 = vmul.f32 %v3406, 0.9
    %v3415 = vmul.f32 %v3407, 0.9
    %v3416 = vmul.f32 %v3408, 0.9
    %v3417 = vmul.f32 %v3409, 0.9
    %v3418 = vmul.f32 %v3410, 0.9
    %v3419 = vmul.f32 %v3411, 0.9
    %v3420 = vmul.f32 %v3412, 0.9
    %v3421 = vmul.f32 %v3413, 0.9
    %v3422 = vadd.f32 %v3414, %v1152
    %v3423 = vadd.f32 %v3415, %v1292
    %v3424 = vadd.f32 %v3416, %v1432
    %v3425 = vadd.f32 %v3417, %v1572
    %v3426 = vadd.f32 %v3418, %v1712
    %v3427 = vadd.f32 %v3419, %v1852
    %v3428 = vadd.f32 %v3420, %v1992
    %v3429 = vadd.f32 %v3421, %v2132
    %vm3430 = vcmp.ge.f32.partialorder %v3422, 1.0
    %vm3431 = vcmp.ge.f32.partialorder %v3423, 1.0
    %vm3432 = vcmp.ge.f32.partialorder %v3424, 1.0
    %vm3433 = vcmp.ge.f32.partialorder %v3425, 1.0
    %vm3434 = vcmp.ge.f32.partialorder %v3426, 1.0
    %vm3435 = vcmp.ge.f32.partialorder %v3427, 1.0
    %vm3436 = vcmp.ge.f32.partialorder %v3428, 1.0
    %vm3437 = vcmp.ge.f32.partialorder %v3429, 1.0
    %v3438 = vsel %vm3430, 1, 0
    %v3439 = vsel %vm3431, 1, 0
    %v3440 = vsel %vm3432, 1, 0
    %v3441 = vsel %vm3433, 1, 0
    %v3442 = vsel %vm3434, 1, 0
    %v3443 = vsel %vm3435, 1, 0
    %v3444 = vsel %vm3436, 1, 0
    %v3445 = vsel %vm3437, 1, 0
    %v3446 = vcvt.s32.f32 %v3438
    %v3447 = vcvt.s32.f32 %v3439
    %v3448 = vcvt.s32.f32 %v3440
    %v3449 = vcvt.s32.f32 %v3441
    %v3450 = vcvt.s32.f32 %v3442
    %v3451 = vcvt.s32.f32 %v3443
    %v3452 = vcvt.s32.f32 %v3444
    %v3453 = vcvt.s32.f32 %v3445
    %3454 = vst [vmem:[#allocation2 + $0x5c0] sm:$0xff] %v3446
    %3455 = vst [vmem:[#allocation2 + $0x5c8] sm:$0xff] %v3447
    %3456 = vst [vmem:[#allocation2 + $0x5d0] sm:$0xff] %v3448
    %3457 = vst [vmem:[#allocation2 + $0x5d8] sm:$0xff] %v3449
    %3458 = vst [vmem:[#allocation2 + $0x5e0] sm:$0xff] %v3450
    %3459 = vst [vmem:[#allocation2 + $0x5e8] sm:$0xff] %v3451
    %3460 = vst [vmem:[#allocation2 + $0x5f0] sm:$0xff] %v3452
    %3461 = vst [vmem:[#allocation2 + $0x5f8] sm:$0xff] %v3453
    %v3462 = vsub.f32 %v3422, %v3446
    %v3463 = vsub.f32 %v3423, %v3447
    %v3464 = vsub.f32 %v3424, %v3448
    %v3465 = vsub.f32 %v3425, %v3449
    %v3466 = vsub.f32 %v3426, %v3450
    %v3467 = vsub.f32 %v3427, %v3451
    %v3468 = vsub.f32 %v3428, %v3452
    %v3469 = vsub.f32 %v3429, %v3453
    %v3470 = vmul.f32 %v3462, 0.9
    %v3471 = vmul.f32 %v3463, 0.9
    %v3472 = vmul.f32 %v3464, 0.9
    %v3473 = vmul.f32 %v3465, 0.9
    %v3474 = vmul.f32 %v3466, 0.9
    %v3475 = vmul.f32 %v3467, 0.9
    %v3476 = vmul.f32 %v3468, 0.9
    %v3477 = vmul.f32 %v3469, 0.9
    %v3478 = vadd.f32 %v3470, %v1152
    %v3479 = vadd.f32 %v3471, %v1292
    %v3480 = vadd.f32 %v3472, %v1432
    %v3481 = vadd.f32 %v3473, %v1572
    %v3482 = vadd.f32 %v3474, %v1712
    %v3483 = vadd.f32 %v3475, %v1852
    %v3484 = vadd.f32 %v3476, %v1992
    %v3485 = vadd.f32 %v3477, %v2132
    %vm3486 = vcmp.ge.f32.partialorder %v3478, 1.0
    %vm3487 = vcmp.ge.f32.partialorder %v3479, 1.0
    %vm3488 = vcmp.ge.f32.partialorder %v3480, 1.0
    %vm3489 = vcmp.ge.f32.partialorder %v3481, 1.0
    %vm3490 = vcmp.ge.f32.partialorder %v3482, 1.0
    %vm3491 = vcmp.ge.f32.partialorder %v3483, 1.0
    %vm3492 = vcmp.ge.f32.partialorder %v3484, 1.0
    %vm3493 = vcmp.ge.f32.partialorder %v3485, 1.0
    %v3494 = vsel %vm3486, 1, 0
    %v3495 = vsel %vm3487, 1, 0
    %v3496 = vsel %vm3488, 1, 0
    %v3497 = vsel %vm3489, 1, 0
    %v3498 = vsel %vm3490, 1, 0
    %v3499 = vsel %vm3491, 1, 0
    %v3500 = vsel %vm3492, 1, 0
    %v3501 = vsel %vm3493, 1, 0
    %v3502 = vcvt.s32.f32 %v3494
    %v3503 = vcvt.s32.f32 %v3495
    %v3504 = vcvt.s32.f32 %v3496
    %v3505 = vcvt.s32.f32 %v3497
    %v3506 = vcvt.s32.f32 %v3498
    %v3507 = vcvt.s32.f32 %v3499
    %v3508 = vcvt.s32.f32 %v3500
    %v3509 = vcvt.s32.f32 %v3501
    %3510 = vst [vmem:[#allocation2 + $0x600] sm:$0xff] %v3502
    %3511 = vst [vmem:[#allocation2 + $0x608] sm:$0xff] %v3503
    %3512 = vst [vmem:[#allocation2 + $0x610] sm:$0xff] %v3504
    %3513 = vst [vmem:[#allocation2 + $0x618] sm:$0xff] %v3505
    %3514 = vst [vmem:[#allocation2 + $0x620] sm:$0xff] %v3506
    %3515 = vst [vmem:[#allocation2 + $0x628] sm:$0xff] %v3507
    %3516 = vst [vmem:[#allocation2 + $0x630] sm:$0xff] %v3508
    %3517 = vst [vmem:[#allocation2 + $0x638] sm:$0xff] %v3509
    %v3518 = vld [vmem:[#allocation2] sm:$0xff]
    %v3519 = vld [vmem:[#allocation2 + $0x8] sm:$0xff]
    %v3520 = vld [vmem:[#allocation2 + $0x10] sm:$0xff]
    %v3521 = vld [vmem:[#allocation2 + $0x18] sm:$0xff]
    %v3522 = vld [vmem:[#allocation2 + $0x20] sm:$0xff]
    %v3523 = vld [vmem:[#allocation2 + $0x28] sm:$0xff]
    %v3524 = vld [vmem:[#allocation2 + $0x30] sm:$0xff]
    %v3525 = vld [vmem:[#allocation2 + $0x38] sm:$0xff]
    %v3526 = vld [vmem:[#allocation2 + $0x40] sm:$0xff]
    %v3527 = vld [vmem:[#allocation2 + $0x48] sm:$0xff]
    %v3528 = vld [vmem:[#allocation2 + $0x50] sm:$0xff]
    %v3529 = vld [vmem:[#allocation2 + $0x58] sm:$0xff]
    %v3530 = vld [vmem:[#allocation2 + $0x60] sm:$0xff]
    %v3531 = vld [vmem:[#allocation2 + $0x68] sm:$0xff]
    %v3532 = vld [vmem:[#allocation2 + $0x70] sm:$0xff]
    %v3533 = vld [vmem:[#allocation2 + $0x78] sm:$0xff]
    %v3534 = vld [vmem:[#allocation2 + $0x80] sm:$0xff]
    %v3535 = vld [vmem:[#allocation2 + $0x88] sm:$0xff]
    %v3536 = vld [vmem:[#allocation2 + $0x90] sm:$0xff]
    %v3537 = vld [vmem:[#allocation2 + $0x98] sm:$0xff]
    %v3538 = vld [vmem:[#allocation2 + $0xa0] sm:$0xff]
    %v3539 = vld [vmem:[#allocation2 + $0xa8] sm:$0xff]
    %v3540 = vld [vmem:[#allocation2 + $0xb0] sm:$0xff]
    %v3541 = vld [vmem:[#allocation2 + $0xb8] sm:$0xff]
    %v3542 = vld [vmem:[#allocation2 + $0xc0] sm:$0xff]
    %v3543 = vld [vmem:[#allocation2 + $0xc8] sm:$0xff]
    %v3544 = vld [vmem:[#allocation2 + $0xd0] sm:$0xff]
    %v3545 = vld [vmem:[#allocation2 + $0xd8] sm:$0xff]
    %v3546 = vld [vmem:[#allocation2 + $0xe0] sm:$0xff]
    %v3547 = vld [vmem:[#allocation2 + $0xe8] sm:$0xff]
    %v3548 = vld [vmem:[#allocation2 + $0xf0] sm:$0xff]
    %v3549 = vld [vmem:[#allocation2 + $0xf8] sm:$0xff]
    %v3550 = vld [vmem:[#allocation2 + $0x100] sm:$0xff]
    %v3551 = vld [vmem:[#allocation2 + $0x108] sm:$0xff]
    %v3552 = vld [vmem:[#allocation2 + $0x110] sm:$0xff]
    %v3553 = vld [vmem:[#allocation2 + $0x118] sm:$0xff]
    %v3554 = vld [vmem:[#allocation2 + $0x120] sm:$0xff]
    %v3555 = vld [vmem:[#allocation2 + $0x128] sm:$0xff]
    %v3556 = vld [vmem:[#allocation2 + $0x130] sm:$0xff]
    %v3557 = vld [vmem:[#allocation2 + $0x138] sm:$0xff]
    %v3558 = vld [vmem:[#allocation2 + $0x140] sm:$0xff]
    %v3559 = vld [vmem:[#allocation2 + $0x148] sm:$0xff]
    %v3560 = vld [vmem:[#allocation2 + $0x150] sm:$0xff]
    %v3561 = vld [vmem:[#allocation2 + $0x158] sm:$0xff]
    %v3562 = vld [vmem:[#allocation2 + $0x160] sm:$0xff]
    %v3563 = vld [vmem:[#allocation2 + $0x168] sm:$0xff]
    %v3564 = vld [vmem:[#allocation2 + $0x170] sm:$0xff]
    %v3565 = vld [vmem:[#allocation2 + $0x178] sm:$0xff]
    %v3566 = vld [vmem:[#allocation2 + $0x180] sm:$0xff]
    %v3567 = vld [vmem:[#allocation2 + $0x188] sm:$0xff]
    %v3568 = vld [vmem:[#allocation2 + $0x190] sm:$0xff]
    %v3569 = vld [vmem:[#allocation2 + $0x198] sm:$0xff]
    %v3570 = vld [vmem:[#allocation2 + $0x1a0] sm:$0xff]
    %v3571 = vld [vmem:[#allocation2 + $0x1a8] sm:$0xff]
    %v3572 = vld [vmem:[#allocation2 + $0x1b0] sm:$0xff]
    %v3573 = vld [vmem:[#allocation2 + $0x1b8] sm:$0xff]
    %v3574 = vld [vmem:[#allocation2 + $0x1c0] sm:$0xff]
    %v3575 = vld [vmem:[#allocation2 + $0x1c8] sm:$0xff]
    %v3576 = vld [vmem:[#allocation2 + $0x1d0] sm:$0xff]
    %v3577 = vld [vmem:[#allocation2 + $0x1d8] sm:$0xff]
    %v3578 = vld [vmem:[#allocation2 + $0x1e0] sm:$0xff]
    %v3579 = vld [vmem:[#allocation2 + $0x1e8] sm:$0xff]
    %v3580 = vld [vmem:[#allocation2 + $0x1f0] sm:$0xff]
    %v3581 = vld [vmem:[#allocation2 + $0x1f8] sm:$0xff]
    %v3582 = vld [vmem:[#allocation2 + $0x200] sm:$0xff]
    %v3583 = vld [vmem:[#allocation2 + $0x208] sm:$0xff]
    %v3584 = vld [vmem:[#allocation2 + $0x210] sm:$0xff]
    %v3585 = vld [vmem:[#allocation2 + $0x218] sm:$0xff]
    %v3586 = vld [vmem:[#allocation2 + $0x220] sm:$0xff]
    %v3587 = vld [vmem:[#allocation2 + $0x228] sm:$0xff]
    %v3588 = vld [vmem:[#allocation2 + $0x230] sm:$0xff]
    %v3589 = vld [vmem:[#allocation2 + $0x238] sm:$0xff]
    %v3590 = vld [vmem:[#allocation2 + $0x240] sm:$0xff]
    %v3591 = vld [vmem:[#allocation2 + $0x248] sm:$0xff]
    %v3592 = vld [vmem:[#allocation2 + $0x250] sm:$0xff]
    %v3593 = vld [vmem:[#allocation2 + $0x258] sm:$0xff]
    %v3594 = vld [vmem:[#allocation2 + $0x260] sm:$0xff]
    %v3595 = vld [vmem:[#allocation2 + $0x268] sm:$0xff]
    %v3596 = vld [vmem:[#allocation2 + $0x270] sm:$0xff]
    %v3597 = vld [vmem:[#allocation2 + $0x278] sm:$0xff]
    %v3598 = vld [vmem:[#allocation2 + $0x280] sm:$0xff]
    %v3599 = vld [vmem:[#allocation2 + $0x288] sm:$0xff]
    %v3600 = vld [vmem:[#allocation2 + $0x290] sm:$0xff]
    %v3601 = vld [vmem:[#allocation2 + $0x298] sm:$0xff]
    %v3602 = vld [vmem:[#allocation2 + $0x2a0] sm:$0xff]
    %v3603 = vld [vmem:[#allocation2 + $0x2a8] sm:$0xff]
    %v3604 = vld [vmem:[#allocation2 + $0x2b0] sm:$0xff]
    %v3605 = vld [vmem:[#allocation2 + $0x2b8] sm:$0xff]
    %v3606 = vld [vmem:[#allocation2 + $0x2c0] sm:$0xff]
    %v3607 = vld [vmem:[#allocation2 + $0x2c8] sm:$0xff]
    %v3608 = vld [vmem:[#allocation2 + $0x2d0] sm:$0xff]
    %v3609 = vld [vmem:[#allocation2 + $0x2d8] sm:$0xff]
    %v3610 = vld [vmem:[#allocation2 + $0x2e0] sm:$0xff]
    %v3611 = vld [vmem:[#allocation2 + $0x2e8] sm:$0xff]
    %v3612 = vld [vmem:[#allocation2 + $0x2f0] sm:$0xff]
    %v3613 = vld [vmem:[#allocation2 + $0x2f8] sm:$0xff]
    %v3614 = vld [vmem:[#allocation2 + $0x300] sm:$0xff]
    %v3615 = vld [vmem:[#allocation2 + $0x308] sm:$0xff]
    %v3616 = vld [vmem:[#allocation2 + $0x310] sm:$0xff]
    %v3617 = vld [vmem:[#allocation2 + $0x318] sm:$0xff]
    %v3618 = vld [vmem:[#allocation2 + $0x320] sm:$0xff]
    %v3619 = vld [vmem:[#allocation2 + $0x328] sm:$0xff]
    %v3620 = vld [vmem:[#allocation2 + $0x330] sm:$0xff]
    %v3621 = vld [vmem:[#allocation2 + $0x338] sm:$0xff]
    %v3622 = vld [vmem:[#allocation2 + $0x340] sm:$0xff]
    %v3623 = vld [vmem:[#allocation2 + $0x348] sm:$0xff]
    %v3624 = vld [vmem:[#allocation2 + $0x350] sm:$0xff]
    %v3625 = vld [vmem:[#allocation2 + $0x358] sm:$0xff]
    %v3626 = vld [vmem:[#allocation2 + $0x360] sm:$0xff]
    %v3627 = vld [vmem:[#allocation2 + $0x368] sm:$0xff]
    %v3628 = vld [vmem:[#allocation2 + $0x370] sm:$0xff]
    %v3629 = vld [vmem:[#allocation2 + $0x378] sm:$0xff]
    %v3630 = vld [vmem:[#allocation2 + $0x380] sm:$0xff]
    %v3631 = vld [vmem:[#allocation2 + $0x388] sm:$0xff]
    %v3632 = vld [vmem:[#allocation2 + $0x390] sm:$0xff]
    %v3633 = vld [vmem:[#allocation2 + $0x398] sm:$0xff]
    %v3634 = vld [vmem:[#allocation2 + $0x3a0] sm:$0xff]
    %v3635 = vld [vmem:[#allocation2 + $0x3a8] sm:$0xff]
    %v3636 = vld [vmem:[#allocation2 + $0x3b0] sm:$0xff]
    %v3637 = vld [vmem:[#allocation2 + $0x3b8] sm:$0xff]
    %v3638 = vld [vmem:[#allocation2 + $0x3c0] sm:$0xff]
    %v3639 = vld [vmem:[#allocation2 + $0x3c8] sm:$0xff]
    %v3640 = vld [vmem:[#allocation2 + $0x3d0] sm:$0xff]
    %v3641 = vld [vmem:[#allocation2 + $0x3d8] sm:$0xff]
    %v3642 = vld [vmem:[#allocation2 + $0x3e0] sm:$0xff]
    %v3643 = vld [vmem:[#allocation2 + $0x3e8] sm:$0xff]
    %v3644 = vld [vmem:[#allocation2 + $0x3f0] sm:$0xff]
    %v3645 = vld [vmem:[#allocation2 + $0x3f8] sm:$0xff]
    %v3646 = vld [vmem:[#allocation2 + $0x400] sm:$0xff]
    %v3647 = vld [vmem:[#allocation2 + $0x408] sm:$0xff]
    %v3648 = vld [vmem:[#allocation2 + $0x410] sm:$0xff]
    %v3649 = vld [vmem:[#allocation2 + $0x418] sm:$0xff]
    %v3650 = vld [vmem:[#allocation2 + $0x420] sm:$0xff]
    %v3651 = vld [vmem:[#allocation2 + $0x428] sm:$0xff]
    %v3652 = vld [vmem:[#allocation2 + $0x430] sm:$0xff]
    %v3653 = vld [vmem:[#allocation2 + $0x438] sm:$0xff]
    %v3654 = vld [vmem:[#allocation2 + $0x440] sm:$0xff]
    %v3655 = vld [vmem:[#allocation2 + $0x448] sm:$0xff]
    %v3656 = vld [vmem:[#allocation2 + $0x450] sm:$0xff]
    %v3657 = vld [vmem:[#allocation2 + $0x458] sm:$0xff]
    %v3658 = vld [vmem:[#allocation2 + $0x460] sm:$0xff]
    %v3659 = vld [vmem:[#allocation2 + $0x468] sm:$0xff]
    %v3660 = vld [vmem:[#allocation2 + $0x470] sm:$0xff]
    %v3661 = vld [vmem:[#allocation2 + $0x478] sm:$0xff]
    %v3662 = vld [vmem:[#allocation2 + $0x480] sm:$0xff]
    %v3663 = vld [vmem:[#allocation2 + $0x488] sm:$0xff]
    %v3664 = vld [vmem:[#allocation2 + $0x490] sm:$0xff]
    %v3665 = vld [vmem:[#allocation2 + $0x498] sm:$0xff]
    %v3666 = vld [vmem:[#allocation2 + $0x4a0] sm:$0xff]
    %v3667 = vld [vmem:[#allocation2 + $0x4a8] sm:$0xff]
    %v3668 = vld [vmem:[#allocation2 + $0x4b0] sm:$0xff]
    %v3669 = vld [vmem:[#allocation2 + $0x4b8] sm:$0xff]
    %v3670 = vld [vmem:[#allocation2 + $0x4c0] sm:$0xff]
    %v3671 = vld [vmem:[#allocation2 + $0x4c8] sm:$0xff]
    %v3672 = vld [vmem:[#allocation2 + $0x4d0] sm:$0xff]
    %v3673 = vld [vmem:[#allocation2 + $0x4d8] sm:$0xff]
    %v3674 = vld [vmem:[#allocation2 + $0x4e0] sm:$0xff]
    %v3675 = vld [vmem:[#allocation2 + $0x4e8] sm:$0xff]
    %v3676 = vld [vmem:[#allocation2 + $0x4f0] sm:$0xff]
    %v3677 = vld [vmem:[#allocation2 + $0x4f8] sm:$0xff]
    %v3678 = vld [vmem:[#allocation2 + $0x500] sm:$0xff]
    %v3679 = vld [vmem:[#allocation2 + $0x508] sm:$0xff]
    %v3680 = vld [vmem:[#allocation2 + $0x510] sm:$0xff]
    %v3681 = vld [vmem:[#allocation2 + $0x518] sm:$0xff]
    %v3682 = vld [vmem:[#allocation2 + $0x520] sm:$0xff]
    %v3683 = vld [vmem:[#allocation2 + $0x528] sm:$0xff]
    %v3684 = vld [vmem:[#allocation2 + $0x530] sm:$0xff]
    %v3685 = vld [vmem:[#allocation2 + $0x538] sm:$0xff]
    %v3686 = vld [vmem:[#allocation2 + $0x540] sm:$0xff]
    %v3687 = vld [vmem:[#allocation2 + $0x548] sm:$0xff]
    %v3688 = vld [vmem:[#allocation2 + $0x550] sm:$0xff]
    %v3689 = vld [vmem:[#allocation2 + $0x558] sm:$0xff]
    %v3690 = vld [vmem:[#allocation2 + $0x560] sm:$0xff]
    %v3691 = vld [vmem:[#allocation2 + $0x568] sm:$0xff]
    %v3692 = vld [vmem:[#allocation2 + $0x570] sm:$0xff]
    %v3693 = vld [vmem:[#allocation2 + $0x578] sm:$0xff]
    %v3694 = vld [vmem:[#allocation2 + $0x580] sm:$0xff]
    %v3695 = vld [vmem:[#allocation2 + $0x588] sm:$0xff]
    %v3696 = vld [vmem:[#allocation2 + $0x590] sm:$0xff]
    %v3697 = vld [vmem:[#allocation2 + $0x598] sm:$0xff]
    %v3698 = vld [vmem:[#allocation2 + $0x5a0] sm:$0xff]
    %v3699 = vld [vmem:[#allocation2 + $0x5a8] sm:$0xff]
    %v3700 = vld [vmem:[#allocation2 + $0x5b0] sm:$0xff]
    %v3701 = vld [vmem:[#allocation2 + $0x5b8] sm:$0xff]
    %v3702 = vld [vmem:[#allocation2 + $0x5c0] sm:$0xff]
    %v3703 = vld [vmem:[#allocation2 + $0x5c8] sm:$0xff]
    %v3704 = vld [vmem:[#allocation2 + $0x5d0] sm:$0xff]
    %v3705 = vld [vmem:[#allocation2 + $0x5d8] sm:$0xff]
    %v3706 = vld [vmem:[#allocation2 + $0x5e0] sm:$0xff]
    %v3707 = vld [vmem:[#allocation2 + $0x5e8] sm:$0xff]
    %v3708 = vld [vmem:[#allocation2 + $0x5f0] sm:$0xff]
    %v3709 = vld [vmem:[#allocation2 + $0x5f8] sm:$0xff]
    %v3710 = vld [vmem:[#allocation2 + $0x600] sm:$0xff]
    %v3711 = vld [vmem:[#allocation2 + $0x608] sm:$0xff]
    %v3712 = vld [vmem:[#allocation2 + $0x610] sm:$0xff]
    %v3713 = vld [vmem:[#allocation2 + $0x618] sm:$0xff]
    %v3714 = vld [vmem:[#allocation2 + $0x620] sm:$0xff]
    %v3715 = vld [vmem:[#allocation2 + $0x628] sm:$0xff]
    %v3716 = vld [vmem:[#allocation2 + $0x630] sm:$0xff]
    %v3717 = vld [vmem:[#allocation2 + $0x638] sm:$0xff]
    %v3718 = vld [vmem:[#allocation9] sm:$0xff]
    %v3719 = vld [vmem:[#allocation9 + $0x8] sm:$0xff]
    %v3720 = vld [vmem:[#allocation9 + $0x10] sm:$0xff]
    %v3721 = vld [vmem:[#allocation9 + $0x18] sm:$0xff]
    %v3722 = vld [vmem:[#allocation9 + $0x20] sm:$0xff]
    %v3723 = vld [vmem:[#allocation9 + $0x28] sm:$0xff]
    %v3724 = vld [vmem:[#allocation9 + $0x30] sm:$0xff]
    %v3725 = vld [vmem:[#allocation9 + $0x38] sm:$0xff]
    %v3726 = vld [vmem:[#allocation9 + $0x40] sm:$0xff]
    %v3727 = vld [vmem:[#allocation9 + $0x48] sm:$0xff]
    %v3728 = vld [vmem:[#allocation9 + $0x50] sm:$0xff]
    %v3729 = vld [vmem:[#allocation9 + $0x58] sm:$0xff]
    %v3730 = vld [vmem:[#allocation9 + $0x60] sm:$0xff]
    %v3731 = vld [vmem:[#allocation9 + $0x68] sm:$0xff]
    %v3732 = vld [vmem:[#allocation9 + $0x70] sm:$0xff]
    %v3733 = vld [vmem:[#allocation9 + $0x78] sm:$0xff]
    %v3734 = vld [vmem:[#allocation9 + $0x80] sm:$0xff]
    %v3735 = vld [vmem:[#allocation9 + $0x88] sm:$0xff]
    %v3736 = vld [vmem:[#allocation9 + $0x90] sm:$0xff]
    %v3737 = vld [vmem:[#allocation9 + $0x98] sm:$0xff]
    %v3738 = vld [vmem:[#allocation9 + $0xa0] sm:$0xff]
    %v3739 = vld [vmem:[#allocation9 + $0xa8] sm:$0xff]
    %v3740 = vld [vmem:[#allocation9 + $0xb0] sm:$0xff]
    %v3741 = vld [vmem:[#allocation9 + $0xb8] sm:$0xff]
    %v3742 = vld [vmem:[#allocation9 + $0xc0] sm:$0xff]
    %v3743 = vld [vmem:[#allocation9 + $0xc8] sm:$0xff]
    %v3744 = vld [vmem:[#allocation9 + $0xd0] sm:$0xff]
    %v3745 = vld [vmem:[#allocation9 + $0xd8] sm:$0xff]
    %v3746 = vld [vmem:[#allocation9 + $0xe0] sm:$0xff]
    %v3747 = vld [vmem:[#allocation9 + $0xe8] sm:$0xff]
    %v3748 = vld [vmem:[#allocation9 + $0xf0] sm:$0xff]
    %v3749 = vld [vmem:[#allocation9 + $0xf8] sm:$0xff]
    %v3750 = vld [vmem:[#allocation9 + $0x100] sm:$0xff]
    %v3751 = vld [vmem:[#allocation9 + $0x108] sm:$0xff]
    %v3752 = vld [vmem:[#allocation9 + $0x110] sm:$0xff]
    %v3753 = vld [vmem:[#allocation9 + $0x118] sm:$0xff]
    %v3754 = vld [vmem:[#allocation9 + $0x120] sm:$0xff]
    %v3755 = vld [vmem:[#allocation9 + $0x128] sm:$0xff]
    %v3756 = vld [vmem:[#allocation9 + $0x130] sm:$0xff]
    %v3757 = vld [vmem:[#allocation9 + $0x138] sm:$0xff]
    %v3758 = vld [vmem:[#allocation9 + $0x140] sm:$0xff]
    %v3759 = vld [vmem:[#allocation9 + $0x148] sm:$0xff]
    %v3760 = vld [vmem:[#allocation9 + $0x150] sm:$0xff]
    %v3761 = vld [vmem:[#allocation9 + $0x158] sm:$0xff]
    %v3762 = vld [vmem:[#allocation9 + $0x160] sm:$0xff]
    %v3763 = vld [vmem:[#allocation9 + $0x168] sm:$0xff]
    %v3764 = vld [vmem:[#allocation9 + $0x170] sm:$0xff]
    %v3765 = vld [vmem:[#allocation9 + $0x178] sm:$0xff]
    %v3766 = vld [vmem:[#allocation9 + $0x180] sm:$0xff]
    %v3767 = vld [vmem:[#allocation9 + $0x188] sm:$0xff]
    %v3768 = vld [vmem:[#allocation9 + $0x190] sm:$0xff]
    %v3769 = vld [vmem:[#allocation9 + $0x198] sm:$0xff]
    %v3770 = vld [vmem:[#allocation9 + $0x1a0] sm:$0xff]
    %v3771 = vld [vmem:[#allocation9 + $0x1a8] sm:$0xff]
    %v3772 = vld [vmem:[#allocation9 + $0x1b0] sm:$0xff]
    %v3773 = vld [vmem:[#allocation9 + $0x1b8] sm:$0xff]
    %v3774 = vld [vmem:[#allocation9 + $0x1c0] sm:$0xff]
    %v3775 = vld [vmem:[#allocation9 + $0x1c8] sm:$0xff]
    %v3776 = vld [vmem:[#allocation9 + $0x1d0] sm:$0xff]
    %v3777 = vld [vmem:[#allocation9 + $0x1d8] sm:$0xff]
    %v3778 = vld [vmem:[#allocation9 + $0x1e0] sm:$0xff]
    %v3779 = vld [vmem:[#allocation9 + $0x1e8] sm:$0xff]
    %v3780 = vld [vmem:[#allocation9 + $0x1f0] sm:$0xff]
    %v3781 = vld [vmem:[#allocation9 + $0x1f8] sm:$0xff]
    %v3782 = vld [vmem:[#allocation9 + $0x200] sm:$0xff]
    %v3783 = vld [vmem:[#allocation9 + $0x208] sm:$0xff]
    %v3784 = vld [vmem:[#allocation9 + $0x210] sm:$0xff]
    %v3785 = vld [vmem:[#allocation9 + $0x218] sm:$0xff]
    %v3786 = vld [vmem:[#allocation9 + $0x220] sm:$0xff]
    %v3787 = vld [vmem:[#allocation9 + $0x228] sm:$0xff]
    %v3788 = vld [vmem:[#allocation9 + $0x230] sm:$0xff]
    %v3789 = vld [vmem:[#allocation9 + $0x238] sm:$0xff]
    %v3790 = vld [vmem:[#allocation9 + $0x240] sm:$0xff]
    %v3791 = vld [vmem:[#allocation9 + $0x248] sm:$0xff]
    %v3792 = vld [vmem:[#allocation9 + $0x250] sm:$0xff]
    %v3793 = vld [vmem:[#allocation9 + $0x258] sm:$0xff]
    %v3794 = vld [vmem:[#allocation9 + $0x260] sm:$0xff]
    %v3795 = vld [vmem:[#allocation9 + $0x268] sm:$0xff]
    %v3796 = vld [vmem:[#allocation9 + $0x270] sm:$0xff]
    %v3797 = vld [vmem:[#allocation9 + $0x278] sm:$0xff]
    %v3798 = vld [vmem:[#allocation9 + $0x280] sm:$0xff]
    %v3799 = vld [vmem:[#allocation9 + $0x288] sm:$0xff]
    %v3800 = vld [vmem:[#allocation9 + $0x290] sm:$0xff]
    %v3801 = vld [vmem:[#allocation9 + $0x298] sm:$0xff]
    %v3802 = vld [vmem:[#allocation9 + $0x2a0] sm:$0xff]
    %v3803 = vld [vmem:[#allocation9 + $0x2a8] sm:$0xff]
    %v3804 = vld [vmem:[#allocation9 + $0x2b0] sm:$0xff]
    %v3805 = vld [vmem:[#allocation9 + $0x2b8] sm:$0xff]
    %v3806 = vld [vmem:[#allocation9 + $0x2c0] sm:$0xff]
    %v3807 = vld [vmem:[#allocation9 + $0x2c8] sm:$0xff]
    %v3808 = vld [vmem:[#allocation9 + $0x2d0] sm:$0xff]
    %v3809 = vld [vmem:[#allocation9 + $0x2d8] sm:$0xff]
    %v3810 = vld [vmem:[#allocation9 + $0x2e0] sm:$0xff]
    %v3811 = vld [vmem:[#allocation9 + $0x2e8] sm:$0xff]
    %v3812 = vld [vmem:[#allocation9 + $0x2f0] sm:$0xff]
    %v3813 = vld [vmem:[#allocation9 + $0x2f8] sm:$0xff]
    %v3814 = vld [vmem:[#allocation9 + $0x300] sm:$0xff]
    %v3815 = vld [vmem:[#allocation9 + $0x308] sm:$0xff]
    %v3816 = vld [vmem:[#allocation9 + $0x310] sm:$0xff]
    %v3817 = vld [vmem:[#allocation9 + $0x318] sm:$0xff]
    %v3818 = vld [vmem:[#allocation9 + $0x320] sm:$0xff]
    %v3819 = vld [vmem:[#allocation9 + $0x328] sm:$0xff]
    %v3820 = vld [vmem:[#allocation9 + $0x330] sm:$0xff]
    %v3821 = vld [vmem:[#allocation9 + $0x338] sm:$0xff]
    %v3822 = vld [vmem:[#allocation9 + $0x340] sm:$0xff]
    %v3823 = vld [vmem:[#allocation9 + $0x348] sm:$0xff]
    %v3824 = vld [vmem:[#allocation9 + $0x350] sm:$0xff]
    %v3825 = vld [vmem:[#allocation9 + $0x358] sm:$0xff]
    %v3826 = vld [vmem:[#allocation9 + $0x360] sm:$0xff]
    %v3827 = vld [vmem:[#allocation9 + $0x368] sm:$0xff]
    %v3828 = vld [vmem:[#allocation9 + $0x370] sm:$0xff]
    %v3829 = vld [vmem:[#allocation9 + $0x378] sm:$0xff]
    %v3830 = vld [vmem:[#allocation9 + $0x380] sm:$0xff]
    %v3831 = vld [vmem:[#allocation9 + $0x388] sm:$0xff]
    %v3832 = vld [vmem:[#allocation9 + $0x390] sm:$0xff]
    %v3833 = vld [vmem:[#allocation9 + $0x398] sm:$0xff]
    %v3834 = vld [vmem:[#allocation9 + $0x3a0] sm:$0xff]
    %v3835 = vld [vmem:[#allocation9 + $0x3a8] sm:$0xff]
    %v3836 = vld [vmem:[#allocation9 + $0x3b0] sm:$0xff]
    %v3837 = vld [vmem:[#allocation9 + $0x3b8] sm:$0xff]
    %v3838 = vld [vmem:[#allocation9 + $0x3c0] sm:$0xff]
    %v3839 = vld [vmem:[#allocation9 + $0x3c8] sm:$0xff]
    %v3840 = vld [vmem:[#allocation9 + $0x3d0] sm:$0xff]
    %v3841 = vld [vmem:[#allocation9 + $0x3d8] sm:$0xff]
    %v3842 = vld [vmem:[#allocation9 + $0x3e0] sm:$0xff]
    %v3843 = vld [vmem:[#allocation9 + $0x3e8] sm:$0xff]
    %v3844 = vld [vmem:[#allocation9 + $0x3f0] sm:$0xff]
    %v3845 = vld [vmem:[#allocation9 + $0x3f8] sm:$0xff]
    %v3846 = vld [vmem:[#allocation11] sm:$0x1]
    %v3848 = vperm.slane %v3846, 0
    %3850 = vmatpush.msra.mxu0 %v3733
    %3851 = vmatpush.msra.mxu0 %v3732
    %3852 = vmatpush.msra.mxu0 %v3731
    %3853 = vmatpush.msra.mxu0 %v3730
    %3854 = vmatpush.msra.mxu0 %v3729
    %3855 = vmatpush.msra.mxu0 %v3728
    %3856 = vmatpush.msra.mxu0 %v3727
    %3857 = vmatpush.msra.mxu0 %v3726
    %3858 = vmatpush.msra.mxu0 %v3725
    %3859 = vmatpush.msra.mxu0 %v3724
    %3860 = vmatpush.msra.mxu0 %v3723
    %3861 = vmatpush.msra.mxu0 %v3722
    %3862 = vmatpush.msra.mxu0 %v3721
    %3863 = vmatpush.msra.mxu0 %v3720
    %3864 = vmatpush.msra.mxu0 %v3719
    %3865 = vmatpush.msra.mxu0 %v3718
    %3866 = vmatmul.f32.gmra.mxu0 %v3518
    %v3867 = vpop.f32.mrf.mxu0
    %v3868 = vadd.f32 %v3848, %v3867
    %3869 = vmatmul.f32.gmra.mxu0 %v3526
    %v3870 = vpop.f32.mrf.mxu0
    %v3871 = vadd.f32 %v3848, %v3870
    %3872 = vmatmul.f32.gmra.mxu0 %v3534
    %v3873 = vpop.f32.mrf.mxu0
    %v3874 = vadd.f32 %v3848, %v3873
    %3875 = vmatmul.f32.gmra.mxu0 %v3542
    %v3876 = vpop.f32.mrf.mxu0
    %v3877 = vadd.f32 %v3848, %v3876
    %3878 = vmatmul.f32.gmra.mxu0 %v3550
    %v3879 = vpop.f32.mrf.mxu0
    %v3880 = vadd.f32 %v3848, %v3879
    %3881 = vmatmul.f32.gmra.mxu0 %v3558
    %v3882 = vpop.f32.mrf.mxu0
    %v3883 = vadd.f32 %v3848, %v3882
    %3884 = vmatmul.f32.gmra.mxu0 %v3566
    %v3885 = vpop.f32.mrf.mxu0
    %v3886 = vadd.f32 %v3848, %v3885
    %3887 = vmatmul.f32.gmra.mxu0 %v3574
    %v3888 = vpop.f32.mrf.mxu0
    %v3889 = vadd.f32 %v3848, %v3888
    %3890 = vmatmul.f32.gmra.mxu0 %v3582
    %v3891 = vpop.f32.mrf.mxu0
    %v3892 = vadd.f32 %v3848, %v3891
    %3893 = vmatmul.f32.gmra.mxu0 %v3590
    %v3894 = vpop.f32.mrf.mxu0
    %v3895 = vadd.f32 %v3848, %v3894
    %3896 = vmatmul.f32.gmra.mxu0 %v3598
    %v3897 = vpop.f32.mrf.mxu0
    %v3898 = vadd.f32 %v3848, %v3897
    %3899 = vmatmul.f32.gmra.mxu0 %v3606
    %v3900 = vpop.f32.mrf.mxu0
    %v3901 = vadd.f32 %v3848, %v3900
    %3902 = vmatmul.f32.gmra.mxu0 %v3614
    %v3903 = vpop.f32.mrf.mxu0
    %v3904 = vadd.f32 %v3848, %v3903
    %3905 = vmatmul.f32.gmra.mxu0 %v3622
    %v3906 = vpop.f32.mrf.mxu0
    %v3907 = vadd.f32 %v3848, %v3906
    %3908 = vmatmul.f32.gmra.mxu0 %v3630
    %v3909 = vpop.f32.mrf.mxu0
    %v3910 = vadd.f32 %v3848, %v3909
    %3911 = vmatmul.f32.gmra.mxu0 %v3638
    %v3912 = vpop.f32.mrf.mxu0
    %v3913 = vadd.f32 %v3848, %v3912
    %3914 = vmatmul.f32.gmra.mxu0 %v3646
    %v3915 = vpop.f32.mrf.mxu0
    %v3916 = vadd.f32 %v3848, %v3915
    %3917 = vmatmul.f32.gmra.mxu0 %v3654
    %v3918 = vpop.f32.mrf.mxu0
    %v3919 = vadd.f32 %v3848, %v3918
    %3920 = vmatmul.f32.gmra.mxu0 %v3662
    %v3921 = vpop.f32.mrf.mxu0
    %v3922 = vadd.f32 %v3848, %v3921
    %3923 = vmatmul.f32.gmra.mxu0 %v3670
    %v3924 = vpop.f32.mrf.mxu0
    %v3925 = vadd.f32 %v3848, %v3924
    %3926 = vmatmul.f32.gmra.mxu0 %v3678
    %v3927 = vpop.f32.mrf.mxu0
    %v3928 = vadd.f32 %v3848, %v3927
    %3929 = vmatmul.f32.gmra.mxu0 %v3686
    %v3930 = vpop.f32.mrf.mxu0
    %v3931 = vadd.f32 %v3848, %v3930
    %3932 = vmatmul.f32.gmra.mxu0 %v3694
    %v3933 = vpop.f32.mrf.mxu0
    %v3934 = vadd.f32 %v3848, %v3933
    %3935 = vmatmul.f32.gmra.mxu0 %v3702
    %v3936 = vpop.f32.mrf.mxu0
    %v3937 = vadd.f32 %v3848, %v3936
    %3938 = vmatmul.f32.gmra.mxu0 %v3710
    %v3939 = vpop.f32.mrf.mxu0
    %v3940 = vadd.f32 %v3848, %v3939
    %3941 = vdwg.mxu0
    %3942 = vmatpush.msra.mxu0 %v3749
    %3943 = vmatpush.msra.mxu0 %v3748
    %3944 = vmatpush.msra.mxu0 %v3747
    %3945 = vmatpush.msra.mxu0 %v3746
    %3946 = vmatpush.msra.mxu0 %v3745
    %3947 = vmatpush.msra.mxu0 %v3744
    %3948 = vmatpush.msra.mxu0 %v3743
    %3949 = vmatpush.msra.mxu0 %v3742
    %3950 = vmatpush.msra.mxu0 %v3741
    %3951 = vmatpush.msra.mxu0 %v3740
    %3952 = vmatpush.msra.mxu0 %v3739
    %3953 = vmatpush.msra.mxu0 %v3738
    %3954 = vmatpush.msra.mxu0 %v3737
    %3955 = vmatpush.msra.mxu0 %v3736
    %3956 = vmatpush.msra.mxu0 %v3735
    %3957 = vmatpush.msra.mxu0 %v3734
    %3958 = vmatmul.f32.gmra.mxu0 %v3519
    %v3959 = vpop.f32.mrf.mxu0
    %v3960 = vadd.f32 %v3868, %v3959
    %3961 = vmatmul.f32.gmra.mxu0 %v3527
    %v3962 = vpop.f32.mrf.mxu0
    %v3963 = vadd.f32 %v3871, %v3962
    %3964 = vmatmul.f32.gmra.mxu0 %v3535
    %v3965 = vpop.f32.mrf.mxu0
    %v3966 = vadd.f32 %v3874, %v3965
    %3967 = vmatmul.f32.gmra.mxu0 %v3543
    %v3968 = vpop.f32.mrf.mxu0
    %v3969 = vadd.f32 %v3877, %v3968
    %3970 = vmatmul.f32.gmra.mxu0 %v3551
    %v3971 = vpop.f32.mrf.mxu0
    %v3972 = vadd.f32 %v3880, %v3971
    %3973 = vmatmul.f32.gmra.mxu0 %v3559
    %v3974 = vpop.f32.mrf.mxu0
    %v3975 = vadd.f32 %v3883, %v3974
    %3976 = vmatmul.f32.gmra.mxu0 %v3567
    %v3977 = vpop.f32.mrf.mxu0
    %v3978 = vadd.f32 %v3886, %v3977
    %3979 = vmatmul.f32.gmra.mxu0 %v3575
    %v3980 = vpop.f32.mrf.mxu0
    %v3981 = vadd.f32 %v3889, %v3980
    %3982 = vmatmul.f32.gmra.mxu0 %v3583
    %v3983 = vpop.f32.mrf.mxu0
    %v3984 = vadd.f32 %v3892, %v3983
    %3985 = vmatmul.f32.gmra.mxu0 %v3591
    %v3986 = vpop.f32.mrf.mxu0
    %v3987 = vadd.f32 %v3895, %v3986
    %3988 = vmatmul.f32.gmra.mxu0 %v3599
    %v3989 = vpop.f32.mrf.mxu0
    %v3990 = vadd.f32 %v3898, %v3989
    %3991 = vmatmul.f32.gmra.mxu0 %v3607
    %v3992 = vpop.f32.mrf.mxu0
    %v3993 = vadd.f32 %v3901, %v3992
    %3994 = vmatmul.f32.gmra.mxu0 %v3615
    %v3995 = vpop.f32.mrf.mxu0
    %v3996 = vadd.f32 %v3904, %v3995
    %3997 = vmatmul.f32.gmra.mxu0 %v3623
    %v3998 = vpop.f32.mrf.mxu0
    %v3999 = vadd.f32 %v3907, %v3998
    %4000 = vmatmul.f32.gmra.mxu0 %v3631
    %v4001 = vpop.f32.mrf.mxu0
    %v4002 = vadd.f32 %v3910, %v4001
    %4003 = vmatmul.f32.gmra.mxu0 %v3639
    %v4004 = vpop.f32.mrf.mxu0
    %v4005 = vadd.f32 %v3913, %v4004
    %4006 = vmatmul.f32.gmra.mxu0 %v3647
    %v4007 = vpop.f32.mrf.mxu0
    %v4008 = vadd.f32 %v3916, %v4007
    %4009 = vmatmul.f32.gmra.mxu0 %v3655
    %v4010 = vpop.f32.mrf.mxu0
    %v4011 = vadd.f32 %v3919, %v4010
    %4012 = vmatmul.f32.gmra.mxu0 %v3663
    %v4013 = vpop.f32.mrf.mxu0
    %v4014 = vadd.f32 %v3922, %v4013
    %4015 = vmatmul.f32.gmra.mxu0 %v3671
    %v4016 = vpop.f32.mrf.mxu0
    %v4017 = vadd.f32 %v3925, %v4016
    %4018 = vmatmul.f32.gmra.mxu0 %v3679
    %v4019 = vpop.f32.mrf.mxu0
    %v4020 = vadd.f32 %v3928, %v4019
    %4021 = vmatmul.f32.gmra.mxu0 %v3687
    %v4022 = vpop.f32.mrf.mxu0
    %v4023 = vadd.f32 %v3931, %v4022
    %4024 = vmatmul.f32.gmra.mxu0 %v3695
    %v4025 = vpop.f32.mrf.mxu0
    %v4026 = vadd.f32 %v3934, %v4025
    %4027 = vmatmul.f32.gmra.mxu0 %v3703
    %v4028 = vpop.f32.mrf.mxu0
    %v4029 = vadd.f32 %v3937, %v4028
    %4030 = vmatmul.f32.gmra.mxu0 %v3711
    %v4031 = vpop.f32.mrf.mxu0
    %v4032 = vadd.f32 %v3940, %v4031
    %4033 = vdwg.mxu0
    %4034 = vmatpush.msra.mxu0 %v3765
    %4035 = vmatpush.msra.mxu0 %v3764
    %4036 = vmatpush.msra.mxu0 %v3763
    %4037 = vmatpush.msra.mxu0 %v3762
    %4038 = vmatpush.msra.mxu0 %v3761
    %4039 = vmatpush.msra.mxu0 %v3760
    %4040 = vmatpush.msra.mxu0 %v3759
    %4041 = vmatpush.msra.mxu0 %v3758
    %4042 = vmatpush.msra.mxu0 %v3757
    %4043 = vmatpush.msra.mxu0 %v3756
    %4044 = vmatpush.msra.mxu0 %v3755
    %4045 = vmatpush.msra.mxu0 %v3754
    %4046 = vmatpush.msra.mxu0 %v3753
    %4047 = vmatpush.msra.mxu0 %v3752
    %4048 = vmatpush.msra.mxu0 %v3751
    %4049 = vmatpush.msra.mxu0 %v3750
    %4050 = vmatmul.f32.gmra.mxu0 %v3520
    %v4051 = vpop.f32.mrf.mxu0
    %v4052 = vadd.f32 %v3960, %v4051
    %4053 = vmatmul.f32.gmra.mxu0 %v3528
    %v4054 = vpop.f32.mrf.mxu0
    %v4055 = vadd.f32 %v3963, %v4054
    %4056 = vmatmul.f32.gmra.mxu0 %v3536
    %v4057 = vpop.f32.mrf.mxu0
    %v4058 = vadd.f32 %v3966, %v4057
    %4059 = vmatmul.f32.gmra.mxu0 %v3544
    %v4060 = vpop.f32.mrf.mxu0
    %v4061 = vadd.f32 %v3969, %v4060
    %4062 = vmatmul.f32.gmra.mxu0 %v3552
    %v4063 = vpop.f32.mrf.mxu0
    %v4064 = vadd.f32 %v3972, %v4063
    %4065 = vmatmul.f32.gmra.mxu0 %v3560
    %v4066 = vpop.f32.mrf.mxu0
    %v4067 = vadd.f32 %v3975, %v4066
    %4068 = vmatmul.f32.gmra.mxu0 %v3568
    %v4069 = vpop.f32.mrf.mxu0
    %v4070 = vadd.f32 %v3978, %v4069
    %4071 = vmatmul.f32.gmra.mxu0 %v3576
    %v4072 = vpop.f32.mrf.mxu0
    %v4073 = vadd.f32 %v3981, %v4072
    %4074 = vmatmul.f32.gmra.mxu0 %v3584
    %v4075 = vpop.f32.mrf.mxu0
    %v4076 = vadd.f32 %v3984, %v4075
    %4077 = vmatmul.f32.gmra.mxu0 %v3592
    %v4078 = vpop.f32.mrf.mxu0
    %v4079 = vadd.f32 %v3987, %v4078
    %4080 = vmatmul.f32.gmra.mxu0 %v3600
    %v4081 = vpop.f32.mrf.mxu0
    %v4082 = vadd.f32 %v3990, %v4081
    %4083 = vmatmul.f32.gmra.mxu0 %v3608
    %v4084 = vpop.f32.mrf.mxu0
    %v4085 = vadd.f32 %v3993, %v4084
    %4086 = vmatmul.f32.gmra.mxu0 %v3616
    %v4087 = vpop.f32.mrf.mxu0
    %v4088 = vadd.f32 %v3996, %v4087
    %4089 = vmatmul.f32.gmra.mxu0 %v3624
    %v4090 = vpop.f32.mrf.mxu0
    %v4091 = vadd.f32 %v3999, %v4090
    %4092 = vmatmul.f32.gmra.mxu0 %v3632
    %v4093 = vpop.f32.mrf.mxu0
    %v4094 = vadd.f32 %v4002, %v4093
    %4095 = vmatmul.f32.gmra.mxu0 %v3640
    %v4096 = vpop.f32.mrf.mxu0
    %v4097 = vadd.f32 %v4005, %v4096
    %4098 = vmatmul.f32.gmra.mxu0 %v3648
    %v4099 = vpop.f32.mrf.mxu0
    %v4100 = vadd.f32 %v4008, %v4099
    %4101 = vmatmul.f32.gmra.mxu0 %v3656
    %v4102 = vpop.f32.mrf.mxu0
    %v4103 = vadd.f32 %v4011, %v4102
    %4104 = vmatmul.f32.gmra.mxu0 %v3664
    %v4105 = vpop.f32.mrf.mxu0
    %v4106 = vadd.f32 %v4014, %v4105
    %4107 = vmatmul.f32.gmra.mxu0 %v3672
    %v4108 = vpop.f32.mrf.mxu0
    %v4109 = vadd.f32 %v4017, %v4108
    %4110 = vmatmul.f32.gmra.mxu0 %v3680
    %v4111 = vpop.f32.mrf.mxu0
    %v4112 = vadd.f32 %v4020, %v4111
    %4113 = vmatmul.f32.gmra.mxu0 %v3688
    %v4114 = vpop.f32.mrf.mxu0
    %v4115 = vadd.f32 %v4023, %v4114
    %4116 = vmatmul.f32.gmra.mxu0 %v3696
    %v4117 = vpop.f32.mrf.mxu0
    %v4118 = vadd.f32 %v4026, %v4117
    %4119 = vmatmul.f32.gmra.mxu0 %v3704
    %v4120 = vpop.f32.mrf.mxu0
    %v4121 = vadd.f32 %v4029, %v4120
    %4122 = vmatmul.f32.gmra.mxu0 %v3712
    %v4123 = vpop.f32.mrf.mxu0
    %v4124 = vadd.f32 %v4032, %v4123
    %4125 = vdwg.mxu0
    %4126 = vmatpush.msra.mxu0 %v3781
    %4127 = vmatpush.msra.mxu0 %v3780
    %4128 = vmatpush.msra.mxu0 %v3779
    %4129 = vmatpush.msra.mxu0 %v3778
    %4130 = vmatpush.msra.mxu0 %v3777
    %4131 = vmatpush.msra.mxu0 %v3776
    %4132 = vmatpush.msra.mxu0 %v3775
    %4133 = vmatpush.msra.mxu0 %v3774
    %4134 = vmatpush.msra.mxu0 %v3773
    %4135 = vmatpush.msra.mxu0 %v3772
    %4136 = vmatpush.msra.mxu0 %v3771
    %4137 = vmatpush.msra.mxu0 %v3770
    %4138 = vmatpush.msra.mxu0 %v3769
    %4139 = vmatpush.msra.mxu0 %v3768
    %4140 = vmatpush.msra.mxu0 %v3767
    %4141 = vmatpush.msra.mxu0 %v3766
    %4142 = vmatmul.f32.gmra.mxu0 %v3521
    %v4143 = vpop.f32.mrf.mxu0
    %v4144 = vadd.f32 %v4052, %v4143
    %4145 = vmatmul.f32.gmra.mxu0 %v3529
    %v4146 = vpop.f32.mrf.mxu0
    %v4147 = vadd.f32 %v4055, %v4146
    %4148 = vmatmul.f32.gmra.mxu0 %v3537
    %v4149 = vpop.f32.mrf.mxu0
    %v4150 = vadd.f32 %v4058, %v4149
    %4151 = vmatmul.f32.gmra.mxu0 %v3545
    %v4152 = vpop.f32.mrf.mxu0
    %v4153 = vadd.f32 %v4061, %v4152
    %4154 = vmatmul.f32.gmra.mxu0 %v3553
    %v4155 = vpop.f32.mrf.mxu0
    %v4156 = vadd.f32 %v4064, %v4155
    %4157 = vmatmul.f32.gmra.mxu0 %v3561
    %v4158 = vpop.f32.mrf.mxu0
    %v4159 = vadd.f32 %v4067, %v4158
    %4160 = vmatmul.f32.gmra.mxu0 %v3569
    %v4161 = vpop.f32.mrf.mxu0
    %v4162 = vadd.f32 %v4070, %v4161
    %4163 = vmatmul.f32.gmra.mxu0 %v3577
    %v4164 = vpop.f32.mrf.mxu0
    %v4165 = vadd.f32 %v4073, %v4164
    %4166 = vmatmul.f32.gmra.mxu0 %v3585
    %v4167 = vpop.f32.mrf.mxu0
    %v4168 = vadd.f32 %v4076, %v4167
    %4169 = vmatmul.f32.gmra.mxu0 %v3593
    %v4170 = vpop.f32.mrf.mxu0
    %v4171 = vadd.f32 %v4079, %v4170
    %4172 = vmatmul.f32.gmra.mxu0 %v3601
    %v4173 = vpop.f32.mrf.mxu0
    %v4174 = vadd.f32 %v4082, %v4173
    %4175 = vmatmul.f32.gmra.mxu0 %v3609
    %v4176 = vpop.f32.mrf.mxu0
    %v4177 = vadd.f32 %v4085, %v4176
    %4178 = vmatmul.f32.gmra.mxu0 %v3617
    %v4179 = vpop.f32.mrf.mxu0
    %v4180 = vadd.f32 %v4088, %v4179
    %4181 = vmatmul.f32.gmra.mxu0 %v3625
    %v4182 = vpop.f32.mrf.mxu0
    %v4183 = vadd.f32 %v4091, %v4182
    %4184 = vmatmul.f32.gmra.mxu0 %v3633
    %v4185 = vpop.f32.mrf.mxu0
    %v4186 = vadd.f32 %v4094, %v4185
    %4187 = vmatmul.f32.gmra.mxu0 %v3641
    %v4188 = vpop.f32.mrf.mxu0
    %v4189 = vadd.f32 %v4097, %v4188
    %4190 = vmatmul.f32.gmra.mxu0 %v3649
    %v4191 = vpop.f32.mrf.mxu0
    %v4192 = vadd.f32 %v4100, %v4191
    %4193 = vmatmul.f32.gmra.mxu0 %v3657
    %v4194 = vpop.f32.mrf.mxu0
    %v4195 = vadd.f32 %v4103, %v4194
    %4196 = vmatmul.f32.gmra.mxu0 %v3665
    %v4197 = vpop.f32.mrf.mxu0
    %v4198 = vadd.f32 %v4106, %v4197
    %4199 = vmatmul.f32.gmra.mxu0 %v3673
    %v4200 = vpop.f32.mrf.mxu0
    %v4201 = vadd.f32 %v4109, %v4200
    %4202 = vmatmul.f32.gmra.mxu0 %v3681
    %v4203 = vpop.f32.mrf.mxu0
    %v4204 = vadd.f32 %v4112, %v4203
    %4205 = vmatmul.f32.gmra.mxu0 %v3689
    %v4206 = vpop.f32.mrf.mxu0
    %v4207 = vadd.f32 %v4115, %v4206
    %4208 = vmatmul.f32.gmra.mxu0 %v3697
    %v4209 = vpop.f32.mrf.mxu0
    %v4210 = vadd.f32 %v4118, %v4209
    %4211 = vmatmul.f32.gmra.mxu0 %v3705
    %v4212 = vpop.f32.mrf.mxu0
    %v4213 = vadd.f32 %v4121, %v4212
    %4214 = vmatmul.f32.gmra.mxu0 %v3713
    %v4215 = vpop.f32.mrf.mxu0
    %v4216 = vadd.f32 %v4124, %v4215
    %4217 = vdwg.mxu0
    %4218 = vmatpush.msra.mxu0 %v3797
    %4219 = vmatpush.msra.mxu0 %v3796
    %4220 = vmatpush.msra.mxu0 %v3795
    %4221 = vmatpush.msra.mxu0 %v3794
    %4222 = vmatpush.msra.mxu0 %v3793
    %4223 = vmatpush.msra.mxu0 %v3792
    %4224 = vmatpush.msra.mxu0 %v3791
    %4225 = vmatpush.msra.mxu0 %v3790
    %4226 = vmatpush.msra.mxu0 %v3789
    %4227 = vmatpush.msra.mxu0 %v3788
    %4228 = vmatpush.msra.mxu0 %v3787
    %4229 = vmatpush.msra.mxu0 %v3786
    %4230 = vmatpush.msra.mxu0 %v3785
    %4231 = vmatpush.msra.mxu0 %v3784
    %4232 = vmatpush.msra.mxu0 %v3783
    %4233 = vmatpush.msra.mxu0 %v3782
    %4234 = vmatmul.f32.gmra.mxu0 %v3522
    %v4235 = vpop.f32.mrf.mxu0
    %v4236 = vadd.f32 %v4144, %v4235
    %4237 = vmatmul.f32.gmra.mxu0 %v3530
    %v4238 = vpop.f32.mrf.mxu0
    %v4239 = vadd.f32 %v4147, %v4238
    %4240 = vmatmul.f32.gmra.mxu0 %v3538
    %v4241 = vpop.f32.mrf.mxu0
    %v4242 = vadd.f32 %v4150, %v4241
    %4243 = vmatmul.f32.gmra.mxu0 %v3546
    %v4244 = vpop.f32.mrf.mxu0
    %v4245 = vadd.f32 %v4153, %v4244
    %4246 = vmatmul.f32.gmra.mxu0 %v3554
    %v4247 = vpop.f32.mrf.mxu0
    %v4248 = vadd.f32 %v4156, %v4247
    %4249 = vmatmul.f32.gmra.mxu0 %v3562
    %v4250 = vpop.f32.mrf.mxu0
    %v4251 = vadd.f32 %v4159, %v4250
    %4252 = vmatmul.f32.gmra.mxu0 %v3570
    %v4253 = vpop.f32.mrf.mxu0
    %v4254 = vadd.f32 %v4162, %v4253
    %4255 = vmatmul.f32.gmra.mxu0 %v3578
    %v4256 = vpop.f32.mrf.mxu0
    %v4257 = vadd.f32 %v4165, %v4256
    %4258 = vmatmul.f32.gmra.mxu0 %v3586
    %v4259 = vpop.f32.mrf.mxu0
    %v4260 = vadd.f32 %v4168, %v4259
    %4261 = vmatmul.f32.gmra.mxu0 %v3594
    %v4262 = vpop.f32.mrf.mxu0
    %v4263 = vadd.f32 %v4171, %v4262
    %4264 = vmatmul.f32.gmra.mxu0 %v3602
    %v4265 = vpop.f32.mrf.mxu0
    %v4266 = vadd.f32 %v4174, %v4265
    %4267 = vmatmul.f32.gmra.mxu0 %v3610
    %v4268 = vpop.f32.mrf.mxu0
    %v4269 = vadd.f32 %v4177, %v4268
    %4270 = vmatmul.f32.gmra.mxu0 %v3618
    %v4271 = vpop.f32.mrf.mxu0
    %v4272 = vadd.f32 %v4180, %v4271
    %4273 = vmatmul.f32.gmra.mxu0 %v3626
    %v4274 = vpop.f32.mrf.mxu0
    %v4275 = vadd.f32 %v4183, %v4274
    %4276 = vmatmul.f32.gmra.mxu0 %v3634
    %v4277 = vpop.f32.mrf.mxu0
    %v4278 = vadd.f32 %v4186, %v4277
    %4279 = vmatmul.f32.gmra.mxu0 %v3642
    %v4280 = vpop.f32.mrf.mxu0
    %v4281 = vadd.f32 %v4189, %v4280
    %4282 = vmatmul.f32.gmra.mxu0 %v3650
    %v4283 = vpop.f32.mrf.mxu0
    %v4284 = vadd.f32 %v4192, %v4283
    %4285 = vmatmul.f32.gmra.mxu0 %v3658
    %v4286 = vpop.f32.mrf.mxu0
    %v4287 = vadd.f32 %v4195, %v4286
    %4288 = vmatmul.f32.gmra.mxu0 %v3666
    %v4289 = vpop.f32.mrf.mxu0
    %v4290 = vadd.f32 %v4198, %v4289
    %4291 = vmatmul.f32.gmra.mxu0 %v3674
    %v4292 = vpop.f32.mrf.mxu0
    %v4293 = vadd.f32 %v4201, %v4292
    %4294 = vmatmul.f32.gmra.mxu0 %v3682
    %v4295 = vpop.f32.mrf.mxu0
    %v4296 = vadd.f32 %v4204, %v4295
    %4297 = vmatmul.f32.gmra.mxu0 %v3690
    %v4298 = vpop.f32.mrf.mxu0
    %v4299 = vadd.f32 %v4207, %v4298
    %4300 = vmatmul.f32.gmra.mxu0 %v3698
    %v4301 = vpop.f32.mrf.mxu0
    %v4302 = vadd.f32 %v4210, %v4301
    %4303 = vmatmul.f32.gmra.mxu0 %v3706
    %v4304 = vpop.f32.mrf.mxu0
    %v4305 = vadd.f32 %v4213, %v4304
    %4306 = vmatmul.f32.gmra.mxu0 %v3714
    %v4307 = vpop.f32.mrf.mxu0
    %v4308 = vadd.f32 %v4216, %v4307
    %4309 = vdwg.mxu0
    %4310 = vmatpush.msra.mxu0 %v3813
    %4311 = vmatpush.msra.mxu0 %v3812
    %4312 = vmatpush.msra.mxu0 %v3811
    %4313 = vmatpush.msra.mxu0 %v3810
    %4314 = vmatpush.msra.mxu0 %v3809
    %4315 = vmatpush.msra.mxu0 %v3808
    %4316 = vmatpush.msra.mxu0 %v3807
    %4317 = vmatpush.msra.mxu0 %v3806
    %4318 = vmatpush.msra.mxu0 %v3805
    %4319 = vmatpush.msra.mxu0 %v3804
    %4320 = vmatpush.msra.mxu0 %v3803
    %4321 = vmatpush.msra.mxu0 %v3802
    %4322 = vmatpush.msra.mxu0 %v3801
    %4323 = vmatpush.msra.mxu0 %v3800
    %4324 = vmatpush.msra.mxu0 %v3799
    %4325 = vmatpush.msra.mxu0 %v3798
    %4326 = vmatmul.f32.gmra.mxu0 %v3523
    %v4327 = vpop.f32.mrf.mxu0
    %v4328 = vadd.f32 %v4236, %v4327
    %4329 = vmatmul.f32.gmra.mxu0 %v3531
    %v4330 = vpop.f32.mrf.mxu0
    %v4331 = vadd.f32 %v4239, %v4330
    %4332 = vmatmul.f32.gmra.mxu0 %v3539
    %v4333 = vpop.f32.mrf.mxu0
    %v4334 = vadd.f32 %v4242, %v4333
    %4335 = vmatmul.f32.gmra.mxu0 %v3547
    %v4336 = vpop.f32.mrf.mxu0
    %v4337 = vadd.f32 %v4245, %v4336
    %4338 = vmatmul.f32.gmra.mxu0 %v3555
    %v4339 = vpop.f32.mrf.mxu0
    %v4340 = vadd.f32 %v4248, %v4339
    %4341 = vmatmul.f32.gmra.mxu0 %v3563
    %v4342 = vpop.f32.mrf.mxu0
    %v4343 = vadd.f32 %v4251, %v4342
    %4344 = vmatmul.f32.gmra.mxu0 %v3571
    %v4345 = vpop.f32.mrf.mxu0
    %v4346 = vadd.f32 %v4254, %v4345
    %4347 = vmatmul.f32.gmra.mxu0 %v3579
    %v4348 = vpop.f32.mrf.mxu0
    %v4349 = vadd.f32 %v4257, %v4348
    %4350 = vmatmul.f32.gmra.mxu0 %v3587
    %v4351 = vpop.f32.mrf.mxu0
    %v4352 = vadd.f32 %v4260, %v4351
    %4353 = vmatmul.f32.gmra.mxu0 %v3595
    %v4354 = vpop.f32.mrf.mxu0
    %v4355 = vadd.f32 %v4263, %v4354
    %4356 = vmatmul.f32.gmra.mxu0 %v3603
    %v4357 = vpop.f32.mrf.mxu0
    %v4358 = vadd.f32 %v4266, %v4357
    %4359 = vmatmul.f32.gmra.mxu0 %v3611
    %v4360 = vpop.f32.mrf.mxu0
    %v4361 = vadd.f32 %v4269, %v4360
    %4362 = vmatmul.f32.gmra.mxu0 %v3619
    %v4363 = vpop.f32.mrf.mxu0
    %v4364 = vadd.f32 %v4272, %v4363
    %4365 = vmatmul.f32.gmra.mxu0 %v3627
    %v4366 = vpop.f32.mrf.mxu0
    %v4367 = vadd.f32 %v4275, %v4366
    %4368 = vmatmul.f32.gmra.mxu0 %v3635
    %v4369 = vpop.f32.mrf.mxu0
    %v4370 = vadd.f32 %v4278, %v4369
    %4371 = vmatmul.f32.gmra.mxu0 %v3643
    %v4372 = vpop.f32.mrf.mxu0
    %v4373 = vadd.f32 %v4281, %v4372
    %4374 = vmatmul.f32.gmra.mxu0 %v3651
    %v4375 = vpop.f32.mrf.mxu0
    %v4376 = vadd.f32 %v4284, %v4375
    %4377 = vmatmul.f32.gmra.mxu0 %v3659
    %v4378 = vpop.f32.mrf.mxu0
    %v4379 = vadd.f32 %v4287, %v4378
    %4380 = vmatmul.f32.gmra.mxu0 %v3667
    %v4381 = vpop.f32.mrf.mxu0
    %v4382 = vadd.f32 %v4290, %v4381
    %4383 = vmatmul.f32.gmra.mxu0 %v3675
    %v4384 = vpop.f32.mrf.mxu0
    %v4385 = vadd.f32 %v4293, %v4384
    %4386 = vmatmul.f32.gmra.mxu0 %v3683
    %v4387 = vpop.f32.mrf.mxu0
    %v4388 = vadd.f32 %v4296, %v4387
    %4389 = vmatmul.f32.gmra.mxu0 %v3691
    %v4390 = vpop.f32.mrf.mxu0
    %v4391 = vadd.f32 %v4299, %v4390
    %4392 = vmatmul.f32.gmra.mxu0 %v3699
    %v4393 = vpop.f32.mrf.mxu0
    %v4394 = vadd.f32 %v4302, %v4393
    %4395 = vmatmul.f32.gmra.mxu0 %v3707
    %v4396 = vpop.f32.mrf.mxu0
    %v4397 = vadd.f32 %v4305, %v4396
    %4398 = vmatmul.f32.gmra.mxu0 %v3715
    %v4399 = vpop.f32.mrf.mxu0
    %v4400 = vadd.f32 %v4308, %v4399
    %4401 = vdwg.mxu0
    %4402 = vmatpush.msra.mxu0 %v3829
    %4403 = vmatpush.msra.mxu0 %v3828
    %4404 = vmatpush.msra.mxu0 %v3827
    %4405 = vmatpush.msra.mxu0 %v3826
    %4406 = vmatpush.msra.mxu0 %v3825
    %4407 = vmatpush.msra.mxu0 %v3824
    %4408 = vmatpush.msra.mxu0 %v3823
    %4409 = vmatpush.msra.mxu0 %v3822
    %4410 = vmatpush.msra.mxu0 %v3821
    %4411 = vmatpush.msra.mxu0 %v3820
    %4412 = vmatpush.msra.mxu0 %v3819
    %4413 = vmatpush.msra.mxu0 %v3818
    %4414 = vmatpush.msra.mxu0 %v3817
    %4415 = vmatpush.msra.mxu0 %v3816
    %4416 = vmatpush.msra.mxu0 %v3815
    %4417 = vmatpush.msra.mxu0 %v3814
    %4418 = vmatmul.f32.gmra.mxu0 %v3524
    %v4419 = vpop.f32.mrf.mxu0
    %v4420 = vadd.f32 %v4328, %v4419
    %4421 = vmatmul.f32.gmra.mxu0 %v3532
    %v4422 = vpop.f32.mrf.mxu0
    %v4423 = vadd.f32 %v4331, %v4422
    %4424 = vmatmul.f32.gmra.mxu0 %v3540
    %v4425 = vpop.f32.mrf.mxu0
    %v4426 = vadd.f32 %v4334, %v4425
    %4427 = vmatmul.f32.gmra.mxu0 %v3548
    %v4428 = vpop.f32.mrf.mxu0
    %v4429 = vadd.f32 %v4337, %v4428
    %4430 = vmatmul.f32.gmra.mxu0 %v3556
    %v4431 = vpop.f32.mrf.mxu0
    %v4432 = vadd.f32 %v4340, %v4431
    %4433 = vmatmul.f32.gmra.mxu0 %v3564
    %v4434 = vpop.f32.mrf.mxu0
    %v4435 = vadd.f32 %v4343, %v4434
    %4436 = vmatmul.f32.gmra.mxu0 %v3572
    %v4437 = vpop.f32.mrf.mxu0
    %v4438 = vadd.f32 %v4346, %v4437
    %4439 = vmatmul.f32.gmra.mxu0 %v3580
    %v4440 = vpop.f32.mrf.mxu0
    %v4441 = vadd.f32 %v4349, %v4440
    %4442 = vmatmul.f32.gmra.mxu0 %v3588
    %v4443 = vpop.f32.mrf.mxu0
    %v4444 = vadd.f32 %v4352, %v4443
    %4445 = vmatmul.f32.gmra.mxu0 %v3596
    %v4446 = vpop.f32.mrf.mxu0
    %v4447 = vadd.f32 %v4355, %v4446
    %4448 = vmatmul.f32.gmra.mxu0 %v3604
    %v4449 = vpop.f32.mrf.mxu0
    %v4450 = vadd.f32 %v4358, %v4449
    %4451 = vmatmul.f32.gmra.mxu0 %v3612
    %v4452 = vpop.f32.mrf.mxu0
    %v4453 = vadd.f32 %v4361, %v4452
    %4454 = vmatmul.f32.gmra.mxu0 %v3620
    %v4455 = vpop.f32.mrf.mxu0
    %v4456 = vadd.f32 %v4364, %v4455
    %4457 = vmatmul.f32.gmra.mxu0 %v3628
    %v4458 = vpop.f32.mrf.mxu0
    %v4459 = vadd.f32 %v4367, %v4458
    %4460 = vmatmul.f32.gmra.mxu0 %v3636
    %v4461 = vpop.f32.mrf.mxu0
    %v4462 = vadd.f32 %v4370, %v4461
    %4463 = vmatmul.f32.gmra.mxu0 %v3644
    %v4464 = vpop.f32.mrf.mxu0
    %v4465 = vadd.f32 %v4373, %v4464
    %4466 = vmatmul.f32.gmra.mxu0 %v3652
    %v4467 = vpop.f32.mrf.mxu0
    %v4468 = vadd.f32 %v4376, %v4467
    %4469 = vmatmul.f32.gmra.mxu0 %v3660
    %v4470 = vpop.f32.mrf.mxu0
    %v4471 = vadd.f32 %v4379, %v4470
    %4472 = vmatmul.f32.gmra.mxu0 %v3668
    %v4473 = vpop.f32.mrf.mxu0
    %v4474 = vadd.f32 %v4382, %v4473
    %4475 = vmatmul.f32.gmra.mxu0 %v3676
    %v4476 = vpop.f32.mrf.mxu0
    %v4477 = vadd.f32 %v4385, %v4476
    %4478 = vmatmul.f32.gmra.mxu0 %v3684
    %v4479 = vpop.f32.mrf.mxu0
    %v4480 = vadd.f32 %v4388, %v4479
    %4481 = vmatmul.f32.gmra.mxu0 %v3692
    %v4482 = vpop.f32.mrf.mxu0
    %v4483 = vadd.f32 %v4391, %v4482
    %4484 = vmatmul.f32.gmra.mxu0 %v3700
    %v4485 = vpop.f32.mrf.mxu0
    %v4486 = vadd.f32 %v4394, %v4485
    %4487 = vmatmul.f32.gmra.mxu0 %v3708
    %v4488 = vpop.f32.mrf.mxu0
    %v4489 = vadd.f32 %v4397, %v4488
    %4490 = vmatmul.f32.gmra.mxu0 %v3716
    %v4491 = vpop.f32.mrf.mxu0
    %v4492 = vadd.f32 %v4400, %v4491
    %4493 = vdwg.mxu0
    %4494 = vmatpush.msra.mxu0 %v3845
    %4495 = vmatpush.msra.mxu0 %v3844
    %4496 = vmatpush.msra.mxu0 %v3843
    %4497 = vmatpush.msra.mxu0 %v3842
    %4498 = vmatpush.msra.mxu0 %v3841
    %4499 = vmatpush.msra.mxu0 %v3840
    %4500 = vmatpush.msra.mxu0 %v3839
    %4501 = vmatpush.msra.mxu0 %v3838
    %4502 = vmatpush.msra.mxu0 %v3837
    %4503 = vmatpush.msra.mxu0 %v3836
    %4504 = vmatpush.msra.mxu0 %v3835
    %4505 = vmatpush.msra.mxu0 %v3834
    %4506 = vmatpush.msra.mxu0 %v3833
    %4507 = vmatpush.msra.mxu0 %v3832
    %4508 = vmatpush.msra.mxu0 %v3831
    %4509 = vmatpush.msra.mxu0 %v3830
    %4510 = vmatmul.f32.gmra.mxu0 %v3525
    %v4511 = vpop.f32.mrf.mxu0
    %v4512 = vadd.f32 %v4420, %v4511
    %4513 = vmatmul.f32.gmra.mxu0 %v3533
    %v4514 = vpop.f32.mrf.mxu0
    %v4515 = vadd.f32 %v4423, %v4514
    %4516 = vmatmul.f32.gmra.mxu0 %v3541
    %v4517 = vpop.f32.mrf.mxu0
    %v4518 = vadd.f32 %v4426, %v4517
    %4519 = vmatmul.f32.gmra.mxu0 %v3549
    %v4520 = vpop.f32.mrf.mxu0
    %v4521 = vadd.f32 %v4429, %v4520
    %4522 = vmatmul.f32.gmra.mxu0 %v3557
    %v4523 = vpop.f32.mrf.mxu0
    %v4524 = vadd.f32 %v4432, %v4523
    %4525 = vmatmul.f32.gmra.mxu0 %v3565
    %v4526 = vpop.f32.mrf.mxu0
    %v4527 = vadd.f32 %v4435, %v4526
    %4528 = vmatmul.f32.gmra.mxu0 %v3573
    %v4529 = vpop.f32.mrf.mxu0
    %v4530 = vadd.f32 %v4438, %v4529
    %4531 = vmatmul.f32.gmra.mxu0 %v3581
    %v4532 = vpop.f32.mrf.mxu0
    %v4533 = vadd.f32 %v4441, %v4532
    %4534 = vmatmul.f32.gmra.mxu0 %v3589
    %v4535 = vpop.f32.mrf.mxu0
    %v4536 = vadd.f32 %v4444, %v4535
    %4537 = vmatmul.f32.gmra.mxu0 %v3597
    %v4538 = vpop.f32.mrf.mxu0
    %v4539 = vadd.f32 %v4447, %v4538
    %4540 = vmatmul.f32.gmra.mxu0 %v3605
    %v4541 = vpop.f32.mrf.mxu0
    %v4542 = vadd.f32 %v4450, %v4541
    %4543 = vmatmul.f32.gmra.mxu0 %v3613
    %v4544 = vpop.f32.mrf.mxu0
    %v4545 = vadd.f32 %v4453, %v4544
    %4546 = vmatmul.f32.gmra.mxu0 %v3621
    %v4547 = vpop.f32.mrf.mxu0
    %v4548 = vadd.f32 %v4456, %v4547
    %4549 = vmatmul.f32.gmra.mxu0 %v3629
    %v4550 = vpop.f32.mrf.mxu0
    %v4551 = vadd.f32 %v4459, %v4550
    %4552 = vmatmul.f32.gmra.mxu0 %v3637
    %v4553 = vpop.f32.mrf.mxu0
    %v4554 = vadd.f32 %v4462, %v4553
    %4555 = vmatmul.f32.gmra.mxu0 %v3645
    %v4556 = vpop.f32.mrf.mxu0
    %v4557 = vadd.f32 %v4465, %v4556
    %4558 = vmatmul.f32.gmra.mxu0 %v3653
    %v4559 = vpop.f32.mrf.mxu0
    %v4560 = vadd.f32 %v4468, %v4559
    %4561 = vmatmul.f32.gmra.mxu0 %v3661
    %v4562 = vpop.f32.mrf.mxu0
    %v4563 = vadd.f32 %v4471, %v4562
    %4564 = vmatmul.f32.gmra.mxu0 %v3669
    %v4565 = vpop.f32.mrf.mxu0
    %v4566 = vadd.f32 %v4474, %v4565
    %4567 = vmatmul.f32.gmra.mxu0 %v3677
    %v4568 = vpop.f32.mrf.mxu0
    %v4569 = vadd.f32 %v4477, %v4568
    %4570 = vmatmul.f32.gmra.mxu0 %v3685
    %v4571 = vpop.f32.mrf.mxu0
    %v4572 = vadd.f32 %v4480, %v4571
    %4573 = vmatmul.f32.gmra.mxu0 %v3693
    %v4574 = vpop.f32.mrf.mxu0
    %v4575 = vadd.f32 %v4483, %v4574
    %4576 = vmatmul.f32.gmra.mxu0 %v3701
    %v4577 = vpop.f32.mrf.mxu0
    %v4578 = vadd.f32 %v4486, %v4577
    %4579 = vmatmul.f32.gmra.mxu0 %v3709
    %v4580 = vpop.f32.mrf.mxu0
    %v4581 = vadd.f32 %v4489, %v4580
    %4582 = vmatmul.f32.gmra.mxu0 %v3717
    %v4583 = vpop.f32.mrf.mxu0
    %v4584 = vadd.f32 %v4492, %v4583
    %4585 = vdwg.mxu0
    %v4586 = vadd.f32 %v4512, 0.0
    %vm4587 = vcmp.ge.f32.partialorder %v4586, 1.0
    %v4588 = vsel %vm4587, 1, 0
    %v4589 = vcvt.s32.f32 %v4588
    %v4590 = vsub.f32 %v4586, %v4589
    %v4591 = vadd.f32 %v4589, 0.0
    %v4592 = vmul.f32 %v4590, 0.9
    %v4593 = vadd.f32 %v4592, %v4515
    %vm4594 = vcmp.ge.f32.partialorder %v4593, 1.0
    %v4595 = vsel %vm4594, 1, 0
    %v4596 = vcvt.s32.f32 %v4595
    %v4597 = vsub.f32 %v4593, %v4596
    %v4598 = vadd.f32 %v4591, %v4596
    %v4599 = vmul.f32 %v4597, 0.9
    %v4600 = vadd.f32 %v4599, %v4518
    %vm4601 = vcmp.ge.f32.partialorder %v4600, 1.0
    %v4602 = vsel %vm4601, 1, 0
    %v4603 = vcvt.s32.f32 %v4602
    %v4604 = vsub.f32 %v4600, %v4603
    %v4605 = vadd.f32 %v4598, %v4603
    %v4606 = vmul.f32 %v4604, 0.9
    %v4607 = vadd.f32 %v4606, %v4521
    %vm4608 = vcmp.ge.f32.partialorder %v4607, 1.0
    %v4609 = vsel %vm4608, 1, 0
    %v4610 = vcvt.s32.f32 %v4609
    %v4611 = vsub.f32 %v4607, %v4610
    %v4612 = vadd.f32 %v4605, %v4610
    %v4613 = vmul.f32 %v4611, 0.9
    %v4614 = vadd.f32 %v4613, %v4524
    %vm4615 = vcmp.ge.f32.partialorder %v4614, 1.0
    %v4616 = vsel %vm4615, 1, 0
    %v4617 = vcvt.s32.f32 %v4616
    %v4618 = vsub.f32 %v4614, %v4617
    %v4619 = vadd.f32 %v4612, %v4617
    %v4620 = vmul.f32 %v4618, 0.9
    %v4621 = vadd.f32 %v4620, %v4527
    %vm4622 = vcmp.ge.f32.partialorder %v4621, 1.0
    %v4623 = vsel %vm4622, 1, 0
    %v4624 = vcvt.s32.f32 %v4623
    %v4625 = vsub.f32 %v4621, %v4624
    %v4626 = vadd.f32 %v4619, %v4624
    %v4627 = vmul.f32 %v4625, 0.9
    %v4628 = vadd.f32 %v4627, %v4530
    %vm4629 = vcmp.ge.f32.partialorder %v4628, 1.0
    %v4630 = vsel %vm4629, 1, 0
    %v4631 = vcvt.s32.f32 %v4630
    %v4632 = vsub.f32 %v4628, %v4631
    %v4633 = vadd.f32 %v4626, %v4631
    %v4634 = vmul.f32 %v4632, 0.9
    %v4635 = vadd.f32 %v4634, %v4533
    %vm4636 = vcmp.ge.f32.partialorder %v4635, 1.0
    %v4637 = vsel %vm4636, 1, 0
    %v4638 = vcvt.s32.f32 %v4637
    %v4639 = vsub.f32 %v4635, %v4638
    %v4640 = vadd.f32 %v4633, %v4638
    %v4641 = vmul.f32 %v4639, 0.9
    %v4642 = vadd.f32 %v4641, %v4536
    %vm4643 = vcmp.ge.f32.partialorder %v4642, 1.0
    %v4644 = vsel %vm4643, 1, 0
    %v4645 = vcvt.s32.f32 %v4644
    %v4646 = vsub.f32 %v4642, %v4645
    %v4647 = vadd.f32 %v4640, %v4645
    %v4648 = vmul.f32 %v4646, 0.9
    %v4649 = vadd.f32 %v4648, %v4539
    %vm4650 = vcmp.ge.f32.partialorder %v4649, 1.0
    %v4651 = vsel %vm4650, 1, 0
    %v4652 = vcvt.s32.f32 %v4651
    %v4653 = vsub.f32 %v4649, %v4652
    %v4654 = vadd.f32 %v4647, %v4652
    %v4655 = vmul.f32 %v4653, 0.9
    %v4656 = vadd.f32 %v4655, %v4542
    %vm4657 = vcmp.ge.f32.partialorder %v4656, 1.0
    %v4658 = vsel %vm4657, 1, 0
    %v4659 = vcvt.s32.f32 %v4658
    %v4660 = vsub.f32 %v4656, %v4659
    %v4661 = vadd.f32 %v4654, %v4659
    %v4662 = vmul.f32 %v4660, 0.9
    %v4663 = vadd.f32 %v4662, %v4545
    %vm4664 = vcmp.ge.f32.partialorder %v4663, 1.0
    %v4665 = vsel %vm4664, 1, 0
    %v4666 = vcvt.s32.f32 %v4665
    %v4667 = vsub.f32 %v4663, %v4666
    %v4668 = vadd.f32 %v4661, %v4666
    %v4669 = vmul.f32 %v4667, 0.9
    %v4670 = vadd.f32 %v4669, %v4548
    %vm4671 = vcmp.ge.f32.partialorder %v4670, 1.0
    %v4672 = vsel %vm4671, 1, 0
    %v4673 = vcvt.s32.f32 %v4672
    %v4674 = vsub.f32 %v4670, %v4673
    %v4675 = vadd.f32 %v4668, %v4673
    %v4676 = vmul.f32 %v4674, 0.9
    %v4677 = vadd.f32 %v4676, %v4551
    %vm4678 = vcmp.ge.f32.partialorder %v4677, 1.0
    %v4679 = vsel %vm4678, 1, 0
    %v4680 = vcvt.s32.f32 %v4679
    %v4681 = vsub.f32 %v4677, %v4680
    %v4682 = vadd.f32 %v4675, %v4680
    %v4683 = vmul.f32 %v4681, 0.9
    %v4684 = vadd.f32 %v4683, %v4554
    %vm4685 = vcmp.ge.f32.partialorder %v4684, 1.0
    %v4686 = vsel %vm4685, 1, 0
    %v4687 = vcvt.s32.f32 %v4686
    %v4688 = vsub.f32 %v4684, %v4687
    %v4689 = vadd.f32 %v4682, %v4687
    %v4690 = vmul.f32 %v4688, 0.9
    %v4691 = vadd.f32 %v4690, %v4557
    %vm4692 = vcmp.ge.f32.partialorder %v4691, 1.0
    %v4693 = vsel %vm4692, 1, 0
    %v4694 = vcvt.s32.f32 %v4693
    %v4695 = vsub.f32 %v4691, %v4694
    %v4696 = vadd.f32 %v4689, %v4694
    %v4697 = vmul.f32 %v4695, 0.9
    %v4698 = vadd.f32 %v4697, %v4560
    %vm4699 = vcmp.ge.f32.partialorder %v4698, 1.0
    %v4700 = vsel %vm4699, 1, 0
    %v4701 = vcvt.s32.f32 %v4700
    %v4702 = vsub.f32 %v4698, %v4701
    %v4703 = vadd.f32 %v4696, %v4701
    %v4704 = vmul.f32 %v4702, 0.9
    %v4705 = vadd.f32 %v4704, %v4563
    %vm4706 = vcmp.ge.f32.partialorder %v4705, 1.0
    %v4707 = vsel %vm4706, 1, 0
    %v4708 = vcvt.s32.f32 %v4707
    %v4709 = vsub.f32 %v4705, %v4708
    %v4710 = vadd.f32 %v4703, %v4708
    %v4711 = vmul.f32 %v4709, 0.9
    %v4712 = vadd.f32 %v4711, %v4566
    %vm4713 = vcmp.ge.f32.partialorder %v4712, 1.0
    %v4714 = vsel %vm4713, 1, 0
    %v4715 = vcvt.s32.f32 %v4714
    %v4716 = vsub.f32 %v4712, %v4715
    %v4717 = vadd.f32 %v4710, %v4715
    %v4718 = vmul.f32 %v4716, 0.9
    %v4719 = vadd.f32 %v4718, %v4569
    %vm4720 = vcmp.ge.f32.partialorder %v4719, 1.0
    %v4721 = vsel %vm4720, 1, 0
    %v4722 = vcvt.s32.f32 %v4721
    %v4723 = vsub.f32 %v4719, %v4722
    %v4724 = vadd.f32 %v4717, %v4722
    %v4725 = vmul.f32 %v4723, 0.9
    %v4726 = vadd.f32 %v4725, %v4572
    %vm4727 = vcmp.ge.f32.partialorder %v4726, 1.0
    %v4728 = vsel %vm4727, 1, 0
    %v4729 = vcvt.s32.f32 %v4728
    %v4730 = vsub.f32 %v4726, %v4729
    %v4731 = vadd.f32 %v4724, %v4729
    %v4732 = vmul.f32 %v4730, 0.9
    %v4733 = vadd.f32 %v4732, %v4575
    %vm4734 = vcmp.ge.f32.partialorder %v4733, 1.0
    %v4735 = vsel %vm4734, 1, 0
    %v4736 = vcvt.s32.f32 %v4735
    %v4737 = vsub.f32 %v4733, %v4736
    %v4738 = vadd.f32 %v4731, %v4736
    %v4739 = vmul.f32 %v4737, 0.9
    %v4740 = vadd.f32 %v4739, %v4578
    %vm4741 = vcmp.ge.f32.partialorder %v4740, 1.0
    %v4742 = vsel %vm4741, 1, 0
    %v4743 = vcvt.s32.f32 %v4742
    %v4744 = vsub.f32 %v4740, %v4743
    %v4745 = vadd.f32 %v4738, %v4743
    %v4746 = vmul.f32 %v4744, 0.9
    %v4747 = vadd.f32 %v4746, %v4581
    %vm4748 = vcmp.ge.f32.partialorder %v4747, 1.0
    %v4749 = vsel %vm4748, 1, 0
    %v4750 = vcvt.s32.f32 %v4749
    %v4751 = vsub.f32 %v4747, %v4750
    %v4752 = vadd.f32 %v4745, %v4750
    %v4753 = vmul.f32 %v4751, 0.9
    %v4754 = vadd.f32 %v4753, %v4584
    %vm4755 = vcmp.ge.f32.partialorder %v4754, 1.0
    %v4756 = vsel %vm4755, 1, 0
    %v4757 = vcvt.s32.f32 %v4756
    %v4758 = vadd.f32 %v4752, %v4757
    %v4759 = vrcp.pop 25.0
    %v4760 = vmul.f32 25.0, %v4759
    %v4761 = vsub.f32 1.0, %v4760
    %v4762 = vmul.f32 %v4759, %v4761
    %v4763 = vadd.f32 %v4759, %v4762
    %vm4764 = vweird.f32 %v4759
    %v4765 = vsel %vm4764, %v4759, %v4763
    %v4766 = vmul.f32 %v4758, %v4765
    %4767 = vst [vmem:[#allocation12] sm:$0xff] %v4766
    // Predicated region
    $region42: #{tpu_custom_call.1} parent=1 // pred_check
      _
    $region43: #{tpu_custom_call.1} parent=1 // pred_check_branch
      %4769 = sbr.rel (0) target = $region45
    $region44: #{tpu_custom_call.1} parent=1 // pred_region
      %4771 = vsyncadd [#allocation5], 0
      %s4773 = sshll.u32 [#allocation12], 4
      %s4774 = int_to_ptr.vmem [resolvable:$true] %s4773
      %s4775 = sshll.u32 %s5, 4
      %s4776 = int_to_ptr.hbm [resolvable:$true] %s4775
      %4778 = dma.vmem_to_hbm [thread:$0]  %s4774, 128, %s4776, [#allocation5]
    $region45: #{tpu_custom_call.1} parent=1 // pred_fallthru
      _
    // Predicated region
    $region46: #{tpu_custom_call.1} parent=1 // pred_check
      _
    $region47: #{tpu_custom_call.1} parent=1 // pred_check_branch
      %4780 = sbr.rel (0) target = $region49
    $region48: #{tpu_custom_call.1} parent=1 // pred_region
      %4782 = dma.done [#allocation5], 128
    $region49: #{tpu_custom_call.1} parent=1 // pred_fallthru
      _
    %4783 = vsyncpa [#allocation4], 1
    %4784 = vsyncpa [#allocation7], 1
    %4785 = vsyncpa [#allocation10], 1
    %4786 = vsyncpa [#allocation5], 1

</llo_original>
